<compile_context>
chip_gen: v6e
topology: v6e:2x2x1
jax: 0.10.0
libtpu: 0.0.40
codegen_flags: <defaults>
</compile_context>

<pallas_src>
import math
import functools

import numpy as np
import jax
import jax.numpy as jnp
from jax.experimental import pallas as pl
from jax.experimental.pallas import tpu as pltpu


# ---------------------------------------------------------------------------
# Tile-size helper: largest `align`-multiple divisor of `dim` that is
# <= max_tile, else the full dim (full-extent blocks are always legal).
# ---------------------------------------------------------------------------
def _pick_tile(dim, max_tile, align):
    if dim <= max_tile:
        return dim
    t = (max_tile // align) * align
    while t >= align:
        if dim % t == 0:
            return t
        t -= align
    return dim


# ---------------------------------------------------------------------------
# Tiled matmul + bias:  Y = X @ W + b        (W already transposed: (K, N))
# ---------------------------------------------------------------------------
def _linear_kernel(x_ref, w_ref, b_ref, o_ref, acc_ref):
    """bf16 (or other) output: f32 accumulator scratch, bias added at the end."""
    k = pl.program_id(2)

    @pl.when(k == 0)
    def _():
        acc_ref[...] = jnp.zeros_like(acc_ref)

    acc_ref[...] += jnp.dot(x_ref[...], w_ref[...],
                            preferred_element_type=jnp.float32)

    @pl.when(k == pl.num_programs(2) - 1)
    def _():
        o_ref[...] = (acc_ref[...] + b_ref[...]).astype(o_ref.dtype)


def _linear_kernel_f32out(x_ref, w_ref, b_ref, o_ref):
    """f32 output: accumulate directly into o_ref (no scratch, no extra copy)."""
    k = pl.program_id(2)

    @pl.when(k == 0)
    def _():
        o_ref[...] = jnp.broadcast_to(b_ref[...], o_ref.shape)

    o_ref[...] += jnp.dot(x_ref[...], w_ref[...],
                          preferred_element_type=jnp.float32)


def _linear(x, w_t, b, *, out_dtype=None, max_tm=256, max_tn=1024, max_tk=1024):
    """x: (M, K) bf16, w_t: (K, N) bf16, b: (1, N) f32 -> (M, N) out_dtype."""
    M, K = x.shape
    K2, N = w_t.shape
    assert K == K2, (K, K2)
    out_dtype = out_dtype if out_dtype is not None else x.dtype

    tm = _pick_tile(M, max_tm, 8)
    tn = _pick_tile(N, max_tn, 128)
    tk = _pick_tile(K, max_tk, 128)
    assert M % tm == 0 and N % tn == 0 and K % tk == 0, (M, N, K, tm, tn, tk)
    grid = (M // tm, N // tn, K // tk)

    b2 = b.reshape(1, N).astype(jnp.float32)

    if np.dtype(out_dtype) == np.dtype(np.float32):
        kernel = _linear_kernel_f32out
        scratch = []
    else:
        kernel = _linear_kernel
        scratch = [pltpu.VMEM((tm, tn), jnp.float32)]

    return pl.pallas_call(
        kernel,
        out_shape=jax.ShapeDtypeStruct((M, N), out_dtype),
        grid=grid,
        in_specs=[
            pl.BlockSpec((tm, tk), lambda i, j, k: (i, k)),   # X tile
            pl.BlockSpec((tk, tn), lambda i, j, k: (k, j)),   # W tile
            pl.BlockSpec((1, tn), lambda i, j, k: (0, j)),    # bias tile
        ],
        out_specs=pl.BlockSpec((tm, tn), lambda i, j, k: (i, j)),
        scratch_shapes=scratch,
        compiler_params=pltpu.CompilerParams(
            dimension_semantics=("parallel", "parallel", "arbitrary"),
            vmem_limit_bytes=32 * 1024 * 1024),
    )(x, w_t, b2)


# ---------------------------------------------------------------------------
# Flash-style multi-head attention.
#   q : (B, Sq, D)    heads merged, bf16
#   kT: (B, D, Sk)    K pre-transposed once in XLA, bf16
#   v : (B, Sk, D)    heads merged, bf16
# Output: (B, Sq, D)  heads merged (lane-dense), bf16.
# Grid (B, Sq//tq, Sk//tk); online softmax state in f32 VMEM scratch.
# ---------------------------------------------------------------------------
def _flash_mha_kernel(q_ref, kt_ref, v_ref, o_ref, acc_ref, m_ref, l_ref, *,
                      head_num, dk, scale):
    ki = pl.program_id(2)

    @pl.when(ki == 0)
    def _():
        acc_ref[...] = jnp.zeros_like(acc_ref)
        m_ref[...] = jnp.full_like(m_ref, -jnp.inf)
        l_ref[...] = jnp.zeros_like(l_ref)

    q = q_ref[0]      # (tq, D)  bf16
    kt = kt_ref[0]    # (D, tk)  bf16
    v = v_ref[0]      # (tk, D)  bf16

    for h in range(head_num):                     # static unroll over heads
        sl = slice(h * dk, (h + 1) * dk)

        q_h = q[:, sl] * scale                    # scale on q (tq*dk elems), stays bf16
        # [M,K]@[K,N] form: K already transposed -> straight MXU, no in-kernel relayout.
        s = jnp.dot(q_h, kt[sl, :], preferred_element_type=jnp.float32)   # (tq, tk) f32

        m_prev = m_ref[h]                                                 # (tq, 1)
        m_new = jnp.maximum(m_prev, jnp.max(s, axis=-1, keepdims=True))
        alpha = jnp.exp(m_prev - m_new)
        p = jnp.exp(s - m_new)                                            # (tq, tk)
        l_ref[h] = alpha * l_ref[h] + jnp.sum(p, axis=-1, keepdims=True)

        ctx = jnp.dot(p.astype(v.dtype), v[:, sl],
                      preferred_element_type=jnp.float32)                 # (tq, dk)
        acc_ref[:, sl] = alpha * acc_ref[:, sl] + ctx
        m_ref[h] = m_new

    @pl.when(ki == pl.num_programs(2) - 1)
    def _():
        for h in range(head_num):
            sl = slice(h * dk, (h + 1) * dk)
            inv_l = pl.reciprocal(l_ref[h], approx=True)                  # EUP slot
            o_ref[0, :, sl] = (acc_ref[:, sl] * inv_l).astype(o_ref.dtype)


def _flash_attention(q, kt, v, *, head_num, max_tq=256, max_tk=512):
    B, Sq, D = q.shape
    Sk = v.shape[1]
    dk = D // head_num

    tq = _pick_tile(Sq, max_tq, 8)
    tk = _pick_tile(Sk, max_tk, 128)
    grid = (B, Sq // tq, Sk // tk)

    kernel = functools.partial(_flash_mha_kernel, head_num=head_num, dk=dk,
                               scale=1.0 / math.sqrt(dk))
    return pl.pallas_call(
        kernel,
        out_shape=jax.ShapeDtypeStruct((B, Sq, D), q.dtype),
        grid=grid,
        in_specs=[
            pl.BlockSpec((1, tq, D), lambda b, qi, ki: (b, qi, 0)),   # Q
            pl.BlockSpec((1, D, tk), lambda b, qi, ki: (b, 0, ki)),   # K^T
            pl.BlockSpec((1, tk, D), lambda b, qi, ki: (b, ki, 0)),   # V
        ],
        out_specs=pl.BlockSpec((1, tq, D), lambda b, qi, ki: (b, qi, 0)),
        scratch_shapes=[
            pltpu.VMEM((tq, D), jnp.float32),            # context accumulator
            pltpu.VMEM((head_num, tq, 1), jnp.float32),  # running max m
            pltpu.VMEM((head_num, tq, 1), jnp.float32),  # running sum l
        ],
        compiler_params=pltpu.CompilerParams(
            dimension_semantics=("parallel", "parallel", "arbitrary"),
            vmem_limit_bytes=32 * 1024 * 1024),
    )(q, kt, v)


# ---------------------------------------------------------------------------
# Parameter preparation (done ONCE, outside the hot path): transpose /
# concatenate / cast weights so the forward never copies weights in HBM.
# ---------------------------------------------------------------------------
def prepare_mha_params(raw_params):
    Wq, bq, Wk, bk, Wv, bv, Wo, bo = raw_params
    bf = jnp.bfloat16
    f32 = jnp.float32
    return dict(
        # packed (D, 3D) weight for the fused self-attention QKV projection
        w_qkv_t=jnp.concatenate([Wq.T, Wk.T, Wv.T], axis=1).astype(bf),
        b_qkv=jnp.concatenate([bq, bk, bv]).reshape(1, -1).astype(f32),
        # separate projections for the cross-attention path
        w_q_t=Wq.T.astype(bf), b_q=bq.reshape(1, -1).astype(f32),
        w_k_t=Wk.T.astype(bf), b_k=bk.reshape(1, -1).astype(f32),
        w_v_t=Wv.T.astype(bf), b_v=bv.reshape(1, -1).astype(f32),
        # output projection
        w_o_t=Wo.T.astype(bf), b_o=bo.reshape(1, -1).astype(f32),
    )


# ---------------------------------------------------------------------------
# Module forward (split_dim=None path, mask=None).
# `is_self_attention` must be a STATIC bool (it gates the fused QKV matmul).
# ---------------------------------------------------------------------------
def multi_head_attention_forward(query, key, value, params, *, head_num,
                                 is_self_attention=False):
    B, Sq, D = query.shape
    Sk = key.shape[1]
    cdt = jnp.bfloat16

    q_in = query.reshape(B * Sq, D).astype(cdt)
    if is_self_attention:
        # Fused QKV: one lane-dense (B*Sq, 3D) MXU matmul.
        qkv = _linear(q_in, params["w_qkv_t"], params["b_qkv"], out_dtype=cdt)
        q_p, k_p, v_p = jnp.split(qkv, 3, axis=-1)
        Sk = Sq
    else:
        k_in = key.reshape(B * Sk, D).astype(cdt)
        v_in = value.reshape(B * Sk, D).astype(cdt)
        q_p = _linear(q_in, params["w_q_t"], params["b_q"], out_dtype=cdt)
        k_p = _linear(k_in, params["w_k_t"], params["b_k"], out_dtype=cdt)
        v_p = _linear(v_in, params["w_v_t"], params["b_v"], out_dtype=cdt)

    # Heads stay merged: q/v keep (B, S, D); only K gets one XLA transpose.
    q_b = q_p.reshape(B, Sq, D)
    kt_b = k_p.reshape(B, Sk, D).transpose(0, 2, 1)   # (B, D, Sk)
    v_b = v_p.reshape(B, Sk, D)

    ctx = _flash_attention(q_b, kt_b, v_b, head_num=head_num)   # (B, Sq, D) bf16

    out = _linear(ctx.reshape(B * Sq, D), params["w_o_t"], params["b_o"],
                  out_dtype=jnp.float32)
    return out.reshape(B, Sq, D)


# ---------------------------------------------------------------------------
# Params init + pure-JAX reference + demo
# ---------------------------------------------------------------------------
def init_mha_params(key, d_model):
    """Matches nn.Linear default init: U(-1/sqrt(in_features), 1/sqrt(in_features))."""
    bound = 1.0 / math.sqrt(d_model)
    ks = jax.random.split(key, 8)

    def lin(kw, kb):
        W = jax.random.uniform(kw, (d_model, d_model), jnp.float32, -bound, bound)
        b = jax.random.uniform(kb, (d_model,), jnp.float32, -bound, bound)
        return W, b

    Wq, bq = lin(ks[0], ks[1])
    Wk, bk = lin(ks[2], ks[3])
    Wv, bv = lin(ks[4], ks[5])
    Wo, bo = lin(ks[6], ks[7])
    return (Wq, bq, Wk, bk, Wv, bv, Wo, bo)


def _reference_mha(query, key_in, value, raw_params, head_num):
    """Pure-JAX f32 mirror of the PyTorch forward (split_dim=None, mask=None)."""
    Wq, bq, Wk, bk, Wv, bv, Wo, bo = raw_params
    B, Sq, D = query.shape
    dk = D // head_num
    q = (query @ Wq.T + bq).reshape(B, Sq, head_num, dk).transpose(0, 2, 1, 3)
    k = (key_in @ Wk.T + bk).reshape(B, -1, head_num, dk).transpose(0, 2, 1, 3)
    v = (value @ Wv.T + bv).reshape(B, -1, head_num, dk).transpose(0, 2, 1, 3)
    s = jnp.einsum('bhqd,bhkd->bhqk', q, k) / math.sqrt(dk)
    p = jax.nn.softmax(s, axis=-1)
    ctx = jnp.einsum('bhqk,bhkd->bhqd', p, v)
    ctx = ctx.transpose(0, 2, 1, 3).reshape(B, Sq, D)
    return ctx @ Wo.T + bo


if __name__ == "__main__":
    batch, seq_len = 2, 16
    d_model, head_num = 512, 8     # -> d_k = d_v = 64 (PyTorch defaults)

    root = jax.random.PRNGKey(0)
    kx, kp = jax.random.split(root)
    x = jax.random.normal(kx, (batch, seq_len, d_model), jnp.float32)

    raw_params = init_mha_params(kp, d_model)
    params = prepare_mha_params(raw_params)   # once, outside the hot path

    fwd = jax.jit(functools.partial(multi_head_attention_forward,
                                    head_num=head_num, is_self_attention=True))
    out = jax.block_until_ready(fwd(x, x, x, params))

    ref = _reference_mha(x, x, x, raw_params, head_num)
    assert out.shape == (batch, seq_len, d_model)
    err = float(jnp.max(jnp.abs(out - ref)))
    assert err < 5e-2, err        # bf16 MXU operands, f32 accumulation

    print("KERNEL_OK")
</pallas_src>

<mosaic_0001>
module attributes {stable_mosaic.version = 11 : i64} {
  func.func @_linear_kernel(%arg0: i32, %arg1: i32, %arg2: i32, %arg3: memref<32x512xbf16, #tpu.memory_space<vmem>>, %arg4: memref<512x768xbf16, #tpu.memory_space<vmem>>, %arg5: memref<1x768xf32, #tpu.memory_space<vmem>>, %arg6: memref<32x768xbf16, #tpu.memory_space<vmem>>, %arg7: memref<32x768xf32, #tpu.memory_space<vmem>>) attributes {dimension_semantics = [#tpu.dimension_semantics<parallel>, #tpu.dimension_semantics<parallel>, #tpu.dimension_semantics<arbitrary>], iteration_bounds = array<i64: 1, 2, 1>, scalar_prefetch = 0 : i64, scratch_operands = 1 : i64, tpu.core_type = #tpu.core_type<tc>, window_params = [{transform_indices = @transform_0, window_bounds = array<i64: 32, 512>}, {transform_indices = @transform_1, window_bounds = array<i64: 512, 768>}, {transform_indices = @transform_2, window_bounds = array<i64: 1, 768>}, {transform_indices = @transform_3, window_bounds = array<i64: 32, 768>}]} {
    %c0_i32 = arith.constant 0 : i32
    %0 = arith.cmpi eq, %arg2, %c0_i32 : i32
    %1 = arith.extui %0 : i1 to i32
    %c0_i32_0 = arith.constant 0 : i32
    %2 = arith.cmpi ne, %1, %c0_i32_0 : i32
    scf.if %2 {
      %cst_10 = arith.constant 0.000000e+00 : f32
      %12 = vector.broadcast %cst_10 : f32 to vector<32x768xf32>
      %c0_11 = arith.constant 0 : index
      %c0_12 = arith.constant 0 : index
      %13 = vector.load %arg7[%c0_11, %c0_12] : memref<32x768xf32, #tpu.memory_space<vmem>>, vector<32x768xf32>
      tpu.vector_store %arg7[%c0_11, %c0_12], %12 {strides = array<i32>} : memref<32x768xf32, #tpu.memory_space<vmem>>, vector<32x768xf32>,
    } else {
    }
    %c0 = arith.constant 0 : index
    %c0_1 = arith.constant 0 : index
    %3 = vector.load %arg7[%c0, %c0_1] : memref<32x768xf32, #tpu.memory_space<vmem>>, vector<32x768xf32>
    %c0_2 = arith.constant 0 : index
    %c0_3 = arith.constant 0 : index
    %4 = vector.load %arg3[%c0_2, %c0_3] : memref<32x512xbf16, #tpu.memory_space<vmem>>, vector<32x512xbf16>
    %c0_4 = arith.constant 0 : index
    %c0_5 = arith.constant 0 : index
    %5 = vector.load %arg4[%c0_4, %c0_5] : memref<512x768xbf16, #tpu.memory_space<vmem>>, vector<512x768xbf16>
    %cst = arith.constant dense<0.000000e+00> : vector<32x768xf32>
    %6 = tpu.matmul %4, %5, %cst {dimension_numbers = #tpu.dot_dimension_numbers<[1], [0], [0], [1], [0, 0, 1, 1], [], []>} : vector<32x512xbf16>, vector<512x768xbf16>, vector<32x768xf32> -> vector<32x768xf32>
    %7 = arith.addf %3, %6 : vector<32x768xf32>
    %c0_6 = arith.constant 0 : index
    %c0_7 = arith.constant 0 : index
    %8 = vector.load %arg7[%c0_6, %c0_7] : memref<32x768xf32, #tpu.memory_space<vmem>>, vector<32x768xf32>
    tpu.vector_store %arg7[%c0_6, %c0_7], %7 {strides = array<i32>} : memref<32x768xf32, #tpu.memory_space<vmem>>, vector<32x768xf32>,
    %c0_i32_8 = arith.constant 0 : i32
    %9 = arith.cmpi eq, %arg2, %c0_i32_8 : i32
    %10 = arith.extui %9 : i1 to i32
    %c0_i32_9 = arith.constant 0 : i32
    %11 = arith.cmpi ne, %10, %c0_i32_9 : i32
    scf.if %11 {
      %c0_10 = arith.constant 0 : index
      %c0_11 = arith.constant 0 : index
      %12 = vector.load %arg7[%c0_10, %c0_11] : memref<32x768xf32, #tpu.memory_space<vmem>>, vector<32x768xf32>
      %c0_12 = arith.constant 0 : index
      %c0_13 = arith.constant 0 : index
      %13 = vector.load %arg5[%c0_12, %c0_13] : memref<1x768xf32, #tpu.memory_space<vmem>>, vector<1x768xf32>
      %14 = vector.broadcast %13 : vector<1x768xf32> to vector<32x768xf32>
      %15 = arith.addf %12, %14 : vector<32x768xf32>
      %16 = arith.truncf %15 : vector<32x768xf32> to vector<32x768xbf16>
      %c0_14 = arith.constant 0 : index
      %c0_15 = arith.constant 0 : index
      %17 = vector.load %arg6[%c0_14, %c0_15] : memref<32x768xbf16, #tpu.memory_space<vmem>>, vector<32x768xbf16>
      tpu.vector_store %arg6[%c0_14, %c0_15], %16 {strides = array<i32>} : memref<32x768xbf16, #tpu.memory_space<vmem>>, vector<32x768xbf16>,
    } else {
    }
    return
  }
  func.func @transform_0(%arg0: i32, %arg1: i32, %arg2: i32) -> (i32, i32) {
    %c0_i32 = arith.constant 0 : i32
    return %arg0, %arg2 : i32, i32
  }
  func.func @transform_1(%arg0: i32, %arg1: i32, %arg2: i32) -> (i32, i32) {
    %c0_i32 = arith.constant 0 : i32
    return %arg2, %arg1 : i32, i32
  }
  func.func @transform_2(%arg0: i32, %arg1: i32, %arg2: i32) -> (i32, i32) {
    %c0_i32 = arith.constant 0 : i32
    %c0_i32_0 = arith.constant 0 : i32
    return %c0_i32, %arg1 : i32, i32
  }
  func.func @transform_3(%arg0: i32, %arg1: i32, %arg2: i32) -> (i32, i32) {
    %c0_i32 = arith.constant 0 : i32
    return %arg0, %arg1 : i32, i32
  }
}

module attributes {stable_mosaic.version = 11 : i64} {
  func.func @_linear_kernel_f32out(%arg0: i32, %arg1: i32, %arg2: i32, %arg3: memref<32x512xbf16, #tpu.memory_space<vmem>>, %arg4: memref<512x512xbf16, #tpu.memory_space<vmem>>, %arg5: memref<1x512xf32, #tpu.memory_space<vmem>>, %arg6: memref<32x512xf32, #tpu.memory_space<vmem>>) attributes {dimension_semantics = [#tpu.dimension_semantics<parallel>, #tpu.dimension_semantics<parallel>, #tpu.dimension_semantics<arbitrary>], iteration_bounds = array<i64: 1, 1, 1>, scalar_prefetch = 0 : i64, scratch_operands = 0 : i64, tpu.core_type = #tpu.core_type<tc>, window_params = [{transform_indices = @transform_0, window_bounds = array<i64: 32, 512>}, {transform_indices = @transform_1, window_bounds = array<i64: 512, 512>}, {transform_indices = @transform_2, window_bounds = array<i64: 1, 512>}, {transform_indices = @transform_3, window_bounds = array<i64: 32, 512>}]} {
    %c0_i32 = arith.constant 0 : i32
    %0 = arith.cmpi eq, %arg2, %c0_i32 : i32
    %1 = arith.extui %0 : i1 to i32
    %c0_i32_0 = arith.constant 0 : i32
    %2 = arith.cmpi ne, %1, %c0_i32_0 : i32
    scf.if %2 {
      %c0_8 = arith.constant 0 : index
      %c0_9 = arith.constant 0 : index
      %9 = vector.load %arg5[%c0_8, %c0_9] : memref<1x512xf32, #tpu.memory_space<vmem>>, vector<1x512xf32>
      %10 = vector.shape_cast %9 : vector<1x512xf32> to vector<1x512xf32>
      %11 = vector.broadcast %10 : vector<1x512xf32> to vector<32x512xf32>
      %c0_10 = arith.constant 0 : index
      %c0_11 = arith.constant 0 : index
      %12 = vector.load %arg6[%c0_10, %c0_11] : memref<32x512xf32, #tpu.memory_space<vmem>>, vector<32x512xf32>
      tpu.vector_store %arg6[%c0_10, %c0_11], %11 {strides = array<i32>} : memref<32x512xf32, #tpu.memory_space<vmem>>, vector<32x512xf32>,
    } else {
    }
    %c0 = arith.constant 0 : index
    %c0_1 = arith.constant 0 : index
    %3 = vector.load %arg6[%c0, %c0_1] : memref<32x512xf32, #tpu.memory_space<vmem>>, vector<32x512xf32>
    %c0_2 = arith.constant 0 : index
    %c0_3 = arith.constant 0 : index
    %4 = vector.load %arg3[%c0_2, %c0_3] : memref<32x512xbf16, #tpu.memory_space<vmem>>, vector<32x512xbf16>
    %c0_4 = arith.constant 0 : index
    %c0_5 = arith.constant 0 : index
    %5 = vector.load %arg4[%c0_4, %c0_5] : memref<512x512xbf16, #tpu.memory_space<vmem>>, vector<512x512xbf16>
    %cst = arith.constant dense<0.000000e+00> : vector<32x512xf32>
    %6 = tpu.matmul %4, %5, %cst {dimension_numbers = #tpu.dot_dimension_numbers<[1], [0], [0], [1], [0, 0, 1, 1], [], []>} : vector<32x512xbf16>, vector<512x512xbf16>, vector<32x512xf32> -> vector<32x512xf32>
    %7 = arith.addf %3, %6 : vector<32x512xf32>
    %c0_6 = arith.constant 0 : index
    %c0_7 = arith.constant 0 : index
    %8 = vector.load %arg6[%c0_6, %c0_7] : memref<32x512xf32, #tpu.memory_space<vmem>>, vector<32x512xf32>
    tpu.vector_store %arg6[%c0_6, %c0_7], %7 {strides = array<i32>} : memref<32x512xf32, #tpu.memory_space<vmem>>, vector<32x512xf32>,
    return
  }
  func.func @transform_0(%arg0: i32, %arg1: i32, %arg2: i32) -> (i32, i32) {
    %c0_i32 = arith.constant 0 : i32
    return %arg0, %arg2 : i32, i32
  }
  func.func @transform_1(%arg0: i32, %arg1: i32, %arg2: i32) -> (i32, i32) {
    %c0_i32 = arith.constant 0 : i32
    return %arg2, %arg1 : i32, i32
  }
  func.func @transform_2(%arg0: i32, %arg1: i32, %arg2: i32) -> (i32, i32) {
    %c0_i32 = arith.constant 0 : i32
    %c0_i32_0 = arith.constant 0 : i32
    return %c0_i32, %arg1 : i32, i32
  }
  func.func @transform_3(%arg0: i32, %arg1: i32, %arg2: i32) -> (i32, i32) {
    %c0_i32 = arith.constant 0 : i32
    return %arg0, %arg1 : i32, i32
  }
}

module attributes {stable_mosaic.version = 11 : i64} {
  func.func @_flash_mha_kernel(%arg0: i32, %arg1: i32, %arg2: i32, %arg3: memref<1x16x512xbf16, #tpu.memory_space<vmem>>, %arg4: memref<1x512x16xbf16, #tpu.memory_space<vmem>>, %arg5: memref<1x16x512xbf16, #tpu.memory_space<vmem>>, %arg6: memref<1x16x512xbf16, #tpu.memory_space<vmem>>, %arg7: memref<16x512xf32, #tpu.memory_space<vmem>>, %arg8: memref<8x16x1xf32, #tpu.memory_space<vmem>>, %arg9: memref<8x16x1xf32, #tpu.memory_space<vmem>>) attributes {dimension_semantics = [#tpu.dimension_semantics<parallel>, #tpu.dimension_semantics<parallel>, #tpu.dimension_semantics<arbitrary>], iteration_bounds = array<i64: 2, 1, 1>, scalar_prefetch = 0 : i64, scratch_operands = 3 : i64, tpu.core_type = #tpu.core_type<tc>, window_params = [{transform_indices = @transform_0, window_bounds = array<i64: 1, 16, 512>}, {transform_indices = @transform_1, window_bounds = array<i64: 1, 512, 16>}, {transform_indices = @transform_2, window_bounds = array<i64: 1, 16, 512>}, {transform_indices = @transform_3, window_bounds = array<i64: 1, 16, 512>}]} {
    %c0_i32 = arith.constant 0 : i32
    %0 = arith.cmpi eq, %arg2, %c0_i32 : i32
    %1 = arith.extui %0 : i1 to i32
    %c0_i32_0 = arith.constant 0 : i32
    %2 = arith.cmpi ne, %1, %c0_i32_0 : i32
    scf.if %2 {
      %cst_164 = arith.constant 0.000000e+00 : f32
      %292 = vector.broadcast %cst_164 : f32 to vector<16x512xf32>
      %c0_165 = arith.constant 0 : index
      %c0_166 = arith.constant 0 : index
      %293 = vector.load %arg7[%c0_165, %c0_166] : memref<16x512xf32, #tpu.memory_space<vmem>>, vector<16x512xf32>
      tpu.vector_store %arg7[%c0_165, %c0_166], %292 {strides = array<i32>} : memref<16x512xf32, #tpu.memory_space<vmem>>, vector<16x512xf32>,
      %cst_167 = arith.constant 0xFF800000 : f32
      %294 = vector.broadcast %cst_167 : f32 to vector<8x16x1xf32>
      %c0_168 = arith.constant 0 : index
      %c0_169 = arith.constant 0 : index
      %c0_170 = arith.constant 0 : index
      %295 = vector.load %arg8[%c0_168, %c0_169, %c0_170] : memref<8x16x1xf32, #tpu.memory_space<vmem>>, vector<8x16x1xf32>
      tpu.vector_store %arg8[%c0_168, %c0_169, %c0_170], %294 {strides = array<i32>} : memref<8x16x1xf32, #tpu.memory_space<vmem>>, vector<8x16x1xf32>,
      %cst_171 = arith.constant 0.000000e+00 : f32
      %296 = vector.broadcast %cst_171 : f32 to vector<8x16x1xf32>
      %c0_172 = arith.constant 0 : index
      %c0_173 = arith.constant 0 : index
      %c0_174 = arith.constant 0 : index
      %297 = vector.load %arg9[%c0_172, %c0_173, %c0_174] : memref<8x16x1xf32, #tpu.memory_space<vmem>>, vector<8x16x1xf32>
      tpu.vector_store %arg9[%c0_172, %c0_173, %c0_174], %296 {strides = array<i32>} : memref<8x16x1xf32, #tpu.memory_space<vmem>>, vector<8x16x1xf32>,
    } else {
    }
    %c0 = arith.constant 0 : index
    %c0_1 = arith.constant 0 : index
    %c0_2 = arith.constant 0 : index
    %3 = vector.load %arg3[%c0, %c0_1, %c0_2] : memref<1x16x512xbf16, #tpu.memory_space<vmem>>, vector<1x16x512xbf16>
    %4 = vector.shape_cast %3 : vector<1x16x512xbf16> to vector<16x512xbf16>
    %c0_3 = arith.constant 0 : index
    %c0_4 = arith.constant 0 : index
    %c0_5 = arith.constant 0 : index
    %5 = vector.load %arg4[%c0_3, %c0_4, %c0_5] : memref<1x512x16xbf16, #tpu.memory_space<vmem>>, vector<1x512x16xbf16>
    %6 = vector.shape_cast %5 : vector<1x512x16xbf16> to vector<512x16xbf16>
    %c0_6 = arith.constant 0 : index
    %c0_7 = arith.constant 0 : index
    %c0_8 = arith.constant 0 : index
    %7 = vector.load %arg5[%c0_6, %c0_7, %c0_8] : memref<1x16x512xbf16, #tpu.memory_space<vmem>>, vector<1x16x512xbf16>
    %8 = vector.shape_cast %7 : vector<1x16x512xbf16> to vector<16x512xbf16>
    %9 = vector.extract_strided_slice %4 {offsets = [0, 0], sizes = [16, 64], strides = [1, 1]} : vector<16x512xbf16> to vector<16x64xbf16>
    %cst = arith.constant 1.250000e-01 : bf16
    %10 = vector.broadcast %cst : bf16 to vector<16x64xbf16>
    %11 = arith.mulf %9, %10 : vector<16x64xbf16>
    %12 = vector.extract_strided_slice %6 {offsets = [0, 0], sizes = [64, 16], strides = [1, 1]} : vector<512x16xbf16> to vector<64x16xbf16>
    %cst_9 = arith.constant dense<0.000000e+00> : vector<16x16xf32>
    %13 = tpu.matmul %11, %12, %cst_9 {dimension_numbers = #tpu.dot_dimension_numbers<[1], [0], [0], [1], [0, 0, 1, 1], [], []>} : vector<16x64xbf16>, vector<64x16xbf16>, vector<16x16xf32> -> vector<16x16xf32>
    %c0_10 = arith.constant 0 : index
    %c0_11 = arith.constant 0 : index
    %c0_12 = arith.constant 0 : index
    %14 = vector.load %arg8[%c0_10, %c0_11, %c0_12] : memref<8x16x1xf32, #tpu.memory_space<vmem>>, vector<1x16x1xf32>
    %15 = vector.shape_cast %14 : vector<1x16x1xf32> to vector<16x1xf32>
    %cst_13 = arith.constant dense<0xFF800000> : vector<16xf32>
    %16 = vector.multi_reduction <maximumf>, %13, %cst_13 [1] : vector<16x16xf32> to vector<16xf32>
    %17 = vector.shape_cast %16 : vector<16xf32> to vector<16x1xf32>
    %18 = arith.maximumf %15, %17 : vector<16x1xf32>
    %19 = arith.subf %15, %18 : vector<16x1xf32>
    %20 = math.exp %19 : vector<16x1xf32>
    %21 = vector.broadcast %18 : vector<16x1xf32> to vector<16x16xf32>
    %22 = arith.subf %13, %21 : vector<16x16xf32>
    %23 = math.exp %22 : vector<16x16xf32>
    %c0_14 = arith.constant 0 : index
    %c0_15 = arith.constant 0 : index
    %c0_16 = arith.constant 0 : index
    %24 = vector.load %arg9[%c0_14, %c0_15, %c0_16] : memref<8x16x1xf32, #tpu.memory_space<vmem>>, vector<1x16x1xf32>
    %25 = vector.shape_cast %24 : vector<1x16x1xf32> to vector<16x1xf32>
    %26 = arith.mulf %20, %25 : vector<16x1xf32>
    %cst_17 = arith.constant dense<0.000000e+00> : vector<16xf32>
    %27 = vector.multi_reduction <add>, %23, %cst_17 [1] : vector<16x16xf32> to vector<16xf32>
    %28 = vector.shape_cast %27 : vector<16xf32> to vector<16x1xf32>
    %29 = arith.addf %26, %28 : vector<16x1xf32>
    %c0_18 = arith.constant 0 : index
    %c0_19 = arith.constant 0 : index
    %c0_20 = arith.constant 0 : index
    %30 = vector.load %arg9[%c0_18, %c0_19, %c0_20] : memref<8x16x1xf32, #tpu.memory_space<vmem>>, vector<1x16x1xf32>
    %31 = vector.shape_cast %30 : vector<1x16x1xf32> to vector<16x1xf32>
    %32 = vector.shape_cast %29 : vector<16x1xf32> to vector<1x16x1xf32>
    tpu.vector_store %arg9[%c0_18, %c0_19, %c0_20], %32 {strides = array<i32>} : memref<8x16x1xf32, #tpu.memory_space<vmem>>, vector<1x16x1xf32>,
    %33 = arith.truncf %23 : vector<16x16xf32> to vector<16x16xbf16>
    %34 = vector.extract_strided_slice %8 {offsets = [0, 0], sizes = [16, 64], strides = [1, 1]} : vector<16x512xbf16> to vector<16x64xbf16>
    %cst_21 = arith.constant dense<0.000000e+00> : vector<16x64xf32>
    %35 = tpu.matmul %33, %34, %cst_21 {dimension_numbers = #tpu.dot_dimension_numbers<[1], [0], [0], [1], [0, 0, 1, 1], [], []>} : vector<16x16xbf16>, vector<16x64xbf16>, vector<16x64xf32> -> vector<16x64xf32>
    %c0_22 = arith.constant 0 : index
    %c0_23 = arith.constant 0 : index
    %36 = vector.load %arg7[%c0_22, %c0_23] : memref<16x512xf32, #tpu.memory_space<vmem>>, vector<16x64xf32>
    %37 = vector.broadcast %20 : vector<16x1xf32> to vector<16x64xf32>
    %38 = arith.mulf %37, %36 : vector<16x64xf32>
    %39 = arith.addf %38, %35 : vector<16x64xf32>
    %c0_24 = arith.constant 0 : index
    %c0_25 = arith.constant 0 : index
    %40 = vector.load %arg7[%c0_24, %c0_25] : memref<16x512xf32, #tpu.memory_space<vmem>>, vector<16x64xf32>
    tpu.vector_store %arg7[%c0_24, %c0_25], %39 {strides = array<i32>} : memref<16x512xf32, #tpu.memory_space<vmem>>, vector<16x64xf32>,
    %c0_26 = arith.constant 0 : index
    %c0_27 = arith.constant 0 : index
    %c0_28 = arith.constant 0 : index
    %41 = vector.load %arg8[%c0_26, %c0_27, %c0_28] : memref<8x16x1xf32, #tpu.memory_space<vmem>>, vector<1x16x1xf32>
    %42 = vector.shape_cast %41 : vector<1x16x1xf32> to vector<16x1xf32>
    %43 = vector.shape_cast %18 : vector<16x1xf32> to vector<1x16x1xf32>
    tpu.vector_store %arg8[%c0_26, %c0_27, %c0_28], %43 {strides = array<i32>} : memref<8x16x1xf32, #tpu.memory_space<vmem>>, vector<1x16x1xf32>,
    %44 = vector.extract_strided_slice %4 {offsets = [0, 64], sizes = [16, 64], strides = [1, 1]} : vector<16x512xbf16> to vector<16x64xbf16>
    %cst_29 = arith.constant 1.250000e-01 : bf16
    %45 = vector.broadcast %cst_29 : bf16 to vector<16x64xbf16>
    %46 = arith.mulf %44, %45 : vector<16x64xbf16>
    %47 = vector.extract_strided_slice %6 {offsets = [64, 0], sizes = [64, 16], strides = [1, 1]} : vector<512x16xbf16> to vector<64x16xbf16>
    %cst_30 = arith.constant dense<0.000000e+00> : vector<16x16xf32>
    %48 = tpu.matmul %46, %47, %cst_30 {dimension_numbers = #tpu.dot_dimension_numbers<[1], [0], [0], [1], [0, 0, 1, 1], [], []>} : vector<16x64xbf16>, vector<64x16xbf16>, vector<16x16xf32> -> vector<16x16xf32>
    %c1 = arith.constant 1 : index
    %c0_31 = arith.constant 0 : index
    %c0_32 = arith.constant 0 : index
    %49 = vector.load %arg8[%c1, %c0_31, %c0_32] : memref<8x16x1xf32, #tpu.memory_space<vmem>>, vector<1x16x1xf32>
    %50 = vector.shape_cast %49 : vector<1x16x1xf32> to vector<16x1xf32>
    %cst_33 = arith.constant dense<0xFF800000> : vector<16xf32>
    %51 = vector.multi_reduction <maximumf>, %48, %cst_33 [1] : vector<16x16xf32> to vector<16xf32>
    %52 = vector.shape_cast %51 : vector<16xf32> to vector<16x1xf32>
    %53 = arith.maximumf %50, %52 : vector<16x1xf32>
    %54 = arith.subf %50, %53 : vector<16x1xf32>
    %55 = math.exp %54 : vector<16x1xf32>
    %56 = vector.broadcast %53 : vector<16x1xf32> to vector<16x16xf32>
    %57 = arith.subf %48, %56 : vector<16x16xf32>
    %58 = math.exp %57 : vector<16x16xf32>
    %c1_34 = arith.constant 1 : index
    %c0_35 = arith.constant 0 : index
    %c0_36 = arith.constant 0 : index
    %59 = vector.load %arg9[%c1_34, %c0_35, %c0_36] : memref<8x16x1xf32, #tpu.memory_space<vmem>>, vector<1x16x1xf32>
    %60 = vector.shape_cast %59 : vector<1x16x1xf32> to vector<16x1xf32>
    %61 = arith.mulf %55, %60 : vector<16x1xf32>
    %cst_37 = arith.constant dense<0.000000e+00> : vector<16xf32>
    %62 = vector.multi_reduction <add>, %58, %cst_37 [1] : vector<16x16xf32> to vector<16xf32>
    %63 = vector.shape_cast %62 : vector<16xf32> to vector<16x1xf32>
    %64 = arith.addf %61, %63 : vector<16x1xf32>
    %c1_38 = arith.constant 1 : index
    %c0_39 = arith.constant 0 : index
    %c0_40 = arith.constant 0 : index
    %65 = vector.load %arg9[%c1_38, %c0_39, %c0_40] : memref<8x16x1xf32, #tpu.memory_space<vmem>>, vector<1x16x1xf32>
    %66 = vector.shape_cast %65 : vector<1x16x1xf32> to vector<16x1xf32>
    %67 = vector.shape_cast %64 : vector<16x1xf32> to vector<1x16x1xf32>
    tpu.vector_store %arg9[%c1_38, %c0_39, %c0_40], %67 {strides = array<i32>} : memref<8x16x1xf32, #tpu.memory_space<vmem>>, vector<1x16x1xf32>,
    %68 = arith.truncf %58 : vector<16x16xf32> to vector<16x16xbf16>
    %69 = vector.extract_strided_slice %8 {offsets = [0, 64], sizes = [16, 64], strides = [1, 1]} : vector<16x512xbf16> to vector<16x64xbf16>
    %cst_41 = arith.constant dense<0.000000e+00> : vector<16x64xf32>
    %70 = tpu.matmul %68, %69, %cst_41 {dimension_numbers = #tpu.dot_dimension_numbers<[1], [0], [0], [1], [0, 0, 1, 1], [], []>} : vector<16x16xbf16>, vector<16x64xbf16>, vector<16x64xf32> -> vector<16x64xf32>
    %c0_42 = arith.constant 0 : index
    %c64 = arith.constant 64 : index
    %71 = vector.load %arg7[%c0_42, %c64] : memref<16x512xf32, #tpu.memory_space<vmem>>, vector<16x64xf32>
    %72 = vector.broadcast %55 : vector<16x1xf32> to vector<16x64xf32>
    %73 = arith.mulf %72, %71 : vector<16x64xf32>
    %74 = arith.addf %73, %70 : vector<16x64xf32>
    %c0_43 = arith.constant 0 : index
    %c64_44 = arith.constant 64 : index
    %75 = vector.load %arg7[%c0_43, %c64_44] : memref<16x512xf32, #tpu.memory_space<vmem>>, vector<16x64xf32>
    tpu.vector_store %arg7[%c0_43, %c64_44], %74 {strides = array<i32>} : memref<16x512xf32, #tpu.memory_space<vmem>>, vector<16x64xf32>,
    %c1_45 = arith.constant 1 : index
    %c0_46 = arith.constant 0 : index
    %c0_47 = arith.constant 0 : index
    %76 = vector.load %arg8[%c1_45, %c0_46, %c0_47] : memref<8x16x1xf32, #tpu.memory_space<vmem>>, vector<1x16x1xf32>
    %77 = vector.shape_cast %76 : vector<1x16x1xf32> to vector<16x1xf32>
    %78 = vector.shape_cast %53 : vector<16x1xf32> to vector<1x16x1xf32>
    tpu.vector_store %arg8[%c1_45, %c0_46, %c0_47], %78 {strides = array<i32>} : memref<8x16x1xf32, #tpu.memory_space<vmem>>, vector<1x16x1xf32>,
    %79 = vector.extract_strided_slice %4 {offsets = [0, 128], sizes = [16, 64], strides = [1, 1]} : vector<16x512xbf16> to vector<16x64xbf16>
    %cst_48 = arith.constant 1.250000e-01 : bf16
    %80 = vector.broadcast %cst_48 : bf16 to vector<16x64xbf16>
    %81 = arith.mulf %79, %80 : vector<16x64xbf16>
    %82 = vector.extract_strided_slice %6 {offsets = [128, 0], sizes = [64, 16], strides = [1, 1]} : vector<512x16xbf16> to vector<64x16xbf16>
    %cst_49 = arith.constant dense<0.000000e+00> : vector<16x16xf32>
    %83 = tpu.matmul %81, %82, %cst_49 {dimension_numbers = #tpu.dot_dimension_numbers<[1], [0], [0], [1], [0, 0, 1, 1], [], []>} : vector<16x64xbf16>, vector<64x16xbf16>, vector<16x16xf32> -> vector<16x16xf32>
    %c2 = arith.constant 2 : index
    %c0_50 = arith.constant 0 : index
    %c0_51 = arith.constant 0 : index
    %84 = vector.load %arg8[%c2, %c0_50, %c0_51] : memref<8x16x1xf32, #tpu.memory_space<vmem>>, vector<1x16x1xf32>
    %85 = vector.shape_cast %84 : vector<1x16x1xf32> to vector<16x1xf32>
    %cst_52 = arith.constant dense<0xFF800000> : vector<16xf32>
    %86 = vector.multi_reduction <maximumf>, %83, %cst_52 [1] : vector<16x16xf32> to vector<16xf32>
    %87 = vector.shape_cast %86 : vector<16xf32> to vector<16x1xf32>
    %88 = arith.maximumf %85, %87 : vector<16x1xf32>
    %89 = arith.subf %85, %88 : vector<16x1xf32>
    %90 = math.exp %89 : vector<16x1xf32>
    %91 = vector.broadcast %88 : vector<16x1xf32> to vector<16x16xf32>
    %92 = arith.subf %83, %91 : vector<16x16xf32>
    %93 = math.exp %92 : vector<16x16xf32>
    %c2_53 = arith.constant 2 : index
    %c0_54 = arith.constant 0 : index
    %c0_55 = arith.constant 0 : index
    %94 = vector.load %arg9[%c2_53, %c0_54, %c0_55] : memref<8x16x1xf32, #tpu.memory_space<vmem>>, vector<1x16x1xf32>
    %95 = vector.shape_cast %94 : vector<1x16x1xf32> to vector<16x1xf32>
    %96 = arith.mulf %90, %95 : vector<16x1xf32>
    %cst_56 = arith.constant dense<0.000000e+00> : vector<16xf32>
    %97 = vector.multi_reduction <add>, %93, %cst_56 [1] : vector<16x16xf32> to vector<16xf32>
    %98 = vector.shape_cast %97 : vector<16xf32> to vector<16x1xf32>
    %99 = arith.addf %96, %98 : vector<16x1xf32>
    %c2_57 = arith.constant 2 : index
    %c0_58 = arith.constant 0 : index
    %c0_59 = arith.constant 0 : index
    %100 = vector.load %arg9[%c2_57, %c0_58, %c0_59] : memref<8x16x1xf32, #tpu.memory_space<vmem>>, vector<1x16x1xf32>
    %101 = vector.shape_cast %100 : vector<1x16x1xf32> to vector<16x1xf32>
    %102 = vector.shape_cast %99 : vector<16x1xf32> to vector<1x16x1xf32>
    tpu.vector_store %arg9[%c2_57, %c0_58, %c0_59], %102 {strides = array<i32>} : memref<8x16x1xf32, #tpu.memory_space<vmem>>, vector<1x16x1xf32>,
    %103 = arith.truncf %93 : vector<16x16xf32> to vector<16x16xbf16>
    %104 = vector.extract_strided_slice %8 {offsets = [0, 128], sizes = [16, 64], strides = [1, 1]} : vector<16x512xbf16> to vector<16x64xbf16>
    %cst_60 = arith.constant dense<0.000000e+00> : vector<16x64xf32>
    %105 = tpu.matmul %103, %104, %cst_60 {dimension_numbers = #tpu.dot_dimension_numbers<[1], [0], [0], [1], [0, 0, 1, 1], [], []>} : vector<16x16xbf16>, vector<16x64xbf16>, vector<16x64xf32> -> vector<16x64xf32>
    %c0_61 = arith.constant 0 : index
    %c128 = arith.constant 128 : index
    %106 = vector.load %arg7[%c0_61, %c128] : memref<16x512xf32, #tpu.memory_space<vmem>>, vector<16x64xf32>
    %107 = vector.broadcast %90 : vector<16x1xf32> to vector<16x64xf32>
    %108 = arith.mulf %107, %106 : vector<16x64xf32>
    %109 = arith.addf %108, %105 : vector<16x64xf32>
    %c0_62 = arith.constant 0 : index
    %c128_63 = arith.constant 128 : index
    %110 = vector.load %arg7[%c0_62, %c128_63] : memref<16x512xf32, #tpu.memory_space<vmem>>, vector<16x64xf32>
    tpu.vector_store %arg7[%c0_62, %c128_63], %109 {strides = array<i32>} : memref<16x512xf32, #tpu.memory_space<vmem>>, vector<16x64xf32>,
    %c2_64 = arith.constant 2 : index
    %c0_65 = arith.constant 0 : index
    %c0_66 = arith.constant 0 : index
    %111 = vector.load %arg8[%c2_64, %c0_65, %c0_66] : memref<8x16x1xf32, #tpu.memory_space<vmem>>, vector<1x16x1xf32>
    %112 = vector.shape_cast %111 : vector<1x16x1xf32> to vector<16x1xf32>
    %113 = vector.shape_cast %88 : vector<16x1xf32> to vector<1x16x1xf32>
    tpu.vector_store %arg8[%c2_64, %c0_65, %c0_66], %113 {strides = array<i32>} : memref<8x16x1xf32, #tpu.memory_space<vmem>>, vector<1x16x1xf32>,
    %114 = vector.extract_strided_slice %4 {offsets = [0, 192], sizes = [16, 64], strides = [1, 1]} : vector<16x512xbf16> to vector<16x64xbf16>
    %cst_67 = arith.constant 1.250000e-01 : bf16
    %115 = vector.broadcast %cst_67 : bf16 to vector<16x64xbf16>
    %116 = arith.mulf %114, %115 : vector<16x64xbf16>
    %117 = vector.extract_strided_slice %6 {offsets = [192, 0], sizes = [64, 16], strides = [1, 1]} : vector<512x16xbf16> to vector<64x16xbf16>
    %cst_68 = arith.constant dense<0.000000e+00> : vector<16x16xf32>
    %118 = tpu.matmul %116, %117, %cst_68 {dimension_numbers = #tpu.dot_dimension_numbers<[1], [0], [0], [1], [0, 0, 1, 1], [], []>} : vector<16x64xbf16>, vector<64x16xbf16>, vector<16x16xf32> -> vector<16x16xf32>
    %c3 = arith.constant 3 : index
    %c0_69 = arith.constant 0 : index
    %c0_70 = arith.constant 0 : index
    %119 = vector.load %arg8[%c3, %c0_69, %c0_70] : memref<8x16x1xf32, #tpu.memory_space<vmem>>, vector<1x16x1xf32>
    %120 = vector.shape_cast %119 : vector<1x16x1xf32> to vector<16x1xf32>
    %cst_71 = arith.constant dense<0xFF800000> : vector<16xf32>
    %121 = vector.multi_reduction <maximumf>, %118, %cst_71 [1] : vector<16x16xf32> to vector<16xf32>
    %122 = vector.shape_cast %121 : vector<16xf32> to vector<16x1xf32>
    %123 = arith.maximumf %120, %122 : vector<16x1xf32>
    %124 = arith.subf %120, %123 : vector<16x1xf32>
    %125 = math.exp %124 : vector<16x1xf32>
    %126 = vector.broadcast %123 : vector<16x1xf32> to vector<16x16xf32>
    %127 = arith.subf %118, %126 : vector<16x16xf32>
    %128 = math.exp %127 : vector<16x16xf32>
    %c3_72 = arith.constant 3 : index
    %c0_73 = arith.constant 0 : index
    %c0_74 = arith.constant 0 : index
    %129 = vector.load %arg9[%c3_72, %c0_73, %c0_74] : memref<8x16x1xf32, #tpu.memory_space<vmem>>, vector<1x16x1xf32>
    %130 = vector.shape_cast %129 : vector<1x16x1xf32> to vector<16x1xf32>
    %131 = arith.mulf %125, %130 : vector<16x1xf32>
    %cst_75 = arith.constant dense<0.000000e+00> : vector<16xf32>
    %132 = vector.multi_reduction <add>, %128, %cst_75 [1] : vector<16x16xf32> to vector<16xf32>
    %133 = vector.shape_cast %132 : vector<16xf32> to vector<16x1xf32>
    %134 = arith.addf %131, %133 : vector<16x1xf32>
    %c3_76 = arith.constant 3 : index
    %c0_77 = arith.constant 0 : index
    %c0_78 = arith.constant 0 : index
    %135 = vector.load %arg9[%c3_76, %c0_77, %c0_78] : memref<8x16x1xf32, #tpu.memory_space<vmem>>, vector<1x16x1xf32>
    %136 = vector.shape_cast %135 : vector<1x16x1xf32> to vector<16x1xf32>
    %137 = vector.shape_cast %134 : vector<16x1xf32> to vector<1x16x1xf32>
    tpu.vector_store %arg9[%c3_76, %c0_77, %c0_78], %137 {strides = array<i32>} : memref<8x16x1xf32, #tpu.memory_space<vmem>>, vector<1x16x1xf32>,
    %138 = arith.truncf %128 : vector<16x16xf32> to vector<16x16xbf16>
    %139 = vector.extract_strided_slice %8 {offsets = [0, 192], sizes = [16, 64], strides = [1, 1]} : vector<16x512xbf16> to vector<16x64xbf16>
    %cst_79 = arith.constant dense<0.000000e+00> : vector<16x64xf32>
    %140 = tpu.matmul %138, %139, %cst_79 {dimension_numbers = #tpu.dot_dimension_numbers<[1], [0], [0], [1], [0, 0, 1, 1], [], []>} : vector<16x16xbf16>, vector<16x64xbf16>, vector<16x64xf32> -> vector<16x64xf32>
    %c0_80 = arith.constant 0 : index
    %c192 = arith.constant 192 : index
    %141 = vector.load %arg7[%c0_80, %c192] : memref<16x512xf32, #tpu.memory_space<vmem>>, vector<16x64xf32>
    %142 = vector.broadcast %125 : vector<16x1xf32> to vector<16x64xf32>
    %143 = arith.mulf %142, %141 : vector<16x64xf32>
    %144 = arith.addf %143, %140 : vector<16x64xf32>
    %c0_81 = arith.constant 0 : index
    %c192_82 = arith.constant 192 : index
    %145 = vector.load %arg7[%c0_81, %c192_82] : memref<16x512xf32, #tpu.memory_space<vmem>>, vector<16x64xf32>
    tpu.vector_store %arg7[%c0_81, %c192_82], %144 {strides = array<i32>} : memref<16x512xf32, #tpu.memory_space<vmem>>, vector<16x64xf32>,
    %c3_83 = arith.constant 3 : index
    %c0_84 = arith.constant 0 : index
    %c0_85 = arith.constant 0 : index
    %146 = vector.load %arg8[%c3_83, %c0_84, %c0_85] : memref<8x16x1xf32, #tpu.memory_space<vmem>>, vector<1x16x1xf32>
    %147 = vector.shape_cast %146 : vector<1x16x1xf32> to vector<16x1xf32>
    %148 = vector.shape_cast %123 : vector<16x1xf32> to vector<1x16x1xf32>
    tpu.vector_store %arg8[%c3_83, %c0_84, %c0_85], %148 {strides = array<i32>} : memref<8x16x1xf32, #tpu.memory_space<vmem>>, vector<1x16x1xf32>,
    %149 = vector.extract_strided_slice %4 {offsets = [0, 256], sizes = [16, 64], strides = [1, 1]} : vector<16x512xbf16> to vector<16x64xbf16>
    %cst_86 = arith.constant 1.250000e-01 : bf16
    %150 = vector.broadcast %cst_86 : bf16 to vector<16x64xbf16>
    %151 = arith.mulf %149, %150 : vector<16x64xbf16>
    %152 = vector.extract_strided_slice %6 {offsets = [256, 0], sizes = [64, 16], strides = [1, 1]} : vector<512x16xbf16> to vector<64x16xbf16>
    %cst_87 = arith.constant dense<0.000000e+00> : vector<16x16xf32>
    %153 = tpu.matmul %151, %152, %cst_87 {dimension_numbers = #tpu.dot_dimension_numbers<[1], [0], [0], [1], [0, 0, 1, 1], [], []>} : vector<16x64xbf16>, vector<64x16xbf16>, vector<16x16xf32> -> vector<16x16xf32>
    %c4 = arith.constant 4 : index
    %c0_88 = arith.constant 0 : index
    %c0_89 = arith.constant 0 : index
    %154 = vector.load %arg8[%c4, %c0_88, %c0_89] : memref<8x16x1xf32, #tpu.memory_space<vmem>>, vector<1x16x1xf32>
    %155 = vector.shape_cast %154 : vector<1x16x1xf32> to vector<16x1xf32>
    %cst_90 = arith.constant dense<0xFF800000> : vector<16xf32>
    %156 = vector.multi_reduction <maximumf>, %153, %cst_90 [1] : vector<16x16xf32> to vector<16xf32>
    %157 = vector.shape_cast %156 : vector<16xf32> to vector<16x1xf32>
    %158 = arith.maximumf %155, %157 : vector<16x1xf32>
    %159 = arith.subf %155, %158 : vector<16x1xf32>
    %160 = math.exp %159 : vector<16x1xf32>
    %161 = vector.broadcast %158 : vector<16x1xf32> to vector<16x16xf32>
    %162 = arith.subf %153, %161 : vector<16x16xf32>
    %163 = math.exp %162 : vector<16x16xf32>
    %c4_91 = arith.constant 4 : index
    %c0_92 = arith.constant 0 : index
    %c0_93 = arith.constant 0 : index
    %164 = vector.load %arg9[%c4_91, %c0_92, %c0_93] : memref<8x16x1xf32, #tpu.memory_space<vmem>>, vector<1x16x1xf32>
    %165 = vector.shape_cast %164 : vector<1x16x1xf32> to vector<16x1xf32>
    %166 = arith.mulf %160, %165 : vector<16x1xf32>
    %cst_94 = arith.constant dense<0.000000e+00> : vector<16xf32>
    %167 = vector.multi_reduction <add>, %163, %cst_94 [1] : vector<16x16xf32> to vector<16xf32>
    %168 = vector.shape_cast %167 : vector<16xf32> to vector<16x1xf32>
    %169 = arith.addf %166, %168 : vector<16x1xf32>
    %c4_95 = arith.constant 4 : index
    %c0_96 = arith.constant 0 : index
    %c0_97 = arith.constant 0 : index
    %170 = vector.load %arg9[%c4_95, %c0_96, %c0_97] : memref<8x16x1xf32, #tpu.memory_space<vmem>>, vector<1x16x1xf32>
    %171 = vector.shape_cast %170 : vector<1x16x1xf32> to vector<16x1xf32>
    %172 = vector.shape_cast %169 : vector<16x1xf32> to vector<1x16x1xf32>
    tpu.vector_store %arg9[%c4_95, %c0_96, %c0_97], %172 {strides = array<i32>} : memref<8x16x1xf32, #tpu.memory_space<vmem>>, vector<1x16x1xf32>,
    %173 = arith.truncf %163 : vector<16x16xf32> to vector<16x16xbf16>
    %174 = vector.extract_strided_slice %8 {offsets = [0, 256], sizes = [16, 64], strides = [1, 1]} : vector<16x512xbf16> to vector<16x64xbf16>
    %cst_98 = arith.constant dense<0.000000e+00> : vector<16x64xf32>
    %175 = tpu.matmul %173, %174, %cst_98 {dimension_numbers = #tpu.dot_dimension_numbers<[1], [0], [0], [1], [0, 0, 1, 1], [], []>} : vector<16x16xbf16>, vector<16x64xbf16>, vector<16x64xf32> -> vector<16x64xf32>
    %c0_99 = arith.constant 0 : index
    %c256 = arith.constant 256 : index
    %176 = vector.load %arg7[%c0_99, %c256] : memref<16x512xf32, #tpu.memory_space<vmem>>, vector<16x64xf32>
    %177 = vector.broadcast %160 : vector<16x1xf32> to vector<16x64xf32>
    %178 = arith.mulf %177, %176 : vector<16x64xf32>
    %179 = arith.addf %178, %175 : vector<16x64xf32>
    %c0_100 = arith.constant 0 : index
    %c256_101 = arith.constant 256 : index
    %180 = vector.load %arg7[%c0_100, %c256_101] : memref<16x512xf32, #tpu.memory_space<vmem>>, vector<16x64xf32>
    tpu.vector_store %arg7[%c0_100, %c256_101], %179 {strides = array<i32>} : memref<16x512xf32, #tpu.memory_space<vmem>>, vector<16x64xf32>,
    %c4_102 = arith.constant 4 : index
    %c0_103 = arith.constant 0 : index
    %c0_104 = arith.constant 0 : index
    %181 = vector.load %arg8[%c4_102, %c0_103, %c0_104] : memref<8x16x1xf32, #tpu.memory_space<vmem>>, vector<1x16x1xf32>
    %182 = vector.shape_cast %181 : vector<1x16x1xf32> to vector<16x1xf32>
    %183 = vector.shape_cast %158 : vector<16x1xf32> to vector<1x16x1xf32>
    tpu.vector_store %arg8[%c4_102, %c0_103, %c0_104], %183 {strides = array<i32>} : memref<8x16x1xf32, #tpu.memory_space<vmem>>, vector<1x16x1xf32>,
    %184 = vector.extract_strided_slice %4 {offsets = [0, 320], sizes = [16, 64], strides = [1, 1]} : vector<16x512xbf16> to vector<16x64xbf16>
    %cst_105 = arith.constant 1.250000e-01 : bf16
    %185 = vector.broadcast %cst_105 : bf16 to vector<16x64xbf16>
    %186 = arith.mulf %184, %185 : vector<16x64xbf16>
    %187 = vector.extract_strided_slice %6 {offsets = [320, 0], sizes = [64, 16], strides = [1, 1]} : vector<512x16xbf16> to vector<64x16xbf16>
    %cst_106 = arith.constant dense<0.000000e+00> : vector<16x16xf32>
    %188 = tpu.matmul %186, %187, %cst_106 {dimension_numbers = #tpu.dot_dimension_numbers<[1], [0], [0], [1], [0, 0, 1, 1], [], []>} : vector<16x64xbf16>, vector<64x16xbf16>, vector<16x16xf32> -> vector<16x16xf32>
    %c5 = arith.constant 5 : index
    %c0_107 = arith.constant 0 : index
    %c0_108 = arith.constant 0 : index
    %189 = vector.load %arg8[%c5, %c0_107, %c0_108] : memref<8x16x1xf32, #tpu.memory_space<vmem>>, vector<1x16x1xf32>
    %190 = vector.shape_cast %189 : vector<1x16x1xf32> to vector<16x1xf32>
    %cst_109 = arith.constant dense<0xFF800000> : vector<16xf32>
    %191 = vector.multi_reduction <maximumf>, %188, %cst_109 [1] : vector<16x16xf32> to vector<16xf32>
    %192 = vector.shape_cast %191 : vector<16xf32> to vector<16x1xf32>
    %193 = arith.maximumf %190, %192 : vector<16x1xf32>
    %194 = arith.subf %190, %193 : vector<16x1xf32>
    %195 = math.exp %194 : vector<16x1xf32>
    %196 = vector.broadcast %193 : vector<16x1xf32> to vector<16x16xf32>
    %197 = arith.subf %188, %196 : vector<16x16xf32>
    %198 = math.exp %197 : vector<16x16xf32>
    %c5_110 = arith.constant 5 : index
    %c0_111 = arith.constant 0 : index
    %c0_112 = arith.constant 0 : index
    %199 = vector.load %arg9[%c5_110, %c0_111, %c0_112] : memref<8x16x1xf32, #tpu.memory_space<vmem>>, vector<1x16x1xf32>
    %200 = vector.shape_cast %199 : vector<1x16x1xf32> to vector<16x1xf32>
    %201 = arith.mulf %195, %200 : vector<16x1xf32>
    %cst_113 = arith.constant dense<0.000000e+00> : vector<16xf32>
    %202 = vector.multi_reduction <add>, %198, %cst_113 [1] : vector<16x16xf32> to vector<16xf32>
    %203 = vector.shape_cast %202 : vector<16xf32> to vector<16x1xf32>
    %204 = arith.addf %201, %203 : vector<16x1xf32>
    %c5_114 = arith.constant 5 : index
    %c0_115 = arith.constant 0 : index
    %c0_116 = arith.constant 0 : index
    %205 = vector.load %arg9[%c5_114, %c0_115, %c0_116] : memref<8x16x1xf32, #tpu.memory_space<vmem>>, vector<1x16x1xf32>
    %206 = vector.shape_cast %205 : vector<1x16x1xf32> to vector<16x1xf32>
    %207 = vector.shape_cast %204 : vector<16x1xf32> to vector<1x16x1xf32>
    tpu.vector_store %arg9[%c5_114, %c0_115, %c0_116], %207 {strides = array<i32>} : memref<8x16x1xf32, #tpu.memory_space<vmem>>, vector<1x16x1xf32>,
    %208 = arith.truncf %198 : vector<16x16xf32> to vector<16x16xbf16>
    %209 = vector.extract_strided_slice %8 {offsets = [0, 320], sizes = [16, 64], strides = [1, 1]} : vector<16x512xbf16> to vector<16x64xbf16>
    %cst_117 = arith.constant dense<0.000000e+00> : vector<16x64xf32>
    %210 = tpu.matmul %208, %209, %cst_117 {dimension_numbers = #tpu.dot_dimension_numbers<[1], [0], [0], [1], [0, 0, 1, 1], [], []>} : vector<16x16xbf16>, vector<16x64xbf16>, vector<16x64xf32> -> vector<16x64xf32>
    %c0_118 = arith.constant 0 : index
    %c320 = arith.constant 320 : index
    %211 = vector.load %arg7[%c0_118, %c320] : memref<16x512xf32, #tpu.memory_space<vmem>>, vector<16x64xf32>
    %212 = vector.broadcast %195 : vector<16x1xf32> to vector<16x64xf32>
    %213 = arith.mulf %212, %211 : vector<16x64xf32>
    %214 = arith.addf %213, %210 : vector<16x64xf32>
    %c0_119 = arith.constant 0 : index
    %c320_120 = arith.constant 320 : index
    %215 = vector.load %arg7[%c0_119, %c320_120] : memref<16x512xf32, #tpu.memory_space<vmem>>, vector<16x64xf32>
    tpu.vector_store %arg7[%c0_119, %c320_120], %214 {strides = array<i32>} : memref<16x512xf32, #tpu.memory_space<vmem>>, vector<16x64xf32>,
    %c5_121 = arith.constant 5 : index
    %c0_122 = arith.constant 0 : index
    %c0_123 = arith.constant 0 : index
    %216 = vector.load %arg8[%c5_121, %c0_122, %c0_123] : memref<8x16x1xf32, #tpu.memory_space<vmem>>, vector<1x16x1xf32>
    %217 = vector.shape_cast %216 : vector<1x16x1xf32> to vector<16x1xf32>
    %218 = vector.shape_cast %193 : vector<16x1xf32> to vector<1x16x1xf32>
    tpu.vector_store %arg8[%c5_121, %c0_122, %c0_123], %218 {strides = array<i32>} : memref<8x16x1xf32, #tpu.memory_space<vmem>>, vector<1x16x1xf32>,
    %219 = vector.extract_strided_slice %4 {offsets = [0, 384], sizes = [16, 64], strides = [1, 1]} : vector<16x512xbf16> to vector<16x64xbf16>
    %cst_124 = arith.constant 1.250000e-01 : bf16
    %220 = vector.broadcast %cst_124 : bf16 to vector<16x64xbf16>
    %221 = arith.mulf %219, %220 : vector<16x64xbf16>
    %222 = vector.extract_strided_slice %6 {offsets = [384, 0], sizes = [64, 16], strides = [1, 1]} : vector<512x16xbf16> to vector<64x16xbf16>
    %cst_125 = arith.constant dense<0.000000e+00> : vector<16x16xf32>
    %223 = tpu.matmul %221, %222, %cst_125 {dimension_numbers = #tpu.dot_dimension_numbers<[1], [0], [0], [1], [0, 0, 1, 1], [], []>} : vector<16x64xbf16>, vector<64x16xbf16>, vector<16x16xf32> -> vector<16x16xf32>
    %c6 = arith.constant 6 : index
    %c0_126 = arith.constant 0 : index
    %c0_127 = arith.constant 0 : index
    %224 = vector.load %arg8[%c6, %c0_126, %c0_127] : memref<8x16x1xf32, #tpu.memory_space<vmem>>, vector<1x16x1xf32>
    %225 = vector.shape_cast %224 : vector<1x16x1xf32> to vector<16x1xf32>
    %cst_128 = arith.constant dense<0xFF800000> : vector<16xf32>
    %226 = vector.multi_reduction <maximumf>, %223, %cst_128 [1] : vector<16x16xf32> to vector<16xf32>
    %227 = vector.shape_cast %226 : vector<16xf32> to vector<16x1xf32>
    %228 = arith.maximumf %225, %227 : vector<16x1xf32>
    %229 = arith.subf %225, %228 : vector<16x1xf32>
    %230 = math.exp %229 : vector<16x1xf32>
    %231 = vector.broadcast %228 : vector<16x1xf32> to vector<16x16xf32>
    %232 = arith.subf %223, %231 : vector<16x16xf32>
    %233 = math.exp %232 : vector<16x16xf32>
    %c6_129 = arith.constant 6 : index
    %c0_130 = arith.constant 0 : index
    %c0_131 = arith.constant 0 : index
    %234 = vector.load %arg9[%c6_129, %c0_130, %c0_131] : memref<8x16x1xf32, #tpu.memory_space<vmem>>, vector<1x16x1xf32>
    %235 = vector.shape_cast %234 : vector<1x16x1xf32> to vector<16x1xf32>
    %236 = arith.mulf %230, %235 : vector<16x1xf32>
    %cst_132 = arith.constant dense<0.000000e+00> : vector<16xf32>
    %237 = vector.multi_reduction <add>, %233, %cst_132 [1] : vector<16x16xf32> to vector<16xf32>
    %238 = vector.shape_cast %237 : vector<16xf32> to vector<16x1xf32>
    %239 = arith.addf %236, %238 : vector<16x1xf32>
    %c6_133 = arith.constant 6 : index
    %c0_134 = arith.constant 0 : index
    %c0_135 = arith.constant 0 : index
    %240 = vector.load %arg9[%c6_133, %c0_134, %c0_135] : memref<8x16x1xf32, #tpu.memory_space<vmem>>, vector<1x16x1xf32>
    %241 = vector.shape_cast %240 : vector<1x16x1xf32> to vector<16x1xf32>
    %242 = vector.shape_cast %239 : vector<16x1xf32> to vector<1x16x1xf32>
    tpu.vector_store %arg9[%c6_133, %c0_134, %c0_135], %242 {strides = array<i32>} : memref<8x16x1xf32, #tpu.memory_space<vmem>>, vector<1x16x1xf32>,
    %243 = arith.truncf %233 : vector<16x16xf32> to vector<16x16xbf16>
    %244 = vector.extract_strided_slice %8 {offsets = [0, 384], sizes = [16, 64], strides = [1, 1]} : vector<16x512xbf16> to vector<16x64xbf16>
    %cst_136 = arith.constant dense<0.000000e+00> : vector<16x64xf32>
    %245 = tpu.matmul %243, %244, %cst_136 {dimension_numbers = #tpu.dot_dimension_numbers<[1], [0], [0], [1], [0, 0, 1, 1], [], []>} : vector<16x16xbf16>, vector<16x64xbf16>, vector<16x64xf32> -> vector<16x64xf32>
    %c0_137 = arith.constant 0 : index
    %c384 = arith.constant 384 : index
    %246 = vector.load %arg7[%c0_137, %c384] : memref<16x512xf32, #tpu.memory_space<vmem>>, vector<16x64xf32>
    %247 = vector.broadcast %230 : vector<16x1xf32> to vector<16x64xf32>
    %248 = arith.mulf %247, %246 : vector<16x64xf32>
    %249 = arith.addf %248, %245 : vector<16x64xf32>
    %c0_138 = arith.constant 0 : index
    %c384_139 = arith.constant 384 : index
    %250 = vector.load %arg7[%c0_138, %c384_139] : memref<16x512xf32, #tpu.memory_space<vmem>>, vector<16x64xf32>
    tpu.vector_store %arg7[%c0_138, %c384_139], %249 {strides = array<i32>} : memref<16x512xf32, #tpu.memory_space<vmem>>, vector<16x64xf32>,
    %c6_140 = arith.constant 6 : index
    %c0_141 = arith.constant 0 : index
    %c0_142 = arith.constant 0 : index
    %251 = vector.load %arg8[%c6_140, %c0_141, %c0_142] : memref<8x16x1xf32, #tpu.memory_space<vmem>>, vector<1x16x1xf32>
    %252 = vector.shape_cast %251 : vector<1x16x1xf32> to vector<16x1xf32>
    %253 = vector.shape_cast %228 : vector<16x1xf32> to vector<1x16x1xf32>
    tpu.vector_store %arg8[%c6_140, %c0_141, %c0_142], %253 {strides = array<i32>} : memref<8x16x1xf32, #tpu.memory_space<vmem>>, vector<1x16x1xf32>,
    %254 = vector.extract_strided_slice %4 {offsets = [0, 448], sizes = [16, 64], strides = [1, 1]} : vector<16x512xbf16> to vector<16x64xbf16>
    %cst_143 = arith.constant 1.250000e-01 : bf16
    %255 = vector.broadcast %cst_143 : bf16 to vector<16x64xbf16>
    %256 = arith.mulf %254, %255 : vector<16x64xbf16>
    %257 = vector.extract_strided_slice %6 {offsets = [448, 0], sizes = [64, 16], strides = [1, 1]} : vector<512x16xbf16> to vector<64x16xbf16>
    %cst_144 = arith.constant dense<0.000000e+00> : vector<16x16xf32>
    %258 = tpu.matmul %256, %257, %cst_144 {dimension_numbers = #tpu.dot_dimension_numbers<[1], [0], [0], [1], [0, 0, 1, 1], [], []>} : vector<16x64xbf16>, vector<64x16xbf16>, vector<16x16xf32> -> vector<16x16xf32>
    %c7 = arith.constant 7 : index
    %c0_145 = arith.constant 0 : index
    %c0_146 = arith.constant 0 : index
    %259 = vector.load %arg8[%c7, %c0_145, %c0_146] : memref<8x16x1xf32, #tpu.memory_space<vmem>>, vector<1x16x1xf32>
    %260 = vector.shape_cast %259 : vector<1x16x1xf32> to vector<16x1xf32>
    %cst_147 = arith.constant dense<0xFF800000> : vector<16xf32>
    %261 = vector.multi_reduction <maximumf>, %258, %cst_147 [1] : vector<16x16xf32> to vector<16xf32>
    %262 = vector.shape_cast %261 : vector<16xf32> to vector<16x1xf32>
    %263 = arith.maximumf %260, %262 : vector<16x1xf32>
    %264 = arith.subf %260, %263 : vector<16x1xf32>
    %265 = math.exp %264 : vector<16x1xf32>
    %266 = vector.broadcast %263 : vector<16x1xf32> to vector<16x16xf32>
    %267 = arith.subf %258, %266 : vector<16x16xf32>
    %268 = math.exp %267 : vector<16x16xf32>
    %c7_148 = arith.constant 7 : index
    %c0_149 = arith.constant 0 : index
    %c0_150 = arith.constant 0 : index
    %269 = vector.load %arg9[%c7_148, %c0_149, %c0_150] : memref<8x16x1xf32, #tpu.memory_space<vmem>>, vector<1x16x1xf32>
    %270 = vector.shape_cast %269 : vector<1x16x1xf32> to vector<16x1xf32>
    %271 = arith.mulf %265, %270 : vector<16x1xf32>
    %cst_151 = arith.constant dense<0.000000e+00> : vector<16xf32>
    %272 = vector.multi_reduction <add>, %268, %cst_151 [1] : vector<16x16xf32> to vector<16xf32>
    %273 = vector.shape_cast %272 : vector<16xf32> to vector<16x1xf32>
    %274 = arith.addf %271, %273 : vector<16x1xf32>
    %c7_152 = arith.constant 7 : index
    %c0_153 = arith.constant 0 : index
    %c0_154 = arith.constant 0 : index
    %275 = vector.load %arg9[%c7_152, %c0_153, %c0_154] : memref<8x16x1xf32, #tpu.memory_space<vmem>>, vector<1x16x1xf32>
    %276 = vector.shape_cast %275 : vector<1x16x1xf32> to vector<16x1xf32>
    %277 = vector.shape_cast %274 : vector<16x1xf32> to vector<1x16x1xf32>
    tpu.vector_store %arg9[%c7_152, %c0_153, %c0_154], %277 {strides = array<i32>} : memref<8x16x1xf32, #tpu.memory_space<vmem>>, vector<1x16x1xf32>,
    %278 = arith.truncf %268 : vector<16x16xf32> to vector<16x16xbf16>
    %279 = vector.extract_strided_slice %8 {offsets = [0, 448], sizes = [16, 64], strides = [1, 1]} : vector<16x512xbf16> to vector<16x64xbf16>
    %cst_155 = arith.constant dense<0.000000e+00> : vector<16x64xf32>
    %280 = tpu.matmul %278, %279, %cst_155 {dimension_numbers = #tpu.dot_dimension_numbers<[1], [0], [0], [1], [0, 0, 1, 1], [], []>} : vector<16x16xbf16>, vector<16x64xbf16>, vector<16x64xf32> -> vector<16x64xf32>
    %c0_156 = arith.constant 0 : index
    %c448 = arith.constant 448 : index
    %281 = vector.load %arg7[%c0_156, %c448] : memref<16x512xf32, #tpu.memory_space<vmem>>, vector<16x64xf32>
    %282 = vector.broadcast %265 : vector<16x1xf32> to vector<16x64xf32>
    %283 = arith.mulf %282, %281 : vector<16x64xf32>
    %284 = arith.addf %283, %280 : vector<16x64xf32>
    %c0_157 = arith.constant 0 : index
    %c448_158 = arith.constant 448 : index
    %285 = vector.load %arg7[%c0_157, %c448_158] : memref<16x512xf32, #tpu.memory_space<vmem>>, vector<16x64xf32>
    tpu.vector_store %arg7[%c0_157, %c448_158], %284 {strides = array<i32>} : memref<16x512xf32, #tpu.memory_space<vmem>>, vector<16x64xf32>,
    %c7_159 = arith.constant 7 : index
    %c0_160 = arith.constant 0 : index
    %c0_161 = arith.constant 0 : index
    %286 = vector.load %arg8[%c7_159, %c0_160, %c0_161] : memref<8x16x1xf32, #tpu.memory_space<vmem>>, vector<1x16x1xf32>
    %287 = vector.shape_cast %286 : vector<1x16x1xf32> to vector<16x1xf32>
    %288 = vector.shape_cast %263 : vector<16x1xf32> to vector<1x16x1xf32>
    tpu.vector_store %arg8[%c7_159, %c0_160, %c0_161], %288 {strides = array<i32>} : memref<8x16x1xf32, #tpu.memory_space<vmem>>, vector<1x16x1xf32>,
    %c0_i32_162 = arith.constant 0 : i32
    %289 = arith.cmpi eq, %arg2, %c0_i32_162 : i32
    %290 = arith.extui %289 : i1 to i32
    %c0_i32_163 = arith.constant 0 : i32
    %291 = arith.cmpi ne, %290, %c0_i32_163 : i32
    scf.if %291 {
      %c0_164 = arith.constant 0 : index
      %c0_165 = arith.constant 0 : index
      %c0_166 = arith.constant 0 : index
      %292 = vector.load %arg9[%c0_164, %c0_165, %c0_166] : memref<8x16x1xf32, #tpu.memory_space<vmem>>, vector<1x16x1xf32>
      %293 = vector.shape_cast %292 : vector<1x16x1xf32> to vector<16x1xf32>
      %294 = tpu.reciprocal %293 {approx = true} : vector<16x1xf32> -> vector<16x1xf32>
      %c0_167 = arith.constant 0 : index
      %c0_168 = arith.constant 0 : index
      %295 = vector.load %arg7[%c0_167, %c0_168] : memref<16x512xf32, #tpu.memory_space<vmem>>, vector<16x64xf32>
      %296 = vector.broadcast %294 : vector<16x1xf32> to vector<16x64xf32>
      %297 = arith.mulf %295, %296 : vector<16x64xf32>
      %298 = arith.truncf %297 : vector<16x64xf32> to vector<16x64xbf16>
      %c0_169 = arith.constant 0 : index
      %c0_170 = arith.constant 0 : index
      %c0_171 = arith.constant 0 : index
      %299 = vector.load %arg6[%c0_169, %c0_170, %c0_171] : memref<1x16x512xbf16, #tpu.memory_space<vmem>>, vector<1x16x64xbf16>
      %300 = vector.shape_cast %299 : vector<1x16x64xbf16> to vector<16x64xbf16>
      %301 = vector.shape_cast %298 : vector<16x64xbf16> to vector<1x16x64xbf16>
      tpu.vector_store %arg6[%c0_169, %c0_170, %c0_171], %301 {strides = array<i32>} : memref<1x16x512xbf16, #tpu.memory_space<vmem>>, vector<1x16x64xbf16>,
      %c1_172 = arith.constant 1 : index
      %c0_173 = arith.constant 0 : index
      %c0_174 = arith.constant 0 : index
      %302 = vector.load %arg9[%c1_172, %c0_173, %c0_174] : memref<8x16x1xf32, #tpu.memory_space<vmem>>, vector<1x16x1xf32>
      %303 = vector.shape_cast %302 : vector<1x16x1xf32> to vector<16x1xf32>
      %304 = tpu.reciprocal %303 {approx = true} : vector<16x1xf32> -> vector<16x1xf32>
      %c0_175 = arith.constant 0 : index
      %c64_176 = arith.constant 64 : index
      %305 = vector.load %arg7[%c0_175, %c64_176] : memref<16x512xf32, #tpu.memory_space<vmem>>, vector<16x64xf32>
      %306 = vector.broadcast %304 : vector<16x1xf32> to vector<16x64xf32>
      %307 = arith.mulf %305, %306 : vector<16x64xf32>
      %308 = arith.truncf %307 : vector<16x64xf32> to vector<16x64xbf16>
      %c0_177 = arith.constant 0 : index
      %c0_178 = arith.constant 0 : index
      %c64_179 = arith.constant 64 : index
      %309 = vector.load %arg6[%c0_177, %c0_178, %c64_179] : memref<1x16x512xbf16, #tpu.memory_space<vmem>>, vector<1x16x64xbf16>
      %310 = vector.shape_cast %309 : vector<1x16x64xbf16> to vector<16x64xbf16>
      %311 = vector.shape_cast %308 : vector<16x64xbf16> to vector<1x16x64xbf16>
      tpu.vector_store %arg6[%c0_177, %c0_178, %c64_179], %311 {strides = array<i32>} : memref<1x16x512xbf16, #tpu.memory_space<vmem>>, vector<1x16x64xbf16>,
      %c2_180 = arith.constant 2 : index
      %c0_181 = arith.constant 0 : index
      %c0_182 = arith.constant 0 : index
      %312 = vector.load %arg9[%c2_180, %c0_181, %c0_182] : memref<8x16x1xf32, #tpu.memory_space<vmem>>, vector<1x16x1xf32>
      %313 = vector.shape_cast %312 : vector<1x16x1xf32> to vector<16x1xf32>
      %314 = tpu.reciprocal %313 {approx = true} : vector<16x1xf32> -> vector<16x1xf32>
      %c0_183 = arith.constant 0 : index
      %c128_184 = arith.constant 128 : index
      %315 = vector.load %arg7[%c0_183, %c128_184] : memref<16x512xf32, #tpu.memory_space<vmem>>, vector<16x64xf32>
      %316 = vector.broadcast %314 : vector<16x1xf32> to vector<16x64xf32>
      %317 = arith.mulf %315, %316 : vector<16x64xf32>
      %318 = arith.truncf %317 : vector<16x64xf32> to vector<16x64xbf16>
      %c0_185 = arith.constant 0 : index
      %c0_186 = arith.constant 0 : index
      %c128_187 = arith.constant 128 : index
      %319 = vector.load %arg6[%c0_185, %c0_186, %c128_187] : memref<1x16x512xbf16, #tpu.memory_space<vmem>>, vector<1x16x64xbf16>
      %320 = vector.shape_cast %319 : vector<1x16x64xbf16> to vector<16x64xbf16>
      %321 = vector.shape_cast %318 : vector<16x64xbf16> to vector<1x16x64xbf16>
      tpu.vector_store %arg6[%c0_185, %c0_186, %c128_187], %321 {strides = array<i32>} : memref<1x16x512xbf16, #tpu.memory_space<vmem>>, vector<1x16x64xbf16>,
      %c3_188 = arith.constant 3 : index
      %c0_189 = arith.constant 0 : index
      %c0_190 = arith.constant 0 : index
      %322 = vector.load %arg9[%c3_188, %c0_189, %c0_190] : memref<8x16x1xf32, #tpu.memory_space<vmem>>, vector<1x16x1xf32>
      %323 = vector.shape_cast %322 : vector<1x16x1xf32> to vector<16x1xf32>
      %324 = tpu.reciprocal %323 {approx = true} : vector<16x1xf32> -> vector<16x1xf32>
      %c0_191 = arith.constant 0 : index
      %c192_192 = arith.constant 192 : index
      %325 = vector.load %arg7[%c0_191, %c192_192] : memref<16x512xf32, #tpu.memory_space<vmem>>, vector<16x64xf32>
      %326 = vector.broadcast %324 : vector<16x1xf32> to vector<16x64xf32>
      %327 = arith.mulf %325, %326 : vector<16x64xf32>
      %328 = arith.truncf %327 : vector<16x64xf32> to vector<16x64xbf16>
      %c0_193 = arith.constant 0 : index
      %c0_194 = arith.constant 0 : index
      %c192_195 = arith.constant 192 : index
      %329 = vector.load %arg6[%c0_193, %c0_194, %c192_195] : memref<1x16x512xbf16, #tpu.memory_space<vmem>>, vector<1x16x64xbf16>
      %330 = vector.shape_cast %329 : vector<1x16x64xbf16> to vector<16x64xbf16>
      %331 = vector.shape_cast %328 : vector<16x64xbf16> to vector<1x16x64xbf16>
      tpu.vector_store %arg6[%c0_193, %c0_194, %c192_195], %331 {strides = array<i32>} : memref<1x16x512xbf16, #tpu.memory_space<vmem>>, vector<1x16x64xbf16>,
      %c4_196 = arith.constant 4 : index
      %c0_197 = arith.constant 0 : index
      %c0_198 = arith.constant 0 : index
      %332 = vector.load %arg9[%c4_196, %c0_197, %c0_198] : memref<8x16x1xf32, #tpu.memory_space<vmem>>, vector<1x16x1xf32>
      %333 = vector.shape_cast %332 : vector<1x16x1xf32> to vector<16x1xf32>
      %334 = tpu.reciprocal %333 {approx = true} : vector<16x1xf32> -> vector<16x1xf32>
      %c0_199 = arith.constant 0 : index
      %c256_200 = arith.constant 256 : index
      %335 = vector.load %arg7[%c0_199, %c256_200] : memref<16x512xf32, #tpu.memory_space<vmem>>, vector<16x64xf32>
      %336 = vector.broadcast %334 : vector<16x1xf32> to vector<16x64xf32>
      %337 = arith.mulf %335, %336 : vector<16x64xf32>
      %338 = arith.truncf %337 : vector<16x64xf32> to vector<16x64xbf16>
      %c0_201 = arith.constant 0 : index
      %c0_202 = arith.constant 0 : index
      %c256_203 = arith.constant 256 : index
      %339 = vector.load %arg6[%c0_201, %c0_202, %c256_203] : memref<1x16x512xbf16, #tpu.memory_space<vmem>>, vector<1x16x64xbf16>
      %340 = vector.shape_cast %339 : vector<1x16x64xbf16> to vector<16x64xbf16>
      %341 = vector.shape_cast %338 : vector<16x64xbf16> to vector<1x16x64xbf16>
      tpu.vector_store %arg6[%c0_201, %c0_202, %c256_203], %341 {strides = array<i32>} : memref<1x16x512xbf16, #tpu.memory_space<vmem>>, vector<1x16x64xbf16>,
      %c5_204 = arith.constant 5 : index
      %c0_205 = arith.constant 0 : index
      %c0_206 = arith.constant 0 : index
      %342 = vector.load %arg9[%c5_204, %c0_205, %c0_206] : memref<8x16x1xf32, #tpu.memory_space<vmem>>, vector<1x16x1xf32>
      %343 = vector.shape_cast %342 : vector<1x16x1xf32> to vector<16x1xf32>
      %344 = tpu.reciprocal %343 {approx = true} : vector<16x1xf32> -> vector<16x1xf32>
      %c0_207 = arith.constant 0 : index
      %c320_208 = arith.constant 320 : index
      %345 = vector.load %arg7[%c0_207, %c320_208] : memref<16x512xf32, #tpu.memory_space<vmem>>, vector<16x64xf32>
      %346 = vector.broadcast %344 : vector<16x1xf32> to vector<16x64xf32>
      %347 = arith.mulf %345, %346 : vector<16x64xf32>
      %348 = arith.truncf %347 : vector<16x64xf32> to vector<16x64xbf16>
      %c0_209 = arith.constant 0 : index
      %c0_210 = arith.constant 0 : index
      %c320_211 = arith.constant 320 : index
      %349 = vector.load %arg6[%c0_209, %c0_210, %c320_211] : memref<1x16x512xbf16, #tpu.memory_space<vmem>>, vector<1x16x64xbf16>
      %350 = vector.shape_cast %349 : vector<1x16x64xbf16> to vector<16x64xbf16>
      %351 = vector.shape_cast %348 : vector<16x64xbf16> to vector<1x16x64xbf16>
      tpu.vector_store %arg6[%c0_209, %c0_210, %c320_211], %351 {strides = array<i32>} : memref<1x16x512xbf16, #tpu.memory_space<vmem>>, vector<1x16x64xbf16>,
      %c6_212 = arith.constant 6 : index
      %c0_213 = arith.constant 0 : index
      %c0_214 = arith.constant 0 : index
      %352 = vector.load %arg9[%c6_212, %c0_213, %c0_214] : memref<8x16x1xf32, #tpu.memory_space<vmem>>, vector<1x16x1xf32>
      %353 = vector.shape_cast %352 : vector<1x16x1xf32> to vector<16x1xf32>
      %354 = tpu.reciprocal %353 {approx = true} : vector<16x1xf32> -> vector<16x1xf32>
      %c0_215 = arith.constant 0 : index
      %c384_216 = arith.constant 384 : index
      %355 = vector.load %arg7[%c0_215, %c384_216] : memref<16x512xf32, #tpu.memory_space<vmem>>, vector<16x64xf32>
      %356 = vector.broadcast %354 : vector<16x1xf32> to vector<16x64xf32>
      %357 = arith.mulf %355, %356 : vector<16x64xf32>
      %358 = arith.truncf %357 : vector<16x64xf32> to vector<16x64xbf16>
      %c0_217 = arith.constant 0 : index
      %c0_218 = arith.constant 0 : index
      %c384_219 = arith.constant 384 : index
      %359 = vector.load %arg6[%c0_217, %c0_218, %c384_219] : memref<1x16x512xbf16, #tpu.memory_space<vmem>>, vector<1x16x64xbf16>
      %360 = vector.shape_cast %359 : vector<1x16x64xbf16> to vector<16x64xbf16>
      %361 = vector.shape_cast %358 : vector<16x64xbf16> to vector<1x16x64xbf16>
      tpu.vector_store %arg6[%c0_217, %c0_218, %c384_219], %361 {strides = array<i32>} : memref<1x16x512xbf16, #tpu.memory_space<vmem>>, vector<1x16x64xbf16>,
      %c7_220 = arith.constant 7 : index
      %c0_221 = arith.constant 0 : index
      %c0_222 = arith.constant 0 : index
      %362 = vector.load %arg9[%c7_220, %c0_221, %c0_222] : memref<8x16x1xf32, #tpu.memory_space<vmem>>, vector<1x16x1xf32>
      %363 = vector.shape_cast %362 : vector<1x16x1xf32> to vector<16x1xf32>
      %364 = tpu.reciprocal %363 {approx = true} : vector<16x1xf32> -> vector<16x1xf32>
      %c0_223 = arith.constant 0 : index
      %c448_224 = arith.constant 448 : index
      %365 = vector.load %arg7[%c0_223, %c448_224] : memref<16x512xf32, #tpu.memory_space<vmem>>, vector<16x64xf32>
      %366 = vector.broadcast %364 : vector<16x1xf32> to vector<16x64xf32>
      %367 = arith.mulf %365, %366 : vector<16x64xf32>
      %368 = arith.truncf %367 : vector<16x64xf32> to vector<16x64xbf16>
      %c0_225 = arith.constant 0 : index
      %c0_226 = arith.constant 0 : index
      %c448_227 = arith.constant 448 : index
      %369 = vector.load %arg6[%c0_225, %c0_226, %c448_227] : memref<1x16x512xbf16, #tpu.memory_space<vmem>>, vector<1x16x64xbf16>
      %370 = vector.shape_cast %369 : vector<1x16x64xbf16> to vector<16x64xbf16>
      %371 = vector.shape_cast %368 : vector<16x64xbf16> to vector<1x16x64xbf16>
      tpu.vector_store %arg6[%c0_225, %c0_226, %c448_227], %371 {strides = array<i32>} : memref<1x16x512xbf16, #tpu.memory_space<vmem>>, vector<1x16x64xbf16>,
    } else {
    }
    return
  }
  func.func @transform_0(%arg0: i32, %arg1: i32, %arg2: i32) -> (i32, i32, i32) {
    %c0_i32 = arith.constant 0 : i32
    %c0_i32_0 = arith.constant 0 : i32
    return %arg0, %arg1, %c0_i32 : i32, i32, i32
  }
  func.func @transform_1(%arg0: i32, %arg1: i32, %arg2: i32) -> (i32, i32, i32) {
    %c0_i32 = arith.constant 0 : i32
    %c0_i32_0 = arith.constant 0 : i32
    return %arg0, %c0_i32, %arg2 : i32, i32, i32
  }
  func.func @transform_2(%arg0: i32, %arg1: i32, %arg2: i32) -> (i32, i32, i32) {
    %c0_i32 = arith.constant 0 : i32
    %c0_i32_0 = arith.constant 0 : i32
    return %arg0, %arg2, %c0_i32 : i32, i32, i32
  }
  func.func @transform_3(%arg0: i32, %arg1: i32, %arg2: i32) -> (i32, i32, i32) {
    %c0_i32 = arith.constant 0 : i32
    %c0_i32_0 = arith.constant 0 : i32
    return %arg0, %arg1, %c0_i32 : i32, i32, i32
  }
}

</mosaic_0001>

<llo_original>
// kernel: multi_head_attention_forward.5
$region0: #{multi_head_attention_forward.5}
  #allocation0 [shape = 'u32[]', space=smem, size = 0x4, offset = 0x4, fixed_abs, tag = 'smem constant byte address 0x4 - core index']
  #allocation1 [shape = 'u32[144,128]{1,0:T(1,128)}', space=vmem, size = 0x12000, scoped, tag = 'internal scratch']
  %s0 = inlined_call_operand.vmem [shape: bf16[32,512], index: 0, kind: input, shape index: {}]
  %s1 = inlined_call_operand.vmem [shape: bf16[512,512], index: 1, kind: input, shape index: {}]
  %s2 = inlined_call_operand.vmem [shape: f32[1,512], index: 2, kind: input, shape index: {}]
  %s3 = inlined_call_operand.hbm [shape: f32[32,512], index: 3, kind: output, shape index: {}]
  %s4 = sld [smem:[#allocation0]]
  $region26: #{multi_head_attention_forward.5} parent=0
    _
  %s6 = ssub.s32 1, %s4
  %s7 = scalar_select 0, %s6, %s4
  $region1: #{multi_head_attention_forward.5} parent=0
    #allocation2 [shape = 'u8[65536]{0}', space=vmem, size = 0x10000, scoped, tag = 'output window, operand 0, single buffered']
    #allocation3 [shape = 's32[1]{0}', space=sflag, size = 0x4, scoped, tag = 'scoped memory for multi_head_attention_forward.5']
    %8 = vsyncpa [#allocation3], 0
    // Predicated region
    $region2: #{multi_head_attention_forward.5} parent=1 // pred_check
      _
    $region3: #{multi_head_attention_forward.5} parent=1 // pred_check_branch
      %10 = sbr.rel (0) target = $region5
    $region4: #{multi_head_attention_forward.5} parent=1 // pred_region
      _
    $region5: #{multi_head_attention_forward.5} parent=1 // pred_fallthru
      _
    // Predicated region
    $region6: #{multi_head_attention_forward.5} parent=1 // pred_check
      _
    $region7: #{multi_head_attention_forward.5} parent=1 // pred_check_branch
      %12 = sbr.rel (0) target = $region9
    $region8: #{multi_head_attention_forward.5} parent=1 // pred_region
      _
    $region9: #{multi_head_attention_forward.5} parent=1 // pred_fallthru
      _
    // Predicated region
    $region10: #{multi_head_attention_forward.5} parent=1 // pred_check
      _
    $region11: #{multi_head_attention_forward.5} parent=1 // pred_check_branch
      %14 = sbr.rel (0) target = $region13
    $region12: #{multi_head_attention_forward.5} parent=1 // pred_region
      _
    $region13: #{multi_head_attention_forward.5} parent=1 // pred_fallthru
      _
    %p15 = scmp.eq.s32.totalorder 0, 0
    // Predicated region
    $region14: #{multi_head_attention_forward.5} parent=1 // pred_check
      %p16 = pneg %p15
    $region15: #{multi_head_attention_forward.5} parent=1 // pred_check_branch
      %18 = sbr.rel (%p16) target = $region17
    $region16: #{multi_head_attention_forward.5} parent=1 // pred_region
      %v19 = vld [vmem:[%s2] sm:$0xf]
      %v21 = vlaneseq
      %v22 = vshrl.u32 %v21, 7
      %v23 = vsub.s32 0, %v22
      %v24 = vrot.slane %v19, %v23
      %v25 = vlaneseq
      %v26 = vshrl.u32 %v25, 7
      %v27 = vsub.s32 1, %v26
      %v28 = vrot.slane %v19, %v27
      %v29 = vlaneseq
      %v30 = vshrl.u32 %v29, 7
      %v31 = vsub.s32 2, %v30
      %v32 = vrot.slane %v19, %v31
      %v33 = vlaneseq
      %v34 = vshrl.u32 %v33, 7
      %v35 = vsub.s32 3, %v34
      %v36 = vrot.slane %v19, %v35
      %41 = vst [vmem:[#allocation2] sm:$0xff] %v24
      %42 = vst [vmem:[#allocation2 + $0x8] sm:$0xff] %v28
      %43 = vst [vmem:[#allocation2 + $0x10] sm:$0xff] %v32
      %44 = vst [vmem:[#allocation2 + $0x18] sm:$0xff] %v36
      %45 = vst [vmem:[#allocation2 + $0x20] sm:$0xff] %v24
      %46 = vst [vmem:[#allocation2 + $0x28] sm:$0xff] %v28
      %47 = vst [vmem:[#allocation2 + $0x30] sm:$0xff] %v32
      %48 = vst [vmem:[#allocation2 + $0x38] sm:$0xff] %v36
      %49 = vst [vmem:[#allocation2 + $0x40] sm:$0xff] %v24
      %50 = vst [vmem:[#allocation2 + $0x48] sm:$0xff] %v28
      %51 = vst [vmem:[#allocation2 + $0x50] sm:$0xff] %v32
      %52 = vst [vmem:[#allocation2 + $0x58] sm:$0xff] %v36
      %53 = vst [vmem:[#allocation2 + $0x60] sm:$0xff] %v24
      %54 = vst [vmem:[#allocation2 + $0x68] sm:$0xff] %v28
      %55 = vst [vmem:[#allocation2 + $0x70] sm:$0xff] %v32
      %56 = vst [vmem:[#allocation2 + $0x78] sm:$0xff] %v36
    $region17: #{multi_head_attention_forward.5} parent=1 // pred_fallthru
      _
    %v57 = vld [vmem:[#allocation2] sm:$0xff]
    %v58 = vld [vmem:[#allocation2 + $0x8] sm:$0xff]
    %v59 = vld [vmem:[#allocation2 + $0x10] sm:$0xff]
    %v60 = vld [vmem:[#allocation2 + $0x18] sm:$0xff]
    %v61 = vld [vmem:[#allocation2 + $0x20] sm:$0xff]
    %v62 = vld [vmem:[#allocation2 + $0x28] sm:$0xff]
    %v63 = vld [vmem:[#allocation2 + $0x30] sm:$0xff]
    %v64 = vld [vmem:[#allocation2 + $0x38] sm:$0xff]
    %v65 = vld [vmem:[#allocation2 + $0x40] sm:$0xff]
    %v66 = vld [vmem:[#allocation2 + $0x48] sm:$0xff]
    %v67 = vld [vmem:[#allocation2 + $0x50] sm:$0xff]
    %v68 = vld [vmem:[#allocation2 + $0x58] sm:$0xff]
    %v69 = vld [vmem:[#allocation2 + $0x60] sm:$0xff]
    %v70 = vld [vmem:[#allocation2 + $0x68] sm:$0xff]
    %v71 = vld [vmem:[#allocation2 + $0x70] sm:$0xff]
    %v72 = vld [vmem:[#allocation2 + $0x78] sm:$0xff]
    %v73 = vld [vmem:[%s0] sm:$0xff]
    %v74 = vld [vmem:[%s0 + $0x8] sm:$0xff]
    %v75 = vld [vmem:[%s0 + $0x10] sm:$0xff]
    %v76 = vld [vmem:[%s0 + $0x18] sm:$0xff]
    %v77 = vld [vmem:[%s0 + $0x20] sm:$0xff]
    %v78 = vld [vmem:[%s0 + $0x28] sm:$0xff]
    %v79 = vld [vmem:[%s0 + $0x30] sm:$0xff]
    %v80 = vld [vmem:[%s0 + $0x38] sm:$0xff]
    %v81 = vld [vmem:[%s1] sm:$0xff]
    %v82 = vld [vmem:[%s1 + $0x8] sm:$0xff]
    %v83 = vld [vmem:[%s1 + $0x10] sm:$0xff]
    %v84 = vld [vmem:[%s1 + $0x18] sm:$0xff]
    %v85 = vld [vmem:[%s1 + $0x20] sm:$0xff]
    %v86 = vld [vmem:[%s1 + $0x28] sm:$0xff]
    %v87 = vld [vmem:[%s1 + $0x30] sm:$0xff]
    %v88 = vld [vmem:[%s1 + $0x38] sm:$0xff]
    %v89 = vld [vmem:[%s1 + $0x40] sm:$0xff]
    %v90 = vld [vmem:[%s1 + $0x48] sm:$0xff]
    %v91 = vld [vmem:[%s1 + $0x50] sm:$0xff]
    %v92 = vld [vmem:[%s1 + $0x58] sm:$0xff]
    %v93 = vld [vmem:[%s1 + $0x60] sm:$0xff]
    %v94 = vld [vmem:[%s1 + $0x68] sm:$0xff]
    %v95 = vld [vmem:[%s1 + $0x70] sm:$0xff]
    %v96 = vld [vmem:[%s1 + $0x78] sm:$0xff]
    %v97 = vld [vmem:[%s1 + $0x80] sm:$0xff]
    %v98 = vld [vmem:[%s1 + $0x88] sm:$0xff]
    %v99 = vld [vmem:[%s1 + $0x90] sm:$0xff]
    %v100 = vld [vmem:[%s1 + $0x98] sm:$0xff]
    %v101 = vld [vmem:[%s1 + $0xa0] sm:$0xff]
    %v102 = vld [vmem:[%s1 + $0xa8] sm:$0xff]
    %v103 = vld [vmem:[%s1 + $0xb0] sm:$0xff]
    %v104 = vld [vmem:[%s1 + $0xb8] sm:$0xff]
    %v105 = vld [vmem:[%s1 + $0xc0] sm:$0xff]
    %v106 = vld [vmem:[%s1 + $0xc8] sm:$0xff]
    %v107 = vld [vmem:[%s1 + $0xd0] sm:$0xff]
    %v108 = vld [vmem:[%s1 + $0xd8] sm:$0xff]
    %v109 = vld [vmem:[%s1 + $0xe0] sm:$0xff]
    %v110 = vld [vmem:[%s1 + $0xe8] sm:$0xff]
    %v111 = vld [vmem:[%s1 + $0xf0] sm:$0xff]
    %v112 = vld [vmem:[%s1 + $0xf8] sm:$0xff]
    %v113 = vld [vmem:[%s1 + $0x100] sm:$0xff]
    %v114 = vld [vmem:[%s1 + $0x108] sm:$0xff]
    %v115 = vld [vmem:[%s1 + $0x110] sm:$0xff]
    %v116 = vld [vmem:[%s1 + $0x118] sm:$0xff]
    %v117 = vld [vmem:[%s1 + $0x120] sm:$0xff]
    %v118 = vld [vmem:[%s1 + $0x128] sm:$0xff]
    %v119 = vld [vmem:[%s1 + $0x130] sm:$0xff]
    %v120 = vld [vmem:[%s1 + $0x138] sm:$0xff]
    %v121 = vld [vmem:[%s1 + $0x140] sm:$0xff]
    %v122 = vld [vmem:[%s1 + $0x148] sm:$0xff]
    %v123 = vld [vmem:[%s1 + $0x150] sm:$0xff]
    %v124 = vld [vmem:[%s1 + $0x158] sm:$0xff]
    %v125 = vld [vmem:[%s1 + $0x160] sm:$0xff]
    %v126 = vld [vmem:[%s1 + $0x168] sm:$0xff]
    %v127 = vld [vmem:[%s1 + $0x170] sm:$0xff]
    %v128 = vld [vmem:[%s1 + $0x178] sm:$0xff]
    %v129 = vld [vmem:[%s1 + $0x180] sm:$0xff]
    %v130 = vld [vmem:[%s1 + $0x188] sm:$0xff]
    %v131 = vld [vmem:[%s1 + $0x190] sm:$0xff]
    %v132 = vld [vmem:[%s1 + $0x198] sm:$0xff]
    %v133 = vld [vmem:[%s1 + $0x1a0] sm:$0xff]
    %v134 = vld [vmem:[%s1 + $0x1a8] sm:$0xff]
    %v135 = vld [vmem:[%s1 + $0x1b0] sm:$0xff]
    %v136 = vld [vmem:[%s1 + $0x1b8] sm:$0xff]
    %v137 = vld [vmem:[%s1 + $0x1c0] sm:$0xff]
    %v138 = vld [vmem:[%s1 + $0x1c8] sm:$0xff]
    %v139 = vld [vmem:[%s1 + $0x1d0] sm:$0xff]
    %v140 = vld [vmem:[%s1 + $0x1d8] sm:$0xff]
    %v141 = vld [vmem:[%s1 + $0x1e0] sm:$0xff]
    %v142 = vld [vmem:[%s1 + $0x1e8] sm:$0xff]
    %v143 = vld [vmem:[%s1 + $0x1f0] sm:$0xff]
    %v144 = vld [vmem:[%s1 + $0x1f8] sm:$0xff]
    %v145 = vld [vmem:[%s1 + $0x200] sm:$0xff]
    %v146 = vld [vmem:[%s1 + $0x208] sm:$0xff]
    %v147 = vld [vmem:[%s1 + $0x210] sm:$0xff]
    %v148 = vld [vmem:[%s1 + $0x218] sm:$0xff]
    %v149 = vld [vmem:[%s1 + $0x220] sm:$0xff]
    %v150 = vld [vmem:[%s1 + $0x228] sm:$0xff]
    %v151 = vld [vmem:[%s1 + $0x230] sm:$0xff]
    %v152 = vld [vmem:[%s1 + $0x238] sm:$0xff]
    %v153 = vld [vmem:[%s1 + $0x240] sm:$0xff]
    %v154 = vld [vmem:[%s1 + $0x248] sm:$0xff]
    %v155 = vld [vmem:[%s1 + $0x250] sm:$0xff]
    %v156 = vld [vmem:[%s1 + $0x258] sm:$0xff]
    %v157 = vld [vmem:[%s1 + $0x260] sm:$0xff]
    %v158 = vld [vmem:[%s1 + $0x268] sm:$0xff]
    %v159 = vld [vmem:[%s1 + $0x270] sm:$0xff]
    %v160 = vld [vmem:[%s1 + $0x278] sm:$0xff]
    %v161 = vld [vmem:[%s1 + $0x280] sm:$0xff]
    %v162 = vld [vmem:[%s1 + $0x288] sm:$0xff]
    %v163 = vld [vmem:[%s1 + $0x290] sm:$0xff]
    %v164 = vld [vmem:[%s1 + $0x298] sm:$0xff]
    %v165 = vld [vmem:[%s1 + $0x2a0] sm:$0xff]
    %v166 = vld [vmem:[%s1 + $0x2a8] sm:$0xff]
    %v167 = vld [vmem:[%s1 + $0x2b0] sm:$0xff]
    %v168 = vld [vmem:[%s1 + $0x2b8] sm:$0xff]
    %v169 = vld [vmem:[%s1 + $0x2c0] sm:$0xff]
    %v170 = vld [vmem:[%s1 + $0x2c8] sm:$0xff]
    %v171 = vld [vmem:[%s1 + $0x2d0] sm:$0xff]
    %v172 = vld [vmem:[%s1 + $0x2d8] sm:$0xff]
    %v173 = vld [vmem:[%s1 + $0x2e0] sm:$0xff]
    %v174 = vld [vmem:[%s1 + $0x2e8] sm:$0xff]
    %v175 = vld [vmem:[%s1 + $0x2f0] sm:$0xff]
    %v176 = vld [vmem:[%s1 + $0x2f8] sm:$0xff]
    %v177 = vld [vmem:[%s1 + $0x300] sm:$0xff]
    %v178 = vld [vmem:[%s1 + $0x308] sm:$0xff]
    %v179 = vld [vmem:[%s1 + $0x310] sm:$0xff]
    %v180 = vld [vmem:[%s1 + $0x318] sm:$0xff]
    %v181 = vld [vmem:[%s1 + $0x320] sm:$0xff]
    %v182 = vld [vmem:[%s1 + $0x328] sm:$0xff]
    %v183 = vld [vmem:[%s1 + $0x330] sm:$0xff]
    %v184 = vld [vmem:[%s1 + $0x338] sm:$0xff]
    %v185 = vld [vmem:[%s1 + $0x340] sm:$0xff]
    %v186 = vld [vmem:[%s1 + $0x348] sm:$0xff]
    %v187 = vld [vmem:[%s1 + $0x350] sm:$0xff]
    %v188 = vld [vmem:[%s1 + $0x358] sm:$0xff]
    %v189 = vld [vmem:[%s1 + $0x360] sm:$0xff]
    %v190 = vld [vmem:[%s1 + $0x368] sm:$0xff]
    %v191 = vld [vmem:[%s1 + $0x370] sm:$0xff]
    %v192 = vld [vmem:[%s1 + $0x378] sm:$0xff]
    %v193 = vld [vmem:[%s1 + $0x380] sm:$0xff]
    %v194 = vld [vmem:[%s1 + $0x388] sm:$0xff]
    %v195 = vld [vmem:[%s1 + $0x390] sm:$0xff]
    %v196 = vld [vmem:[%s1 + $0x398] sm:$0xff]
    %v197 = vld [vmem:[%s1 + $0x3a0] sm:$0xff]
    %v198 = vld [vmem:[%s1 + $0x3a8] sm:$0xff]
    %v199 = vld [vmem:[%s1 + $0x3b0] sm:$0xff]
    %v200 = vld [vmem:[%s1 + $0x3b8] sm:$0xff]
    %v201 = vld [vmem:[%s1 + $0x3c0] sm:$0xff]
    %v202 = vld [vmem:[%s1 + $0x3c8] sm:$0xff]
    %v203 = vld [vmem:[%s1 + $0x3d0] sm:$0xff]
    %v204 = vld [vmem:[%s1 + $0x3d8] sm:$0xff]
    %v205 = vld [vmem:[%s1 + $0x3e0] sm:$0xff]
    %v206 = vld [vmem:[%s1 + $0x3e8] sm:$0xff]
    %v207 = vld [vmem:[%s1 + $0x3f0] sm:$0xff]
    %v208 = vld [vmem:[%s1 + $0x3f8] sm:$0xff]
    %v217 = vunpack.c.l.b16 %v73
    %v218 = vunpack.c.h.b16 %v73
    %v219 = vunpack.c.l.b16 %v74
    %v220 = vunpack.c.h.b16 %v74
    %v221 = vunpack.c.l.b16 %v75
    %v222 = vunpack.c.h.b16 %v75
    %v223 = vunpack.c.l.b16 %v76
    %v224 = vunpack.c.h.b16 %v76
    %v225 = vunpack.c.l.b16 %v77
    %v226 = vunpack.c.h.b16 %v77
    %v227 = vunpack.c.l.b16 %v78
    %v228 = vunpack.c.h.b16 %v78
    %v229 = vunpack.c.l.b16 %v79
    %v230 = vunpack.c.h.b16 %v79
    %v231 = vunpack.c.l.b16 %v80
    %v232 = vunpack.c.h.b16 %v80
    %v233 = vpack.c.b16 %v221, %v217
    %v234 = vpack.c.b16 %v222, %v218
    %v235 = vpack.c.b16 %v223, %v219
    %v236 = vpack.c.b16 %v224, %v220
    %v237 = vpack.c.b16 %v229, %v225
    %v238 = vpack.c.b16 %v230, %v226
    %v239 = vpack.c.b16 %v231, %v227
    %v240 = vpack.c.b16 %v232, %v228
    %v377 = vunpack.c.l.b16 %v81
    %v378 = vunpack.c.h.b16 %v81
    %v379 = vunpack.c.l.b16 %v82
    %v380 = vunpack.c.h.b16 %v82
    %v381 = vunpack.c.l.b16 %v83
    %v382 = vunpack.c.h.b16 %v83
    %v383 = vunpack.c.l.b16 %v84
    %v384 = vunpack.c.h.b16 %v84
    %v385 = vunpack.c.l.b16 %v85
    %v386 = vunpack.c.h.b16 %v85
    %v387 = vunpack.c.l.b16 %v86
    %v388 = vunpack.c.h.b16 %v86
    %v389 = vunpack.c.l.b16 %v87
    %v390 = vunpack.c.h.b16 %v87
    %v391 = vunpack.c.l.b16 %v88
    %v392 = vunpack.c.h.b16 %v88
    %v393 = vunpack.c.l.b16 %v89
    %v394 = vunpack.c.h.b16 %v89
    %v395 = vunpack.c.l.b16 %v90
    %v396 = vunpack.c.h.b16 %v90
    %v397 = vunpack.c.l.b16 %v91
    %v398 = vunpack.c.h.b16 %v91
    %v399 = vunpack.c.l.b16 %v92
    %v400 = vunpack.c.h.b16 %v92
    %v401 = vunpack.c.l.b16 %v93
    %v402 = vunpack.c.h.b16 %v93
    %v403 = vunpack.c.l.b16 %v94
    %v404 = vunpack.c.h.b16 %v94
    %v405 = vunpack.c.l.b16 %v95
    %v406 = vunpack.c.h.b16 %v95
    %v407 = vunpack.c.l.b16 %v96
    %v408 = vunpack.c.h.b16 %v96
    %v409 = vunpack.c.l.b16 %v97
    %v410 = vunpack.c.h.b16 %v97
    %v411 = vunpack.c.l.b16 %v98
    %v412 = vunpack.c.h.b16 %v98
    %v413 = vunpack.c.l.b16 %v99
    %v414 = vunpack.c.h.b16 %v99
    %v415 = vunpack.c.l.b16 %v100
    %v416 = vunpack.c.h.b16 %v100
    %v417 = vunpack.c.l.b16 %v101
    %v418 = vunpack.c.h.b16 %v101
    %v419 = vunpack.c.l.b16 %v102
    %v420 = vunpack.c.h.b16 %v102
    %v421 = vunpack.c.l.b16 %v103
    %v422 = vunpack.c.h.b16 %v103
    %v423 = vunpack.c.l.b16 %v104
    %v424 = vunpack.c.h.b16 %v104
    %v425 = vunpack.c.l.b16 %v105
    %v426 = vunpack.c.h.b16 %v105
    %v427 = vunpack.c.l.b16 %v106
    %v428 = vunpack.c.h.b16 %v106
    %v429 = vunpack.c.l.b16 %v107
    %v430 = vunpack.c.h.b16 %v107
    %v431 = vunpack.c.l.b16 %v108
    %v432 = vunpack.c.h.b16 %v108
    %v433 = vunpack.c.l.b16 %v109
    %v434 = vunpack.c.h.b16 %v109
    %v435 = vunpack.c.l.b16 %v110
    %v436 = vunpack.c.h.b16 %v110
    %v437 = vunpack.c.l.b16 %v111
    %v438 = vunpack.c.h.b16 %v111
    %v439 = vunpack.c.l.b16 %v112
    %v440 = vunpack.c.h.b16 %v112
    %v441 = vunpack.c.l.b16 %v113
    %v442 = vunpack.c.h.b16 %v113
    %v443 = vunpack.c.l.b16 %v114
    %v444 = vunpack.c.h.b16 %v114
    %v445 = vunpack.c.l.b16 %v115
    %v446 = vunpack.c.h.b16 %v115
    %v447 = vunpack.c.l.b16 %v116
    %v448 = vunpack.c.h.b16 %v116
    %v449 = vunpack.c.l.b16 %v117
    %v450 = vunpack.c.h.b16 %v117
    %v451 = vunpack.c.l.b16 %v118
    %v452 = vunpack.c.h.b16 %v118
    %v453 = vunpack.c.l.b16 %v119
    %v454 = vunpack.c.h.b16 %v119
    %v455 = vunpack.c.l.b16 %v120
    %v456 = vunpack.c.h.b16 %v120
    %v457 = vunpack.c.l.b16 %v121
    %v458 = vunpack.c.h.b16 %v121
    %v459 = vunpack.c.l.b16 %v122
    %v460 = vunpack.c.h.b16 %v122
    %v461 = vunpack.c.l.b16 %v123
    %v462 = vunpack.c.h.b16 %v123
    %v463 = vunpack.c.l.b16 %v124
    %v464 = vunpack.c.h.b16 %v124
    %v465 = vunpack.c.l.b16 %v125
    %v466 = vunpack.c.h.b16 %v125
    %v467 = vunpack.c.l.b16 %v126
    %v468 = vunpack.c.h.b16 %v126
    %v469 = vunpack.c.l.b16 %v127
    %v470 = vunpack.c.h.b16 %v127
    %v471 = vunpack.c.l.b16 %v128
    %v472 = vunpack.c.h.b16 %v128
    %v473 = vunpack.c.l.b16 %v129
    %v474 = vunpack.c.h.b16 %v129
    %v475 = vunpack.c.l.b16 %v130
    %v476 = vunpack.c.h.b16 %v130
    %v477 = vunpack.c.l.b16 %v131
    %v478 = vunpack.c.h.b16 %v131
    %v479 = vunpack.c.l.b16 %v132
    %v480 = vunpack.c.h.b16 %v132
    %v481 = vunpack.c.l.b16 %v133
    %v482 = vunpack.c.h.b16 %v133
    %v483 = vunpack.c.l.b16 %v134
    %v484 = vunpack.c.h.b16 %v134
    %v485 = vunpack.c.l.b16 %v135
    %v486 = vunpack.c.h.b16 %v135
    %v487 = vunpack.c.l.b16 %v136
    %v488 = vunpack.c.h.b16 %v136
    %v489 = vunpack.c.l.b16 %v137
    %v490 = vunpack.c.h.b16 %v137
    %v491 = vunpack.c.l.b16 %v138
    %v492 = vunpack.c.h.b16 %v138
    %v493 = vunpack.c.l.b16 %v139
    %v494 = vunpack.c.h.b16 %v139
    %v495 = vunpack.c.l.b16 %v140
    %v496 = vunpack.c.h.b16 %v140
    %v497 = vunpack.c.l.b16 %v141
    %v498 = vunpack.c.h.b16 %v141
    %v499 = vunpack.c.l.b16 %v142
    %v500 = vunpack.c.h.b16 %v142
    %v501 = vunpack.c.l.b16 %v143
    %v502 = vunpack.c.h.b16 %v143
    %v503 = vunpack.c.l.b16 %v144
    %v504 = vunpack.c.h.b16 %v144
    %v505 = vunpack.c.l.b16 %v145
    %v506 = vunpack.c.h.b16 %v145
    %v507 = vunpack.c.l.b16 %v146
    %v508 = vunpack.c.h.b16 %v146
    %v509 = vunpack.c.l.b16 %v147
    %v510 = vunpack.c.h.b16 %v147
    %v511 = vunpack.c.l.b16 %v148
    %v512 = vunpack.c.h.b16 %v148
    %v513 = vunpack.c.l.b16 %v149
    %v514 = vunpack.c.h.b16 %v149
    %v515 = vunpack.c.l.b16 %v150
    %v516 = vunpack.c.h.b16 %v150
    %v517 = vunpack.c.l.b16 %v151
    %v518 = vunpack.c.h.b16 %v151
    %v519 = vunpack.c.l.b16 %v152
    %v520 = vunpack.c.h.b16 %v152
    %v521 = vunpack.c.l.b16 %v153
    %v522 = vunpack.c.h.b16 %v153
    %v523 = vunpack.c.l.b16 %v154
    %v524 = vunpack.c.h.b16 %v154
    %v525 = vunpack.c.l.b16 %v155
    %v526 = vunpack.c.h.b16 %v155
    %v527 = vunpack.c.l.b16 %v156
    %v528 = vunpack.c.h.b16 %v156
    %v529 = vunpack.c.l.b16 %v157
    %v530 = vunpack.c.h.b16 %v157
    %v531 = vunpack.c.l.b16 %v158
    %v532 = vunpack.c.h.b16 %v158
    %v533 = vunpack.c.l.b16 %v159
    %v534 = vunpack.c.h.b16 %v159
    %v535 = vunpack.c.l.b16 %v160
    %v536 = vunpack.c.h.b16 %v160
    %v537 = vunpack.c.l.b16 %v161
    %v538 = vunpack.c.h.b16 %v161
    %v539 = vunpack.c.l.b16 %v162
    %v540 = vunpack.c.h.b16 %v162
    %v541 = vunpack.c.l.b16 %v163
    %v542 = vunpack.c.h.b16 %v163
    %v543 = vunpack.c.l.b16 %v164
    %v544 = vunpack.c.h.b16 %v164
    %v545 = vunpack.c.l.b16 %v165
    %v546 = vunpack.c.h.b16 %v165
    %v547 = vunpack.c.l.b16 %v166
    %v548 = vunpack.c.h.b16 %v166
    %v549 = vunpack.c.l.b16 %v167
    %v550 = vunpack.c.h.b16 %v167
    %v551 = vunpack.c.l.b16 %v168
    %v552 = vunpack.c.h.b16 %v168
    %v553 = vunpack.c.l.b16 %v169
    %v554 = vunpack.c.h.b16 %v169
    %v555 = vunpack.c.l.b16 %v170
    %v556 = vunpack.c.h.b16 %v170
    %v557 = vunpack.c.l.b16 %v171
    %v558 = vunpack.c.h.b16 %v171
    %v559 = vunpack.c.l.b16 %v172
    %v560 = vunpack.c.h.b16 %v172
    %v561 = vunpack.c.l.b16 %v173
    %v562 = vunpack.c.h.b16 %v173
    %v563 = vunpack.c.l.b16 %v174
    %v564 = vunpack.c.h.b16 %v174
    %v565 = vunpack.c.l.b16 %v175
    %v566 = vunpack.c.h.b16 %v175
    %v567 = vunpack.c.l.b16 %v176
    %v568 = vunpack.c.h.b16 %v176
    %v569 = vunpack.c.l.b16 %v177
    %v570 = vunpack.c.h.b16 %v177
    %v571 = vunpack.c.l.b16 %v178
    %v572 = vunpack.c.h.b16 %v178
    %v573 = vunpack.c.l.b16 %v179
    %v574 = vunpack.c.h.b16 %v179
    %v575 = vunpack.c.l.b16 %v180
    %v576 = vunpack.c.h.b16 %v180
    %v577 = vunpack.c.l.b16 %v181
    %v578 = vunpack.c.h.b16 %v181
    %v579 = vunpack.c.l.b16 %v182
    %v580 = vunpack.c.h.b16 %v182
    %v581 = vunpack.c.l.b16 %v183
    %v582 = vunpack.c.h.b16 %v183
    %v583 = vunpack.c.l.b16 %v184
    %v584 = vunpack.c.h.b16 %v184
    %v585 = vunpack.c.l.b16 %v185
    %v586 = vunpack.c.h.b16 %v185
    %v587 = vunpack.c.l.b16 %v186
    %v588 = vunpack.c.h.b16 %v186
    %v589 = vunpack.c.l.b16 %v187
    %v590 = vunpack.c.h.b16 %v187
    %v591 = vunpack.c.l.b16 %v188
    %v592 = vunpack.c.h.b16 %v188
    %v593 = vunpack.c.l.b16 %v189
    %v594 = vunpack.c.h.b16 %v189
    %v595 = vunpack.c.l.b16 %v190
    %v596 = vunpack.c.h.b16 %v190
    %v597 = vunpack.c.l.b16 %v191
    %v598 = vunpack.c.h.b16 %v191
    %v599 = vunpack.c.l.b16 %v192
    %v600 = vunpack.c.h.b16 %v192
    %v601 = vunpack.c.l.b16 %v193
    %v602 = vunpack.c.h.b16 %v193
    %v603 = vunpack.c.l.b16 %v194
    %v604 = vunpack.c.h.b16 %v194
    %v605 = vunpack.c.l.b16 %v195
    %v606 = vunpack.c.h.b16 %v195
    %v607 = vunpack.c.l.b16 %v196
    %v608 = vunpack.c.h.b16 %v196
    %v609 = vunpack.c.l.b16 %v197
    %v610 = vunpack.c.h.b16 %v197
    %v611 = vunpack.c.l.b16 %v198
    %v612 = vunpack.c.h.b16 %v198
    %v613 = vunpack.c.l.b16 %v199
    %v614 = vunpack.c.h.b16 %v199
    %v615 = vunpack.c.l.b16 %v200
    %v616 = vunpack.c.h.b16 %v200
    %v617 = vunpack.c.l.b16 %v201
    %v618 = vunpack.c.h.b16 %v201
    %v619 = vunpack.c.l.b16 %v202
    %v620 = vunpack.c.h.b16 %v202
    %v621 = vunpack.c.l.b16 %v203
    %v622 = vunpack.c.h.b16 %v203
    %v623 = vunpack.c.l.b16 %v204
    %v624 = vunpack.c.h.b16 %v204
    %v625 = vunpack.c.l.b16 %v205
    %v626 = vunpack.c.h.b16 %v205
    %v627 = vunpack.c.l.b16 %v206
    %v628 = vunpack.c.h.b16 %v206
    %v629 = vunpack.c.l.b16 %v207
    %v630 = vunpack.c.h.b16 %v207
    %v631 = vunpack.c.l.b16 %v208
    %v632 = vunpack.c.h.b16 %v208
    %v633 = vpack.c.b16 %v381, %v377
    %v634 = vpack.c.b16 %v382, %v378
    %v635 = vpack.c.b16 %v383, %v379
    %v636 = vpack.c.b16 %v384, %v380
    %v637 = vpack.c.b16 %v389, %v385
    %v638 = vpack.c.b16 %v390, %v386
    %v639 = vpack.c.b16 %v391, %v387
    %v640 = vpack.c.b16 %v392, %v388
    %v641 = vpack.c.b16 %v397, %v393
    %v642 = vpack.c.b16 %v398, %v394
    %v643 = vpack.c.b16 %v399, %v395
    %v644 = vpack.c.b16 %v400, %v396
    %v645 = vpack.c.b16 %v405, %v401
    %v646 = vpack.c.b16 %v406, %v402
    %v647 = vpack.c.b16 %v407, %v403
    %v648 = vpack.c.b16 %v408, %v404
    %v649 = vpack.c.b16 %v413, %v409
    %v650 = vpack.c.b16 %v414, %v410
    %v651 = vpack.c.b16 %v415, %v411
    %v652 = vpack.c.b16 %v416, %v412
    %v653 = vpack.c.b16 %v421, %v417
    %v654 = vpack.c.b16 %v422, %v418
    %v655 = vpack.c.b16 %v423, %v419
    %v656 = vpack.c.b16 %v424, %v420
    %v657 = vpack.c.b16 %v429, %v425
    %v658 = vpack.c.b16 %v430, %v426
    %v659 = vpack.c.b16 %v431, %v427
    %v660 = vpack.c.b16 %v432, %v428
    %v661 = vpack.c.b16 %v437, %v433
    %v662 = vpack.c.b16 %v438, %v434
    %v663 = vpack.c.b16 %v439, %v435
    %v664 = vpack.c.b16 %v440, %v436
    %v665 = vpack.c.b16 %v445, %v441
    %v666 = vpack.c.b16 %v446, %v442
    %v667 = vpack.c.b16 %v447, %v443
    %v668 = vpack.c.b16 %v448, %v444
    %v669 = vpack.c.b16 %v453, %v449
    %v670 = vpack.c.b16 %v454, %v450
    %v671 = vpack.c.b16 %v455, %v451
    %v672 = vpack.c.b16 %v456, %v452
    %v673 = vpack.c.b16 %v461, %v457
    %v674 = vpack.c.b16 %v462, %v458
    %v675 = vpack.c.b16 %v463, %v459
    %v676 = vpack.c.b16 %v464, %v460
    %v677 = vpack.c.b16 %v469, %v465
    %v678 = vpack.c.b16 %v470, %v466
    %v679 = vpack.c.b16 %v471, %v467
    %v680 = vpack.c.b16 %v472, %v468
    %v681 = vpack.c.b16 %v477, %v473
    %v682 = vpack.c.b16 %v478, %v474
    %v683 = vpack.c.b16 %v479, %v475
    %v684 = vpack.c.b16 %v480, %v476
    %v685 = vpack.c.b16 %v485, %v481
    %v686 = vpack.c.b16 %v486, %v482
    %v687 = vpack.c.b16 %v487, %v483
    %v688 = vpack.c.b16 %v488, %v484
    %v689 = vpack.c.b16 %v493, %v489
    %v690 = vpack.c.b16 %v494, %v490
    %v691 = vpack.c.b16 %v495, %v491
    %v692 = vpack.c.b16 %v496, %v492
    %v693 = vpack.c.b16 %v501, %v497
    %v694 = vpack.c.b16 %v502, %v498
    %v695 = vpack.c.b16 %v503, %v499
    %v696 = vpack.c.b16 %v504, %v500
    %v697 = vpack.c.b16 %v509, %v505
    %v698 = vpack.c.b16 %v510, %v506
    %v699 = vpack.c.b16 %v511, %v507
    %v700 = vpack.c.b16 %v512, %v508
    %v701 = vpack.c.b16 %v517, %v513
    %v702 = vpack.c.b16 %v518, %v514
    %v703 = vpack.c.b16 %v519, %v515
    %v704 = vpack.c.b16 %v520, %v516
    %v705 = vpack.c.b16 %v525, %v521
    %v706 = vpack.c.b16 %v526, %v522
    %v707 = vpack.c.b16 %v527, %v523
    %v708 = vpack.c.b16 %v528, %v524
    %v709 = vpack.c.b16 %v533, %v529
    %v710 = vpack.c.b16 %v534, %v530
    %v711 = vpack.c.b16 %v535, %v531
    %v712 = vpack.c.b16 %v536, %v532
    %v713 = vpack.c.b16 %v541, %v537
    %v714 = vpack.c.b16 %v542, %v538
    %v715 = vpack.c.b16 %v543, %v539
    %v716 = vpack.c.b16 %v544, %v540
    %v717 = vpack.c.b16 %v549, %v545
    %v718 = vpack.c.b16 %v550, %v546
    %v719 = vpack.c.b16 %v551, %v547
    %v720 = vpack.c.b16 %v552, %v548
    %v721 = vpack.c.b16 %v557, %v553
    %v722 = vpack.c.b16 %v558, %v554
    %v723 = vpack.c.b16 %v559, %v555
    %v724 = vpack.c.b16 %v560, %v556
    %v725 = vpack.c.b16 %v565, %v561
    %v726 = vpack.c.b16 %v566, %v562
    %v727 = vpack.c.b16 %v567, %v563
    %v728 = vpack.c.b16 %v568, %v564
    %v729 = vpack.c.b16 %v573, %v569
    %v730 = vpack.c.b16 %v574, %v570
    %v731 = vpack.c.b16 %v575, %v571
    %v732 = vpack.c.b16 %v576, %v572
    %v733 = vpack.c.b16 %v581, %v577
    %v734 = vpack.c.b16 %v582, %v578
    %v735 = vpack.c.b16 %v583, %v579
    %v736 = vpack.c.b16 %v584, %v580
    %v737 = vpack.c.b16 %v589, %v585
    %v738 = vpack.c.b16 %v590, %v586
    %v739 = vpack.c.b16 %v591, %v587
    %v740 = vpack.c.b16 %v592, %v588
    %v741 = vpack.c.b16 %v597, %v593
    %v742 = vpack.c.b16 %v598, %v594
    %v743 = vpack.c.b16 %v599, %v595
    %v744 = vpack.c.b16 %v600, %v596
    %v745 = vpack.c.b16 %v605, %v601
    %v746 = vpack.c.b16 %v606, %v602
    %v747 = vpack.c.b16 %v607, %v603
    %v748 = vpack.c.b16 %v608, %v604
    %v749 = vpack.c.b16 %v613, %v609
    %v750 = vpack.c.b16 %v614, %v610
    %v751 = vpack.c.b16 %v615, %v611
    %v752 = vpack.c.b16 %v616, %v612
    %v753 = vpack.c.b16 %v621, %v617
    %v754 = vpack.c.b16 %v622, %v618
    %v755 = vpack.c.b16 %v623, %v619
    %v756 = vpack.c.b16 %v624, %v620
    %v757 = vpack.c.b16 %v629, %v625
    %v758 = vpack.c.b16 %v630, %v626
    %v759 = vpack.c.b16 %v631, %v627
    %v760 = vpack.c.b16 %v632, %v628
    %889 = vmatprep.subr.bf16.mxu0 %v662
    %890 = vmatpush1.bf16.msra.mxu0 %v661
    %891 = vmatprep.subr.bf16.mxu0 %v658
    %892 = vmatpush1.bf16.msra.mxu0 %v657
    %893 = vmatprep.subr.bf16.mxu0 %v654
    %894 = vmatpush1.bf16.msra.mxu0 %v653
    %895 = vmatprep.subr.bf16.mxu0 %v650
    %896 = vmatpush1.bf16.msra.mxu0 %v649
    %897 = vmatprep.subr.bf16.mxu0 %v646
    %898 = vmatpush1.bf16.msra.mxu0 %v645
    %899 = vmatprep.subr.bf16.mxu0 %v642
    %900 = vmatpush1.bf16.msra.mxu0 %v641
    %901 = vmatprep.subr.bf16.mxu0 %v638
    %902 = vmatpush1.bf16.msra.mxu0 %v637
    %903 = vmatprep.subr.bf16.mxu0 %v634
    %904 = vmatpush1.bf16.msra.mxu0 %v633
    %905 = vmatprep.subr.bf16.mxu0 %v694
    %906 = vmatpush2.bf16.msra.mxu0 %v693
    %907 = vmatprep.subr.bf16.mxu0 %v690
    %908 = vmatpush2.bf16.msra.mxu0 %v689
    %909 = vmatprep.subr.bf16.mxu0 %v686
    %910 = vmatpush2.bf16.msra.mxu0 %v685
    %911 = vmatprep.subr.bf16.mxu0 %v682
    %912 = vmatpush2.bf16.msra.mxu0 %v681
    %913 = vmatprep.subr.bf16.mxu0 %v678
    %914 = vmatpush2.bf16.msra.mxu0 %v677
    %915 = vmatprep.subr.bf16.mxu0 %v674
    %916 = vmatpush2.bf16.msra.mxu0 %v673
    %917 = vmatprep.subr.bf16.mxu0 %v670
    %918 = vmatpush2.bf16.msra.mxu0 %v669
    %919 = vmatprep.subr.bf16.mxu0 %v666
    %920 = vmatpush2.bf16.msra.mxu0 %v665
    %921 = vmatprep.mubr.bf16.mxu0 %v234
    %922 = vmatmul.mubr.bf16.gmra.mxu0 %v233
    %v923 = vpop.f32.mrf.mxu0
    %v924 = vadd.f32 0.0, %v923
    %v925 = vpop.f32.mrf.mxu0
    %v926 = vadd.f32 0.0, %v925
    %v927 = vpop.f32.mrf.mxu0
    %v928 = vadd.f32 0.0, %v927
    %v929 = vpop.f32.mrf.mxu0
    %v930 = vadd.f32 0.0, %v929
    %931 = vmatprep.mubr.bf16.mxu0 %v238
    %932 = vmatmul.mubr.bf16.gmra.mxu0 %v237
    %v933 = vpop.f32.mrf.mxu0
    %v934 = vadd.f32 0.0, %v933
    %v935 = vpop.f32.mrf.mxu0
    %v936 = vadd.f32 0.0, %v935
    %v937 = vpop.f32.mrf.mxu0
    %v938 = vadd.f32 0.0, %v937
    %v939 = vpop.f32.mrf.mxu0
    %v940 = vadd.f32 0.0, %v939
    %941 = vdwg.mxu0
    %942 = vmatprep.subr.bf16.mxu0 %v726
    %943 = vmatpush1.bf16.msra.mxu0 %v725
    %944 = vmatprep.subr.bf16.mxu0 %v722
    %945 = vmatpush1.bf16.msra.mxu0 %v721
    %946 = vmatprep.subr.bf16.mxu0 %v718
    %947 = vmatpush1.bf16.msra.mxu0 %v717
    %948 = vmatprep.subr.bf16.mxu0 %v714
    %949 = vmatpush1.bf16.msra.mxu0 %v713
    %950 = vmatprep.subr.bf16.mxu0 %v710
    %951 = vmatpush1.bf16.msra.mxu0 %v709
    %952 = vmatprep.subr.bf16.mxu0 %v706
    %953 = vmatpush1.bf16.msra.mxu0 %v705
    %954 = vmatprep.subr.bf16.mxu0 %v702
    %955 = vmatpush1.bf16.msra.mxu0 %v701
    %956 = vmatprep.subr.bf16.mxu0 %v698
    %957 = vmatpush1.bf16.msra.mxu0 %v697
    %958 = vmatprep.subr.bf16.mxu0 %v758
    %959 = vmatpush2.bf16.msra.mxu0 %v757
    %960 = vmatprep.subr.bf16.mxu0 %v754
    %961 = vmatpush2.bf16.msra.mxu0 %v753
    %962 = vmatprep.subr.bf16.mxu0 %v750
    %963 = vmatpush2.bf16.msra.mxu0 %v749
    %964 = vmatprep.subr.bf16.mxu0 %v746
    %965 = vmatpush2.bf16.msra.mxu0 %v745
    %966 = vmatprep.subr.bf16.mxu0 %v742
    %967 = vmatpush2.bf16.msra.mxu0 %v741
    %968 = vmatprep.subr.bf16.mxu0 %v738
    %969 = vmatpush2.bf16.msra.mxu0 %v737
    %970 = vmatprep.subr.bf16.mxu0 %v734
    %971 = vmatpush2.bf16.msra.mxu0 %v733
    %972 = vmatprep.subr.bf16.mxu0 %v730
    %973 = vmatpush2.bf16.msra.mxu0 %v729
    %974 = vmatprep.mubr.bf16.mxu0 %v236
    %975 = vmatmul.mubr.bf16.gmra.mxu0 %v235
    %v976 = vpop.f32.mrf.mxu0
    %v977 = vadd.f32 %v924, %v976
    %v978 = vpop.f32.mrf.mxu0
    %v979 = vadd.f32 %v926, %v978
    %v980 = vpop.f32.mrf.mxu0
    %v981 = vadd.f32 %v928, %v980
    %v982 = vpop.f32.mrf.mxu0
    %v983 = vadd.f32 %v930, %v982
    %984 = vmatprep.mubr.bf16.mxu0 %v240
    %985 = vmatmul.mubr.bf16.gmra.mxu0 %v239
    %v986 = vpop.f32.mrf.mxu0
    %v987 = vadd.f32 %v934, %v986
    %v988 = vpop.f32.mrf.mxu0
    %v989 = vadd.f32 %v936, %v988
    %v990 = vpop.f32.mrf.mxu0
    %v991 = vadd.f32 %v938, %v990
    %v992 = vpop.f32.mrf.mxu0
    %v993 = vadd.f32 %v940, %v992
    %994 = vdwg.mxu0
    %995 = vmatprep.subr.bf16.mxu0 %v664
    %996 = vmatpush1.bf16.msra.mxu0 %v663
    %997 = vmatprep.subr.bf16.mxu0 %v660
    %998 = vmatpush1.bf16.msra.mxu0 %v659
    %999 = vmatprep.subr.bf16.mxu0 %v656
    %1000 = vmatpush1.bf16.msra.mxu0 %v655
    %1001 = vmatprep.subr.bf16.mxu0 %v652
    %1002 = vmatpush1.bf16.msra.mxu0 %v651
    %1003 = vmatprep.subr.bf16.mxu0 %v648
    %1004 = vmatpush1.bf16.msra.mxu0 %v647
    %1005 = vmatprep.subr.bf16.mxu0 %v644
    %1006 = vmatpush1.bf16.msra.mxu0 %v643
    %1007 = vmatprep.subr.bf16.mxu0 %v640
    %1008 = vmatpush1.bf16.msra.mxu0 %v639
    %1009 = vmatprep.subr.bf16.mxu0 %v636
    %1010 = vmatpush1.bf16.msra.mxu0 %v635
    %1011 = vmatprep.subr.bf16.mxu0 %v696
    %1012 = vmatpush2.bf16.msra.mxu0 %v695
    %1013 = vmatprep.subr.bf16.mxu0 %v692
    %1014 = vmatpush2.bf16.msra.mxu0 %v691
    %1015 = vmatprep.subr.bf16.mxu0 %v688
    %1016 = vmatpush2.bf16.msra.mxu0 %v687
    %1017 = vmatprep.subr.bf16.mxu0 %v684
    %1018 = vmatpush2.bf16.msra.mxu0 %v683
    %1019 = vmatprep.subr.bf16.mxu0 %v680
    %1020 = vmatpush2.bf16.msra.mxu0 %v679
    %1021 = vmatprep.subr.bf16.mxu0 %v676
    %1022 = vmatpush2.bf16.msra.mxu0 %v675
    %1023 = vmatprep.subr.bf16.mxu0 %v672
    %1024 = vmatpush2.bf16.msra.mxu0 %v671
    %1025 = vmatprep.subr.bf16.mxu0 %v668
    %1026 = vmatpush2.bf16.msra.mxu0 %v667
    %1027 = vmatprep.mubr.bf16.mxu0 %v234
    %1028 = vmatmul.mubr.bf16.gmra.mxu0 %v233
    %v1029 = vpop.f32.mrf.mxu0
    %v1030 = vadd.f32 0.0, %v1029
    %v1031 = vpop.f32.mrf.mxu0
    %v1032 = vadd.f32 0.0, %v1031
    %v1033 = vpop.f32.mrf.mxu0
    %v1034 = vadd.f32 0.0, %v1033
    %v1035 = vpop.f32.mrf.mxu0
    %v1036 = vadd.f32 0.0, %v1035
    %1037 = vmatprep.mubr.bf16.mxu0 %v238
    %1038 = vmatmul.mubr.bf16.gmra.mxu0 %v237
    %v1039 = vpop.f32.mrf.mxu0
    %v1040 = vadd.f32 0.0, %v1039
    %v1041 = vpop.f32.mrf.mxu0
    %v1042 = vadd.f32 0.0, %v1041
    %v1043 = vpop.f32.mrf.mxu0
    %v1044 = vadd.f32 0.0, %v1043
    %v1045 = vpop.f32.mrf.mxu0
    %v1046 = vadd.f32 0.0, %v1045
    %1047 = vdwg.mxu0
    %1048 = vmatprep.subr.bf16.mxu0 %v728
    %1049 = vmatpush1.bf16.msra.mxu0 %v727
    %1050 = vmatprep.subr.bf16.mxu0 %v724
    %1051 = vmatpush1.bf16.msra.mxu0 %v723
    %1052 = vmatprep.subr.bf16.mxu0 %v720
    %1053 = vmatpush1.bf16.msra.mxu0 %v719
    %1054 = vmatprep.subr.bf16.mxu0 %v716
    %1055 = vmatpush1.bf16.msra.mxu0 %v715
    %1056 = vmatprep.subr.bf16.mxu0 %v712
    %1057 = vmatpush1.bf16.msra.mxu0 %v711
    %1058 = vmatprep.subr.bf16.mxu0 %v708
    %1059 = vmatpush1.bf16.msra.mxu0 %v707
    %1060 = vmatprep.subr.bf16.mxu0 %v704
    %1061 = vmatpush1.bf16.msra.mxu0 %v703
    %1062 = vmatprep.subr.bf16.mxu0 %v700
    %1063 = vmatpush1.bf16.msra.mxu0 %v699
    %1064 = vmatprep.subr.bf16.mxu0 %v760
    %1065 = vmatpush2.bf16.msra.mxu0 %v759
    %1066 = vmatprep.subr.bf16.mxu0 %v756
    %1067 = vmatpush2.bf16.msra.mxu0 %v755
    %1068 = vmatprep.subr.bf16.mxu0 %v752
    %1069 = vmatpush2.bf16.msra.mxu0 %v751
    %1070 = vmatprep.subr.bf16.mxu0 %v748
    %1071 = vmatpush2.bf16.msra.mxu0 %v747
    %1072 = vmatprep.subr.bf16.mxu0 %v744
    %1073 = vmatpush2.bf16.msra.mxu0 %v743
    %1074 = vmatprep.subr.bf16.mxu0 %v740
    %1075 = vmatpush2.bf16.msra.mxu0 %v739
    %1076 = vmatprep.subr.bf16.mxu0 %v736
    %1077 = vmatpush2.bf16.msra.mxu0 %v735
    %1078 = vmatprep.subr.bf16.mxu0 %v732
    %1079 = vmatpush2.bf16.msra.mxu0 %v731
    %1080 = vmatprep.mubr.bf16.mxu0 %v236
    %1081 = vmatmul.mubr.bf16.gmra.mxu0 %v235
    %v1082 = vpop.f32.mrf.mxu0
    %v1083 = vadd.f32 %v1030, %v1082
    %v1084 = vpop.f32.mrf.mxu0
    %v1085 = vadd.f32 %v1032, %v1084
    %v1086 = vpop.f32.mrf.mxu0
    %v1087 = vadd.f32 %v1034, %v1086
    %v1088 = vpop.f32.mrf.mxu0
    %v1089 = vadd.f32 %v1036, %v1088
    %1090 = vmatprep.mubr.bf16.mxu0 %v240
    %1091 = vmatmul.mubr.bf16.gmra.mxu0 %v239
    %v1092 = vpop.f32.mrf.mxu0
    %v1093 = vadd.f32 %v1040, %v1092
    %v1094 = vpop.f32.mrf.mxu0
    %v1095 = vadd.f32 %v1042, %v1094
    %v1096 = vpop.f32.mrf.mxu0
    %v1097 = vadd.f32 %v1044, %v1096
    %v1098 = vpop.f32.mrf.mxu0
    %v1099 = vadd.f32 %v1046, %v1098
    %1100 = vdwg.mxu0
    %v1101 = vadd.f32 %v57, %v977
    %v1102 = vadd.f32 %v58, %v979
    %v1103 = vadd.f32 %v59, %v1083
    %v1104 = vadd.f32 %v60, %v1085
    %v1105 = vadd.f32 %v61, %v981
    %v1106 = vadd.f32 %v62, %v983
    %v1107 = vadd.f32 %v63, %v1087
    %v1108 = vadd.f32 %v64, %v1089
    %v1109 = vadd.f32 %v65, %v987
    %v1110 = vadd.f32 %v66, %v989
    %v1111 = vadd.f32 %v67, %v1093
    %v1112 = vadd.f32 %v68, %v1095
    %v1113 = vadd.f32 %v69, %v991
    %v1114 = vadd.f32 %v70, %v993
    %v1115 = vadd.f32 %v71, %v1097
    %v1116 = vadd.f32 %v72, %v1099
    %1117 = vst [vmem:[#allocation2] sm:$0xff] %v1101
    %1118 = vst [vmem:[#allocation2 + $0x8] sm:$0xff] %v1102
    %1119 = vst [vmem:[#allocation2 + $0x10] sm:$0xff] %v1103
    %1120 = vst [vmem:[#allocation2 + $0x18] sm:$0xff] %v1104
    %1121 = vst [vmem:[#allocation2 + $0x20] sm:$0xff] %v1105
    %1122 = vst [vmem:[#allocation2 + $0x28] sm:$0xff] %v1106
    %1123 = vst [vmem:[#allocation2 + $0x30] sm:$0xff] %v1107
    %1124 = vst [vmem:[#allocation2 + $0x38] sm:$0xff] %v1108
    %1125 = vst [vmem:[#allocation2 + $0x40] sm:$0xff] %v1109
    %1126 = vst [vmem:[#allocation2 + $0x48] sm:$0xff] %v1110
    %1127 = vst [vmem:[#allocation2 + $0x50] sm:$0xff] %v1111
    %1128 = vst [vmem:[#allocation2 + $0x58] sm:$0xff] %v1112
    %1129 = vst [vmem:[#allocation2 + $0x60] sm:$0xff] %v1113
    %1130 = vst [vmem:[#allocation2 + $0x68] sm:$0xff] %v1114
    %1131 = vst [vmem:[#allocation2 + $0x70] sm:$0xff] %v1115
    %1132 = vst [vmem:[#allocation2 + $0x78] sm:$0xff] %v1116
    // Predicated region
    $region18: #{multi_head_attention_forward.5} parent=1 // pred_check
      _
    $region19: #{multi_head_attention_forward.5} parent=1 // pred_check_branch
      %1134 = sbr.rel (0) target = $region21
    $region20: #{multi_head_attention_forward.5} parent=1 // pred_region
      %s1136 = ssub.s32 2048, 2048
      %1137 = vsyncadd [#allocation3], %s1136
      %s1138 = sshll.u32 [#allocation2], 4
      %s1139 = int_to_ptr.vmem [resolvable:$true] %s1138
      %1144 = dma.vmem_to_hbm [thread:$0]  %s1139, 2048, %s3, [#allocation3], 512, 512, 32
    $region21: #{multi_head_attention_forward.5} parent=1 // pred_fallthru
      _
    // Predicated region
    $region22: #{multi_head_attention_forward.5} parent=1 // pred_check
      _
    $region23: #{multi_head_attention_forward.5} parent=1 // pred_check_branch
      %1146 = sbr.rel (0) target = $region25
    $region24: #{multi_head_attention_forward.5} parent=1 // pred_region
      %1147 = dma.done [#allocation3], 2048
    $region25: #{multi_head_attention_forward.5} parent=1 // pred_fallthru
      _
    %1148 = vsyncpa [#allocation3], 1

// kernel: multi_head_attention_forward.3
$region0: #{multi_head_attention_forward.3}
  #allocation0 [shape = 'u32[]', space=smem, size = 0x4, offset = 0x4, fixed_abs, tag = 'smem constant byte address 0x4 - core index']
  #allocation1 [shape = 'u32[144,128]{1,0:T(1,128)}', space=vmem, size = 0x12000, scoped, tag = 'internal scratch']
  #allocation2 [shape = 'f32[32,768]{1,0:T(8,128)}', space=vmem, size = 0x18000, scoped, tag = 'scratch operand']
  %s0 = inlined_call_operand.vmem [shape: bf16[32,512], index: 0, kind: input, shape index: {}]
  %s1 = inlined_call_operand.hbm [shape: bf16[512,1536], index: 1, kind: input, shape index: {}]
  %s2 = inlined_call_operand.hbm [shape: f32[1,1536], index: 2, kind: input, shape index: {}]
  %s3 = inlined_call_operand.vmem [shape: bf16[32,1536], index: 3, kind: output, shape index: {}]
  %s4 = sld [smem:[#allocation0]]
  $region80: #{multi_head_attention_forward.3} parent=0
    _
  %s6 = ssub.s32 1, %s4
  %s7 = scalar_select 0, %s6, %s4
  $region1: #{multi_head_attention_forward.3} parent=0
    #allocation3 [shape = 'u8[1572864]{0}', space=vmem, size = 0x180000, scoped, tag = 'input window, operand 1']
    #allocation4 [shape = 's32[2]{0}', space=sflag, size = 0x8, scoped, tag = 'scoped memory for multi_head_attention_forward.3']
    #allocation5 [shape = 'u8[6144]{0}', space=vmem, size = 0x1800, scoped, tag = 'input window, operand 2']
    #allocation6 [shape = 's32[2]{0}', space=sflag, size = 0x8, scoped, tag = 'scoped memory for multi_head_attention_forward.3']
    #allocation7 [shape = 'u8[98304]{0}', space=vmem, size = 0x18000, scoped, tag = 'output window, operand 0']
    %8 = vsyncpa [#allocation4], 0
    %s9 = scalar_lea.sflag [#allocation4], 1
    %10 = vsyncpa %s9, 0
    %11 = vsyncpa [#allocation6], 0
    %s12 = scalar_lea.sflag [#allocation6], 1
    %13 = vsyncpa %s12, 0
    loop: start=0, step=1, limit=4
    $region2: #{multi_head_attention_forward.3} parent=1 // loop_pre_header
      _
    $region3: #{multi_head_attention_forward.3} parent=1 // loop_header
      %s15 = sphi 0, %s19
      %p16 = scmp.ge.s32.totalorder %s15, 4
      %s22 = sphi 0, %s41
      %s23 = sphi 0, %s37
      %s24 = sphi 0, %s33
      %s25 = sphi 0, %s22
      %s26 = sphi 0, %s23
      %s27 = sphi 0, %s24
      %s28 = sphi 0, %s25
      %s29 = sphi 0, %s26
      %s30 = sphi 0, %s27
      %s46 = sphi 0, %s48
      %s49 = sphi 0, %s46
      %s50 = sphi 0, %s49
      %s66 = sphi 0, %s50
      %s74 = sphi 0, %s76
      %s77 = sphi 0, %s74
      %s78 = sphi 0, %s77
      %s94 = sphi 0, %s78
      %s100 = sphi 0, %s102
      %s103 = sphi 0, %s100
      %s104 = sphi 0, %s103
      %s120 = sphi 0, %s104
      %s128 = sphi 0, %s130
      %s131 = sphi 0, %s128
      %s132 = sphi 0, %s131
      %s148 = sphi 0, %s132
    $region4: #{multi_head_attention_forward.3} parent=1 // loop_header_branch
      %18 = sbr.rel (%p16) target = $region8
    $region5: #{multi_head_attention_forward.3} parent=1 // loop_body
      %s20 = ssub.s32 %s15, 1
      %s21 = ssub.s32 %s15, 2
      %s31 = sadd.s32 1, %s24
      %p32 = scmp.ge.s32.totalorder %s31, 1
      %s33 = scalar_select %p32, 0, %s31
      %s34 = sadd.s32 1, %s23
      %s35 = scalar_select %p32, %s34, %s23
      %p36 = scmp.ge.s32.totalorder %s35, 2
      %s37 = scalar_select %p36, 0, %s35
      %s38 = sadd.s32 1, %s22
      %s39 = scalar_select %p36, %s38, %s22
      %p40 = scmp.ge.s32.totalorder %s39, 1
      %s41 = scalar_select %p40, 0, %s39
      %s42 = ssub.s32 %s22, %s41
      %s43 = ssub.s32 %s24, %s33
      %s44 = sor.u32 %s42, %s43
      %p45 = scmp.eq.s32.totalorder %s44, 0
      %s47 = sadd.s32 %s46, 1
      %s48 = scalar_select %p45, %s46, %s47
      %p51 = pneg %p45
      %p52 = scmp.eq.s32.totalorder %s15, 1
      %p53 = por %p51, %p52
      %p54 = scmp.ne.s32.totalorder %s46, %s49
      %p55 = scmp.eq.s32.totalorder %s15, 0
      %p56 = por %p54, %p55
      %p57 = scmp.ne.s32.totalorder %s46, %s49
      %p58 = scmp.eq.s32.totalorder %s20, 1
      %p59 = por %p57, %p58
      %p60 = scmp.ne.s32.totalorder %s49, %s50
      %p61 = scmp.eq.s32.totalorder %s20, 0
      %p62 = por %p60, %p61
      %p63 = scmp.ne.s32.totalorder %s49, %s50
      %p64 = scmp.eq.s32.totalorder %s21, 1
      %p65 = por %p63, %p64
      %p67 = scmp.ne.s32.totalorder %s50, %s66
      %p68 = scmp.eq.s32.totalorder %s21, 0
      %p69 = por %p67, %p68
      %s70 = ssub.s32 %s24, %s33
      %s71 = ssub.s32 %s23, %s37
      %s72 = sor.u32 %s70, %s71
      %p73 = scmp.eq.s32.totalorder %s72, 0
      %s75 = sadd.s32 %s74, 1
      %s76 = scalar_select %p73, %s74, %s75
      %p79 = pneg %p73
      %p80 = scmp.eq.s32.totalorder %s15, 1
      %p81 = por %p79, %p80
      %p82 = scmp.ne.s32.totalorder %s74, %s77
      %p83 = scmp.eq.s32.totalorder %s15, 0
      %p84 = por %p82, %p83
      %p85 = scmp.ne.s32.totalorder %s74, %s77
      %p86 = scmp.eq.s32.totalorder %s20, 1
      %p87 = por %p85, %p86
      %p88 = scmp.ne.s32.totalorder %s77, %s78
      %p89 = scmp.eq.s32.totalorder %s20, 0
      %p90 = por %p88, %p89
      %p91 = scmp.ne.s32.totalorder %s77, %s78
      %p92 = scmp.eq.s32.totalorder %s21, 1
      %p93 = por %p91, %p92
      %p95 = scmp.ne.s32.totalorder %s78, %s94
      %p96 = scmp.eq.s32.totalorder %s21, 0
      %p97 = por %p95, %p96
      %s98 = ssub.s32 %s23, %s37
      %p99 = scmp.eq.s32.totalorder %s98, 0
      %s101 = sadd.s32 %s100, 1
      %s102 = scalar_select %p99, %s100, %s101
      %p105 = pneg %p99
      %p106 = scmp.eq.s32.totalorder %s15, 1
      %p107 = por %p105, %p106
      %p108 = scmp.ne.s32.totalorder %s100, %s103
      %p109 = scmp.eq.s32.totalorder %s15, 0
      %p110 = por %p108, %p109
      %p111 = scmp.ne.s32.totalorder %s100, %s103
      %p112 = scmp.eq.s32.totalorder %s20, 1
      %p113 = por %p111, %p112
      %p114 = scmp.ne.s32.totalorder %s103, %s104
      %p115 = scmp.eq.s32.totalorder %s20, 0
      %p116 = por %p114, %p115
      %p117 = scmp.ne.s32.totalorder %s103, %s104
      %p118 = scmp.eq.s32.totalorder %s21, 1
      %p119 = por %p117, %p118
      %p121 = scmp.ne.s32.totalorder %s104, %s120
      %p122 = scmp.eq.s32.totalorder %s21, 0
      %p123 = por %p121, %p122
      %s124 = ssub.s32 %s22, %s41
      %s125 = ssub.s32 %s23, %s37
      %s126 = sor.u32 %s124, %s125
      %p127 = scmp.eq.s32.totalorder %s126, 0
      %s129 = sadd.s32 %s128, 1
      %s130 = scalar_select %p127, %s128, %s129
      %p133 = pneg %p127
      %p134 = scmp.eq.s32.totalorder %s15, 1
      %p135 = por %p133, %p134
      %p136 = scmp.ne.s32.totalorder %s128, %s131
      %p137 = scmp.eq.s32.totalorder %s15, 0
      %p138 = por %p136, %p137
      %p139 = scmp.ne.s32.totalorder %s128, %s131
      %p140 = scmp.eq.s32.totalorder %s20, 1
      %p141 = por %p139, %p140
      %p142 = scmp.ne.s32.totalorder %s131, %s132
      %p143 = scmp.eq.s32.totalorder %s20, 0
      %p144 = por %p142, %p143
      %p145 = scmp.ne.s32.totalorder %s131, %s132
      %p146 = scmp.eq.s32.totalorder %s21, 1
      %p147 = por %p145, %p146
      %p149 = scmp.ne.s32.totalorder %s132, %s148
      %p150 = scmp.eq.s32.totalorder %s21, 0
      %p151 = por %p149, %p150
      %p152 = scmp.le.s32.totalorder 1, %s15
      %p153 = scmp.lt.s32.totalorder %s15, 3
      %p154 = pnand %p152, %p153
      %p155 = pneg %p154
      // Predicated region
      $region9: #{multi_head_attention_forward.3} parent=5 // pred_check
        _
      $region10: #{multi_head_attention_forward.3} parent=5 // pred_check_branch
        %157 = sbr.rel (%p154) target = $region12
      $region11: #{multi_head_attention_forward.3} parent=5 // pred_region
        %s158 = ssub.s32 %s15, 1
        // Predicated region
        $region13: #{multi_head_attention_forward.3} parent=11 // pred_check
          %p159 = pneg %p62
        $region14: #{multi_head_attention_forward.3} parent=11 // pred_check_branch
          %161 = sbr.rel (%p159) target = $region16
        $region15: #{multi_head_attention_forward.3} parent=11 // pred_region
          %s162 = smul.u32 4, %s25
          %s163 = smul.u32 4, %s27
          %p164 = scmp.lt.s32.totalorder %s162, 3
          %s165 = scalar_select %p164, %s162, 3
          %p166 = scmp.lt.s32.totalorder %s163, 3
          %s167 = scalar_select %p166, %s163, 3
          %s168 = smul.addr %s165, 4
          %s169 = sadd.s32 %s167, %s168
          %s170 = smul.addr %s169, 4
          %s171 = scalar_lea.vmem %s0, %s170
          %s172 = smul.u32 4, %s25
          %s173 = smul.u32 4, %s27
        $region16: #{multi_head_attention_forward.3} parent=11 // pred_fallthru
          _
      $region12: #{multi_head_attention_forward.3} parent=5 // pred_fallthru
        _
      %p174 = scmp.lt.s32.totalorder %s15, 2
      // Predicated region
      $region17: #{multi_head_attention_forward.3} parent=5 // pred_check
        %p175 = pneg %p174
      $region18: #{multi_head_attention_forward.3} parent=5 // pred_check_branch
        %177 = sbr.rel (%p175) target = $region20
      $region19: #{multi_head_attention_forward.3} parent=5 // pred_region
        // Predicated region
        $region21: #{multi_head_attention_forward.3} parent=19 // pred_check
          %p178 = pneg %p84
        $region22: #{multi_head_attention_forward.3} parent=19 // pred_check_branch
          %180 = sbr.rel (%p178) target = $region24
        $region23: #{multi_head_attention_forward.3} parent=19 // pred_region
          %s181 = sand.u32 %s74, 1
          %s182 = scalar_lea.sflag [#allocation4], %s181
          %s183 = sand.u32 %s74, 1
          %s184 = smul.addr %s183, 1536
          %s185 = scalar_lea.vmem [#allocation3], %s184
          %s186 = smul.u32 64, %s24
          %s187 = smul.u32 6, %s23
          %s189 = ssub.s32 24576, 24576
          %190 = vsyncadd %s182, %s189
          %s191 = smul.addr %s186, 12
          %s192 = sadd.s32 %s187, %s191
          %s193 = smul.addr %s192, 64
          %s194 = scalar_lea.hbm %s1, %s193
          %s195 = sshll.u32 %s185, 4
          %s196 = int_to_ptr.vmem [resolvable:$true] %s195
          %201 = dma.hbm_to_vmem [thread:$0]  %s194, 24576, %s196, %s182, 768, 384, 24
        $region24: #{multi_head_attention_forward.3} parent=19 // pred_fallthru
          _
        // Predicated region
        $region25: #{multi_head_attention_forward.3} parent=19 // pred_check
          %p202 = pneg %p110
        $region26: #{multi_head_attention_forward.3} parent=19 // pred_check_branch
          %204 = sbr.rel (%p202) target = $region28
        $region27: #{multi_head_attention_forward.3} parent=19 // pred_region
          %s205 = sand.u32 %s100, 1
          %s206 = scalar_lea.sflag [#allocation6], %s205
          %s207 = sand.u32 %s100, 1
          %s208 = smul.addr %s207, 6
          %s209 = scalar_lea.vmem [#allocation5], %s208
          %s210 = smul.u32 6, %s23
          %s212 = ssub.s32 96, 96
          %213 = vsyncadd %s206, %s212
          %s214 = smul.addr %s210, 16
          %s215 = scalar_lea.hbm %s2, %s214
          %s217 = sshll.u32 %s209, 4
          %s218 = int_to_ptr.vmem [resolvable:$true] %s217
          %220 = dma.hbm_to_vmem [thread:$0]  %s215, 96, %s218, %s206
        $region28: #{multi_head_attention_forward.3} parent=19 // pred_fallthru
          _
      $region20: #{multi_head_attention_forward.3} parent=5 // pred_fallthru
        _
      %p221 = scmp.le.s32.totalorder 1, %s15
      %p222 = scmp.lt.s32.totalorder %s15, 3
      %p223 = pnand %p221, %p222
      %p224 = pneg %p223
      // Predicated region
      $region29: #{multi_head_attention_forward.3} parent=5 // pred_check
        _
      $region30: #{multi_head_attention_forward.3} parent=5 // pred_check_branch
        %226 = sbr.rel (%p223) target = $region32
      $region31: #{multi_head_attention_forward.3} parent=5 // pred_region
        %s227 = ssub.s32 %s15, 1
        %s228 = sand.u32 %s77, 1
        %s229 = scalar_lea.sflag [#allocation4], %s228
        %s230 = sand.u32 %s77, 1
        %s231 = smul.addr %s230, 1536
        %s232 = scalar_lea.vmem [#allocation3], %s231
        // Predicated region
        $region33: #{multi_head_attention_forward.3} parent=31 // pred_check
          %p233 = pneg %p90
        $region34: #{multi_head_attention_forward.3} parent=31 // pred_check_branch
          %235 = sbr.rel (%p233) target = $region36
        $region35: #{multi_head_attention_forward.3} parent=31 // pred_region
          %236 = dma.done %s229, 24576
        $region36: #{multi_head_attention_forward.3} parent=31 // pred_fallthru
          _
        %s237 = sand.u32 %s103, 1
        %s238 = scalar_lea.sflag [#allocation6], %s237
        %s239 = sand.u32 %s103, 1
        %s240 = smul.addr %s239, 6
        %s241 = scalar_lea.vmem [#allocation5], %s240
        // Predicated region
        $region37: #{multi_head_attention_forward.3} parent=31 // pred_check
          %p242 = pneg %p116
        $region38: #{multi_head_attention_forward.3} parent=31 // pred_check_branch
          %244 = sbr.rel (%p242) target = $region40
        $region39: #{multi_head_attention_forward.3} parent=31 // pred_region
          %245 = dma.done %s238, 96
        $region40: #{multi_head_attention_forward.3} parent=31 // pred_fallthru
          _
        %s246 = smul.u32 4, %s25
        %s247 = smul.u32 4, %s27
        %p248 = scmp.lt.s32.totalorder %s246, 3
        %s249 = scalar_select %p248, %s246, 3
        %p250 = scmp.lt.s32.totalorder %s247, 3
        %s251 = scalar_select %p250, %s247, 3
        %s252 = smul.addr %s249, 4
        %s253 = sadd.s32 %s251, %s252
        %s254 = smul.addr %s253, 4
        %s255 = scalar_lea.vmem %s0, %s254
        %p256 = pneg %p62
        %p257 = pneg %p59
        %s258 = sand.u32 %s77, 1
        %s259 = scalar_lea.sflag [#allocation4], %s258
        %s260 = sand.u32 %s77, 1
        %s261 = smul.addr %s260, 1536
        %s262 = scalar_lea.vmem [#allocation3], %s261
        %p263 = pneg %p90
        %p264 = pneg %p87
        %s265 = sand.u32 %s103, 1
        %s266 = scalar_lea.sflag [#allocation6], %s265
        %s267 = sand.u32 %s103, 1
        %s268 = smul.addr %s267, 6
        %s269 = scalar_lea.vmem [#allocation5], %s268
        %p270 = pneg %p116
        %p271 = pneg %p113
        %p272 = pneg %p144
        %p273 = pneg %p141
        %s274 = sand.u32 %s131, 1
        %s275 = sand.u32 %s131, 1
        %s276 = smul.addr %s275, 96
        %s277 = scalar_lea.vmem [#allocation7], %s276
        %s278 = smul.u32 4, %s25
        %s279 = smul.u32 4, %s27
        %p280 = scmp.lt.s32.totalorder %s278, 3
        %s281 = scalar_select %p280, %s278, 3
        %p282 = scmp.lt.s32.totalorder %s279, 3
        %s283 = scalar_select %p282, %s279, 3
        %s284 = smul.addr %s281, 4
        %s285 = sadd.s32 %s283, %s284
        %s286 = smul.addr %s285, 4
        %s287 = scalar_lea.vmem %s0, %s286
        %s288 = smul.u32 4, %s25
        %s289 = smul.u32 4, %s27
        %s290 = smul.u32 64, %s27
        %s291 = smul.u32 6, %s26
        %s292 = smul.u32 6, %s26
        %s293 = smul.u32 4, %s25
        %s294 = smul.u32 6, %s26
        %p295 = scmp.eq.s32.totalorder %s27, 0
        // Predicated region
        $region41: #{multi_head_attention_forward.3} parent=31 // pred_check
          %p296 = pneg %p295
        $region42: #{multi_head_attention_forward.3} parent=31 // pred_check_branch
          %298 = sbr.rel (%p296) target = $region44
        $region43: #{multi_head_attention_forward.3} parent=31 // pred_region
          %299 = vst [vmem:[#allocation2] sm:$0xff] 0.0
          %300 = vst [vmem:[#allocation2 + $0x8] sm:$0xff] 0.0
          %301 = vst [vmem:[#allocation2 + $0x10] sm:$0xff] 0.0
          %302 = vst [vmem:[#allocation2 + $0x18] sm:$0xff] 0.0
          %303 = vst [vmem:[#allocation2 + $0x20] sm:$0xff] 0.0
          %304 = vst [vmem:[#allocation2 + $0x28] sm:$0xff] 0.0
          %305 = vst [vmem:[#allocation2 + $0x30] sm:$0xff] 0.0
          %306 = vst [vmem:[#allocation2 + $0x38] sm:$0xff] 0.0
          %307 = vst [vmem:[#allocation2 + $0x40] sm:$0xff] 0.0
          %308 = vst [vmem:[#allocation2 + $0x48] sm:$0xff] 0.0
          %309 = vst [vmem:[#allocation2 + $0x50] sm:$0xff] 0.0
          %310 = vst [vmem:[#allocation2 + $0x58] sm:$0xff] 0.0
          %311 = vst [vmem:[#allocation2 + $0x60] sm:$0xff] 0.0
          %312 = vst [vmem:[#allocation2 + $0x68] sm:$0xff] 0.0
          %313 = vst [vmem:[#allocation2 + $0x70] sm:$0xff] 0.0
          %314 = vst [vmem:[#allocation2 + $0x78] sm:$0xff] 0.0
          %315 = vst [vmem:[#allocation2 + $0x80] sm:$0xff] 0.0
          %316 = vst [vmem:[#allocation2 + $0x88] sm:$0xff] 0.0
          %317 = vst [vmem:[#allocation2 + $0x90] sm:$0xff] 0.0
          %318 = vst [vmem:[#allocation2 + $0x98] sm:$0xff] 0.0
          %319 = vst [vmem:[#allocation2 + $0xa0] sm:$0xff] 0.0
          %320 = vst [vmem:[#allocation2 + $0xa8] sm:$0xff] 0.0
          %321 = vst [vmem:[#allocation2 + $0xb0] sm:$0xff] 0.0
          %322 = vst [vmem:[#allocation2 + $0xb8] sm:$0xff] 0.0
        $region44: #{multi_head_attention_forward.3} parent=31 // pred_fallthru
          _
        %v323 = vld [vmem:[#allocation2] sm:$0xff]
        %v324 = vld [vmem:[#allocation2 + $0x8] sm:$0xff]
        %v325 = vld [vmem:[#allocation2 + $0x10] sm:$0xff]
        %v326 = vld [vmem:[#allocation2 + $0x18] sm:$0xff]
        %v327 = vld [vmem:[#allocation2 + $0x20] sm:$0xff]
        %v328 = vld [vmem:[#allocation2 + $0x28] sm:$0xff]
        %v329 = vld [vmem:[#allocation2 + $0x30] sm:$0xff]
        %v330 = vld [vmem:[#allocation2 + $0x38] sm:$0xff]
        %v331 = vld [vmem:[#allocation2 + $0x40] sm:$0xff]
        %v332 = vld [vmem:[#allocation2 + $0x48] sm:$0xff]
        %v333 = vld [vmem:[#allocation2 + $0x50] sm:$0xff]
        %v334 = vld [vmem:[#allocation2 + $0x58] sm:$0xff]
        %v335 = vld [vmem:[#allocation2 + $0x60] sm:$0xff]
        %v336 = vld [vmem:[#allocation2 + $0x68] sm:$0xff]
        %v337 = vld [vmem:[#allocation2 + $0x70] sm:$0xff]
        %v338 = vld [vmem:[#allocation2 + $0x78] sm:$0xff]
        %v339 = vld [vmem:[#allocation2 + $0x80] sm:$0xff]
        %v340 = vld [vmem:[#allocation2 + $0x88] sm:$0xff]
        %v341 = vld [vmem:[#allocation2 + $0x90] sm:$0xff]
        %v342 = vld [vmem:[#allocation2 + $0x98] sm:$0xff]
        %v343 = vld [vmem:[#allocation2 + $0xa0] sm:$0xff]
        %v344 = vld [vmem:[#allocation2 + $0xa8] sm:$0xff]
        %v345 = vld [vmem:[#allocation2 + $0xb0] sm:$0xff]
        %v346 = vld [vmem:[#allocation2 + $0xb8] sm:$0xff]
        %v347 = vld [vmem:[%s287] sm:$0xff]
        %v348 = vld [vmem:[%s287 + $0x8] sm:$0xff]
        %v349 = vld [vmem:[%s287 + $0x10] sm:$0xff]
        %v350 = vld [vmem:[%s287 + $0x18] sm:$0xff]
        %v351 = vld [vmem:[%s287 + $0x20] sm:$0xff]
        %v352 = vld [vmem:[%s287 + $0x28] sm:$0xff]
        %v353 = vld [vmem:[%s287 + $0x30] sm:$0xff]
        %v354 = vld [vmem:[%s287 + $0x38] sm:$0xff]
        %v355 = vld [vmem:[%s232] sm:$0xff]
        %v356 = vld [vmem:[%s232 + $0x8] sm:$0xff]
        %v357 = vld [vmem:[%s232 + $0x10] sm:$0xff]
        %v358 = vld [vmem:[%s232 + $0x18] sm:$0xff]
        %v359 = vld [vmem:[%s232 + $0x20] sm:$0xff]
        %v360 = vld [vmem:[%s232 + $0x28] sm:$0xff]
        %v361 = vld [vmem:[%s232 + $0x30] sm:$0xff]
        %v362 = vld [vmem:[%s232 + $0x38] sm:$0xff]
        %v363 = vld [vmem:[%s232 + $0x40] sm:$0xff]
        %v364 = vld [vmem:[%s232 + $0x48] sm:$0xff]
        %v365 = vld [vmem:[%s232 + $0x50] sm:$0xff]
        %v366 = vld [vmem:[%s232 + $0x58] sm:$0xff]
        %v367 = vld [vmem:[%s232 + $0x60] sm:$0xff]
        %v368 = vld [vmem:[%s232 + $0x68] sm:$0xff]
        %v369 = vld [vmem:[%s232 + $0x70] sm:$0xff]
        %v370 = vld [vmem:[%s232 + $0x78] sm:$0xff]
        %v371 = vld [vmem:[%s232 + $0x80] sm:$0xff]
        %v372 = vld [vmem:[%s232 + $0x88] sm:$0xff]
        %v373 = vld [vmem:[%s232 + $0x90] sm:$0xff]
        %v374 = vld [vmem:[%s232 + $0x98] sm:$0xff]
        %v375 = vld [vmem:[%s232 + $0xa0] sm:$0xff]
        %v376 = vld [vmem:[%s232 + $0xa8] sm:$0xff]
        %v377 = vld [vmem:[%s232 + $0xb0] sm:$0xff]
        %v378 = vld [vmem:[%s232 + $0xb8] sm:$0xff]
        %v379 = vld [vmem:[%s232 + $0xc0] sm:$0xff]
        %v380 = vld [vmem:[%s232 + $0xc8] sm:$0xff]
        %v381 = vld [vmem:[%s232 + $0xd0] sm:$0xff]
        %v382 = vld [vmem:[%s232 + $0xd8] sm:$0xff]
        %v383 = vld [vmem:[%s232 + $0xe0] sm:$0xff]
        %v384 = vld [vmem:[%s232 + $0xe8] sm:$0xff]
        %v385 = vld [vmem:[%s232 + $0xf0] sm:$0xff]
        %v386 = vld [vmem:[%s232 + $0xf8] sm:$0xff]
        %v387 = vld [vmem:[%s232 + $0x100] sm:$0xff]
        %v388 = vld [vmem:[%s232 + $0x108] sm:$0xff]
        %v389 = vld [vmem:[%s232 + $0x110] sm:$0xff]
        %v390 = vld [vmem:[%s232 + $0x118] sm:$0xff]
        %v391 = vld [vmem:[%s232 + $0x120] sm:$0xff]
        %v392 = vld [vmem:[%s232 + $0x128] sm:$0xff]
        %v393 = vld [vmem:[%s232 + $0x130] sm:$0xff]
        %v394 = vld [vmem:[%s232 + $0x138] sm:$0xff]
        %v395 = vld [vmem:[%s232 + $0x140] sm:$0xff]
        %v396 = vld [vmem:[%s232 + $0x148] sm:$0xff]
        %v397 = vld [vmem:[%s232 + $0x150] sm:$0xff]
        %v398 = vld [vmem:[%s232 + $0x158] sm:$0xff]
        %v399 = vld [vmem:[%s232 + $0x160] sm:$0xff]
        %v400 = vld [vmem:[%s232 + $0x168] sm:$0xff]
        %v401 = vld [vmem:[%s232 + $0x170] sm:$0xff]
        %v402 = vld [vmem:[%s232 + $0x178] sm:$0xff]
        %v403 = vld [vmem:[%s232 + $0x180] sm:$0xff]
        %v404 = vld [vmem:[%s232 + $0x188] sm:$0xff]
        %v405 = vld [vmem:[%s232 + $0x190] sm:$0xff]
        %v406 = vld [vmem:[%s232 + $0x198] sm:$0xff]
        %v407 = vld [vmem:[%s232 + $0x1a0] sm:$0xff]
        %v408 = vld [vmem:[%s232 + $0x1a8] sm:$0xff]
        %v409 = vld [vmem:[%s232 + $0x1b0] sm:$0xff]
        %v410 = vld [vmem:[%s232 + $0x1b8] sm:$0xff]
        %v411 = vld [vmem:[%s232 + $0x1c0] sm:$0xff]
        %v412 = vld [vmem:[%s232 + $0x1c8] sm:$0xff]
        %v413 = vld [vmem:[%s232 + $0x1d0] sm:$0xff]
        %v414 = vld [vmem:[%s232 + $0x1d8] sm:$0xff]
        %v415 = vld [vmem:[%s232 + $0x1e0] sm:$0xff]
        %v416 = vld [vmem:[%s232 + $0x1e8] sm:$0xff]
        %v417 = vld [vmem:[%s232 + $0x1f0] sm:$0xff]
        %v418 = vld [vmem:[%s232 + $0x1f8] sm:$0xff]
        %v419 = vld [vmem:[%s232 + $0x200] sm:$0xff]
        %v420 = vld [vmem:[%s232 + $0x208] sm:$0xff]
        %v421 = vld [vmem:[%s232 + $0x210] sm:$0xff]
        %v422 = vld [vmem:[%s232 + $0x218] sm:$0xff]
        %v423 = vld [vmem:[%s232 + $0x220] sm:$0xff]
        %v424 = vld [vmem:[%s232 + $0x228] sm:$0xff]
        %v425 = vld [vmem:[%s232 + $0x230] sm:$0xff]
        %v426 = vld [vmem:[%s232 + $0x238] sm:$0xff]
        %v427 = vld [vmem:[%s232 + $0x240] sm:$0xff]
        %v428 = vld [vmem:[%s232 + $0x248] sm:$0xff]
        %v429 = vld [vmem:[%s232 + $0x250] sm:$0xff]
        %v430 = vld [vmem:[%s232 + $0x258] sm:$0xff]
        %v431 = vld [vmem:[%s232 + $0x260] sm:$0xff]
        %v432 = vld [vmem:[%s232 + $0x268] sm:$0xff]
        %v433 = vld [vmem:[%s232 + $0x270] sm:$0xff]
        %v434 = vld [vmem:[%s232 + $0x278] sm:$0xff]
        %v435 = vld [vmem:[%s232 + $0x280] sm:$0xff]
        %v436 = vld [vmem:[%s232 + $0x288] sm:$0xff]
        %v437 = vld [vmem:[%s232 + $0x290] sm:$0xff]
        %v438 = vld [vmem:[%s232 + $0x298] sm:$0xff]
        %v439 = vld [vmem:[%s232 + $0x2a0] sm:$0xff]
        %v440 = vld [vmem:[%s232 + $0x2a8] sm:$0xff]
        %v441 = vld [vmem:[%s232 + $0x2b0] sm:$0xff]
        %v442 = vld [vmem:[%s232 + $0x2b8] sm:$0xff]
        %v443 = vld [vmem:[%s232 + $0x2c0] sm:$0xff]
        %v444 = vld [vmem:[%s232 + $0x2c8] sm:$0xff]
        %v445 = vld [vmem:[%s232 + $0x2d0] sm:$0xff]
        %v446 = vld [vmem:[%s232 + $0x2d8] sm:$0xff]
        %v447 = vld [vmem:[%s232 + $0x2e0] sm:$0xff]
        %v448 = vld [vmem:[%s232 + $0x2e8] sm:$0xff]
        %v449 = vld [vmem:[%s232 + $0x2f0] sm:$0xff]
        %v450 = vld [vmem:[%s232 + $0x2f8] sm:$0xff]
        %v451 = vld [vmem:[%s232 + $0x300] sm:$0xff]
        %v452 = vld [vmem:[%s232 + $0x308] sm:$0xff]
        %v453 = vld [vmem:[%s232 + $0x310] sm:$0xff]
        %v454 = vld [vmem:[%s232 + $0x318] sm:$0xff]
        %v455 = vld [vmem:[%s232 + $0x320] sm:$0xff]
        %v456 = vld [vmem:[%s232 + $0x328] sm:$0xff]
        %v457 = vld [vmem:[%s232 + $0x330] sm:$0xff]
        %v458 = vld [vmem:[%s232 + $0x338] sm:$0xff]
        %v459 = vld [vmem:[%s232 + $0x340] sm:$0xff]
        %v460 = vld [vmem:[%s232 + $0x348] sm:$0xff]
        %v461 = vld [vmem:[%s232 + $0x350] sm:$0xff]
        %v462 = vld [vmem:[%s232 + $0x358] sm:$0xff]
        %v463 = vld [vmem:[%s232 + $0x360] sm:$0xff]
        %v464 = vld [vmem:[%s232 + $0x368] sm:$0xff]
        %v465 = vld [vmem:[%s232 + $0x370] sm:$0xff]
        %v466 = vld [vmem:[%s232 + $0x378] sm:$0xff]
        %v467 = vld [vmem:[%s232 + $0x380] sm:$0xff]
        %v468 = vld [vmem:[%s232 + $0x388] sm:$0xff]
        %v469 = vld [vmem:[%s232 + $0x390] sm:$0xff]
        %v470 = vld [vmem:[%s232 + $0x398] sm:$0xff]
        %v471 = vld [vmem:[%s232 + $0x3a0] sm:$0xff]
        %v472 = vld [vmem:[%s232 + $0x3a8] sm:$0xff]
        %v473 = vld [vmem:[%s232 + $0x3b0] sm:$0xff]
        %v474 = vld [vmem:[%s232 + $0x3b8] sm:$0xff]
        %v475 = vld [vmem:[%s232 + $0x3c0] sm:$0xff]
        %v476 = vld [vmem:[%s232 + $0x3c8] sm:$0xff]
        %v477 = vld [vmem:[%s232 + $0x3d0] sm:$0xff]
        %v478 = vld [vmem:[%s232 + $0x3d8] sm:$0xff]
        %v479 = vld [vmem:[%s232 + $0x3e0] sm:$0xff]
        %v480 = vld [vmem:[%s232 + $0x3e8] sm:$0xff]
        %v481 = vld [vmem:[%s232 + $0x3f0] sm:$0xff]
        %v482 = vld [vmem:[%s232 + $0x3f8] sm:$0xff]
        %v483 = vld [vmem:[%s232 + $0x400] sm:$0xff]
        %v484 = vld [vmem:[%s232 + $0x408] sm:$0xff]
        %v485 = vld [vmem:[%s232 + $0x410] sm:$0xff]
        %v486 = vld [vmem:[%s232 + $0x418] sm:$0xff]
        %v487 = vld [vmem:[%s232 + $0x420] sm:$0xff]
        %v488 = vld [vmem:[%s232 + $0x428] sm:$0xff]
        %v489 = vld [vmem:[%s232 + $0x430] sm:$0xff]
        %v490 = vld [vmem:[%s232 + $0x438] sm:$0xff]
        %v491 = vld [vmem:[%s232 + $0x440] sm:$0xff]
        %v492 = vld [vmem:[%s232 + $0x448] sm:$0xff]
        %v493 = vld [vmem:[%s232 + $0x450] sm:$0xff]
        %v494 = vld [vmem:[%s232 + $0x458] sm:$0xff]
        %v495 = vld [vmem:[%s232 + $0x460] sm:$0xff]
        %v496 = vld [vmem:[%s232 + $0x468] sm:$0xff]
        %v497 = vld [vmem:[%s232 + $0x470] sm:$0xff]
        %v498 = vld [vmem:[%s232 + $0x478] sm:$0xff]
        %v499 = vld [vmem:[%s232 + $0x480] sm:$0xff]
        %v500 = vld [vmem:[%s232 + $0x488] sm:$0xff]
        %v501 = vld [vmem:[%s232 + $0x490] sm:$0xff]
        %v502 = vld [vmem:[%s232 + $0x498] sm:$0xff]
        %v503 = vld [vmem:[%s232 + $0x4a0] sm:$0xff]
        %v504 = vld [vmem:[%s232 + $0x4a8] sm:$0xff]
        %v505 = vld [vmem:[%s232 + $0x4b0] sm:$0xff]
        %v506 = vld [vmem:[%s232 + $0x4b8] sm:$0xff]
        %v507 = vld [vmem:[%s232 + $0x4c0] sm:$0xff]
        %v508 = vld [vmem:[%s232 + $0x4c8] sm:$0xff]
        %v509 = vld [vmem:[%s232 + $0x4d0] sm:$0xff]
        %v510 = vld [vmem:[%s232 + $0x4d8] sm:$0xff]
        %v511 = vld [vmem:[%s232 + $0x4e0] sm:$0xff]
        %v512 = vld [vmem:[%s232 + $0x4e8] sm:$0xff]
        %v513 = vld [vmem:[%s232 + $0x4f0] sm:$0xff]
        %v514 = vld [vmem:[%s232 + $0x4f8] sm:$0xff]
        %v515 = vld [vmem:[%s232 + $0x500] sm:$0xff]
        %v516 = vld [vmem:[%s232 + $0x508] sm:$0xff]
        %v517 = vld [vmem:[%s232 + $0x510] sm:$0xff]
        %v518 = vld [vmem:[%s232 + $0x518] sm:$0xff]
        %v519 = vld [vmem:[%s232 + $0x520] sm:$0xff]
        %v520 = vld [vmem:[%s232 + $0x528] sm:$0xff]
        %v521 = vld [vmem:[%s232 + $0x530] sm:$0xff]
        %v522 = vld [vmem:[%s232 + $0x538] sm:$0xff]
        %v523 = vld [vmem:[%s232 + $0x540] sm:$0xff]
        %v524 = vld [vmem:[%s232 + $0x548] sm:$0xff]
        %v525 = vld [vmem:[%s232 + $0x550] sm:$0xff]
        %v526 = vld [vmem:[%s232 + $0x558] sm:$0xff]
        %v527 = vld [vmem:[%s232 + $0x560] sm:$0xff]
        %v528 = vld [vmem:[%s232 + $0x568] sm:$0xff]
        %v529 = vld [vmem:[%s232 + $0x570] sm:$0xff]
        %v530 = vld [vmem:[%s232 + $0x578] sm:$0xff]
        %v531 = vld [vmem:[%s232 + $0x580] sm:$0xff]
        %v532 = vld [vmem:[%s232 + $0x588] sm:$0xff]
        %v533 = vld [vmem:[%s232 + $0x590] sm:$0xff]
        %v534 = vld [vmem:[%s232 + $0x598] sm:$0xff]
        %v535 = vld [vmem:[%s232 + $0x5a0] sm:$0xff]
        %v536 = vld [vmem:[%s232 + $0x5a8] sm:$0xff]
        %v537 = vld [vmem:[%s232 + $0x5b0] sm:$0xff]
        %v538 = vld [vmem:[%s232 + $0x5b8] sm:$0xff]
        %v539 = vld [vmem:[%s232 + $0x5c0] sm:$0xff]
        %v540 = vld [vmem:[%s232 + $0x5c8] sm:$0xff]
        %v541 = vld [vmem:[%s232 + $0x5d0] sm:$0xff]
        %v542 = vld [vmem:[%s232 + $0x5d8] sm:$0xff]
        %v543 = vld [vmem:[%s232 + $0x5e0] sm:$0xff]
        %v544 = vld [vmem:[%s232 + $0x5e8] sm:$0xff]
        %v545 = vld [vmem:[%s232 + $0x5f0] sm:$0xff]
        %v546 = vld [vmem:[%s232 + $0x5f8] sm:$0xff]
        %v555 = vunpack.c.l.b16 %v347
        %v556 = vunpack.c.h.b16 %v347
        %v557 = vunpack.c.l.b16 %v348
        %v558 = vunpack.c.h.b16 %v348
        %v559 = vunpack.c.l.b16 %v349
        %v560 = vunpack.c.h.b16 %v349
        %v561 = vunpack.c.l.b16 %v350
        %v562 = vunpack.c.h.b16 %v350
        %v563 = vunpack.c.l.b16 %v351
        %v564 = vunpack.c.h.b16 %v351
        %v565 = vunpack.c.l.b16 %v352
        %v566 = vunpack.c.h.b16 %v352
        %v567 = vunpack.c.l.b16 %v353
        %v568 = vunpack.c.h.b16 %v353
        %v569 = vunpack.c.l.b16 %v354
        %v570 = vunpack.c.h.b16 %v354
        %v571 = vpack.c.b16 %v559, %v555
        %v572 = vpack.c.b16 %v560, %v556
        %v573 = vpack.c.b16 %v561, %v557
        %v574 = vpack.c.b16 %v562, %v558
        %v575 = vpack.c.b16 %v567, %v563
        %v576 = vpack.c.b16 %v568, %v564
        %v577 = vpack.c.b16 %v569, %v565
        %v578 = vpack.c.b16 %v570, %v566
        %v779 = vunpack.c.l.b16 %v355
        %v780 = vunpack.c.h.b16 %v355
        %v781 = vunpack.c.l.b16 %v356
        %v782 = vunpack.c.h.b16 %v356
        %v783 = vunpack.c.l.b16 %v357
        %v784 = vunpack.c.h.b16 %v357
        %v785 = vunpack.c.l.b16 %v358
        %v786 = vunpack.c.h.b16 %v358
        %v787 = vunpack.c.l.b16 %v359
        %v788 = vunpack.c.h.b16 %v359
        %v789 = vunpack.c.l.b16 %v360
        %v790 = vunpack.c.h.b16 %v360
        %v791 = vunpack.c.l.b16 %v361
        %v792 = vunpack.c.h.b16 %v361
        %v793 = vunpack.c.l.b16 %v362
        %v794 = vunpack.c.h.b16 %v362
        %v795 = vunpack.c.l.b16 %v363
        %v796 = vunpack.c.h.b16 %v363
        %v797 = vunpack.c.l.b16 %v364
        %v798 = vunpack.c.h.b16 %v364
        %v799 = vunpack.c.l.b16 %v365
        %v800 = vunpack.c.h.b16 %v365
        %v801 = vunpack.c.l.b16 %v366
        %v802 = vunpack.c.h.b16 %v366
        %v803 = vunpack.c.l.b16 %v367
        %v804 = vunpack.c.h.b16 %v367
        %v805 = vunpack.c.l.b16 %v368
        %v806 = vunpack.c.h.b16 %v368
        %v807 = vunpack.c.l.b16 %v369
        %v808 = vunpack.c.h.b16 %v369
        %v809 = vunpack.c.l.b16 %v370
        %v810 = vunpack.c.h.b16 %v370
        %v811 = vunpack.c.l.b16 %v371
        %v812 = vunpack.c.h.b16 %v371
        %v813 = vunpack.c.l.b16 %v372
        %v814 = vunpack.c.h.b16 %v372
        %v815 = vunpack.c.l.b16 %v373
        %v816 = vunpack.c.h.b16 %v373
        %v817 = vunpack.c.l.b16 %v374
        %v818 = vunpack.c.h.b16 %v374
        %v819 = vunpack.c.l.b16 %v375
        %v820 = vunpack.c.h.b16 %v375
        %v821 = vunpack.c.l.b16 %v376
        %v822 = vunpack.c.h.b16 %v376
        %v823 = vunpack.c.l.b16 %v377
        %v824 = vunpack.c.h.b16 %v377
        %v825 = vunpack.c.l.b16 %v378
        %v826 = vunpack.c.h.b16 %v378
        %v827 = vunpack.c.l.b16 %v379
        %v828 = vunpack.c.h.b16 %v379
        %v829 = vunpack.c.l.b16 %v380
        %v830 = vunpack.c.h.b16 %v380
        %v831 = vunpack.c.l.b16 %v381
        %v832 = vunpack.c.h.b16 %v381
        %v833 = vunpack.c.l.b16 %v382
        %v834 = vunpack.c.h.b16 %v382
        %v835 = vunpack.c.l.b16 %v383
        %v836 = vunpack.c.h.b16 %v383
        %v837 = vunpack.c.l.b16 %v384
        %v838 = vunpack.c.h.b16 %v384
        %v839 = vunpack.c.l.b16 %v385
        %v840 = vunpack.c.h.b16 %v385
        %v841 = vunpack.c.l.b16 %v386
        %v842 = vunpack.c.h.b16 %v386
        %v843 = vunpack.c.l.b16 %v387
        %v844 = vunpack.c.h.b16 %v387
        %v845 = vunpack.c.l.b16 %v388
        %v846 = vunpack.c.h.b16 %v388
        %v847 = vunpack.c.l.b16 %v389
        %v848 = vunpack.c.h.b16 %v389
        %v849 = vunpack.c.l.b16 %v390
        %v850 = vunpack.c.h.b16 %v390
        %v851 = vunpack.c.l.b16 %v391
        %v852 = vunpack.c.h.b16 %v391
        %v853 = vunpack.c.l.b16 %v392
        %v854 = vunpack.c.h.b16 %v392
        %v855 = vunpack.c.l.b16 %v393
        %v856 = vunpack.c.h.b16 %v393
        %v857 = vunpack.c.l.b16 %v394
        %v858 = vunpack.c.h.b16 %v394
        %v859 = vunpack.c.l.b16 %v395
        %v860 = vunpack.c.h.b16 %v395
        %v861 = vunpack.c.l.b16 %v396
        %v862 = vunpack.c.h.b16 %v396
        %v863 = vunpack.c.l.b16 %v397
        %v864 = vunpack.c.h.b16 %v397
        %v865 = vunpack.c.l.b16 %v398
        %v866 = vunpack.c.h.b16 %v398
        %v867 = vunpack.c.l.b16 %v399
        %v868 = vunpack.c.h.b16 %v399
        %v869 = vunpack.c.l.b16 %v400
        %v870 = vunpack.c.h.b16 %v400
        %v871 = vunpack.c.l.b16 %v401
        %v872 = vunpack.c.h.b16 %v401
        %v873 = vunpack.c.l.b16 %v402
        %v874 = vunpack.c.h.b16 %v402
        %v875 = vunpack.c.l.b16 %v403
        %v876 = vunpack.c.h.b16 %v403
        %v877 = vunpack.c.l.b16 %v404
        %v878 = vunpack.c.h.b16 %v404
        %v879 = vunpack.c.l.b16 %v405
        %v880 = vunpack.c.h.b16 %v405
        %v881 = vunpack.c.l.b16 %v406
        %v882 = vunpack.c.h.b16 %v406
        %v883 = vunpack.c.l.b16 %v407
        %v884 = vunpack.c.h.b16 %v407
        %v885 = vunpack.c.l.b16 %v408
        %v886 = vunpack.c.h.b16 %v408
        %v887 = vunpack.c.l.b16 %v409
        %v888 = vunpack.c.h.b16 %v409
        %v889 = vunpack.c.l.b16 %v410
        %v890 = vunpack.c.h.b16 %v410
        %v891 = vunpack.c.l.b16 %v411
        %v892 = vunpack.c.h.b16 %v411
        %v893 = vunpack.c.l.b16 %v412
        %v894 = vunpack.c.h.b16 %v412
        %v895 = vunpack.c.l.b16 %v413
        %v896 = vunpack.c.h.b16 %v413
        %v897 = vunpack.c.l.b16 %v414
        %v898 = vunpack.c.h.b16 %v414
        %v899 = vunpack.c.l.b16 %v415
        %v900 = vunpack.c.h.b16 %v415
        %v901 = vunpack.c.l.b16 %v416
        %v902 = vunpack.c.h.b16 %v416
        %v903 = vunpack.c.l.b16 %v417
        %v904 = vunpack.c.h.b16 %v417
        %v905 = vunpack.c.l.b16 %v418
        %v906 = vunpack.c.h.b16 %v418
        %v907 = vunpack.c.l.b16 %v419
        %v908 = vunpack.c.h.b16 %v419
        %v909 = vunpack.c.l.b16 %v420
        %v910 = vunpack.c.h.b16 %v420
        %v911 = vunpack.c.l.b16 %v421
        %v912 = vunpack.c.h.b16 %v421
        %v913 = vunpack.c.l.b16 %v422
        %v914 = vunpack.c.h.b16 %v422
        %v915 = vunpack.c.l.b16 %v423
        %v916 = vunpack.c.h.b16 %v423
        %v917 = vunpack.c.l.b16 %v424
        %v918 = vunpack.c.h.b16 %v424
        %v919 = vunpack.c.l.b16 %v425
        %v920 = vunpack.c.h.b16 %v425
        %v921 = vunpack.c.l.b16 %v426
        %v922 = vunpack.c.h.b16 %v426
        %v923 = vunpack.c.l.b16 %v427
        %v924 = vunpack.c.h.b16 %v427
        %v925 = vunpack.c.l.b16 %v428
        %v926 = vunpack.c.h.b16 %v428
        %v927 = vunpack.c.l.b16 %v429
        %v928 = vunpack.c.h.b16 %v429
        %v929 = vunpack.c.l.b16 %v430
        %v930 = vunpack.c.h.b16 %v430
        %v931 = vunpack.c.l.b16 %v431
        %v932 = vunpack.c.h.b16 %v431
        %v933 = vunpack.c.l.b16 %v432
        %v934 = vunpack.c.h.b16 %v432
        %v935 = vunpack.c.l.b16 %v433
        %v936 = vunpack.c.h.b16 %v433
        %v937 = vunpack.c.l.b16 %v434
        %v938 = vunpack.c.h.b16 %v434
        %v939 = vunpack.c.l.b16 %v435
        %v940 = vunpack.c.h.b16 %v435
        %v941 = vunpack.c.l.b16 %v436
        %v942 = vunpack.c.h.b16 %v436
        %v943 = vunpack.c.l.b16 %v437
        %v944 = vunpack.c.h.b16 %v437
        %v945 = vunpack.c.l.b16 %v438
        %v946 = vunpack.c.h.b16 %v438
        %v947 = vunpack.c.l.b16 %v439
        %v948 = vunpack.c.h.b16 %v439
        %v949 = vunpack.c.l.b16 %v440
        %v950 = vunpack.c.h.b16 %v440
        %v951 = vunpack.c.l.b16 %v441
        %v952 = vunpack.c.h.b16 %v441
        %v953 = vunpack.c.l.b16 %v442
        %v954 = vunpack.c.h.b16 %v442
        %v955 = vunpack.c.l.b16 %v443
        %v956 = vunpack.c.h.b16 %v443
        %v957 = vunpack.c.l.b16 %v444
        %v958 = vunpack.c.h.b16 %v444
        %v959 = vunpack.c.l.b16 %v445
        %v960 = vunpack.c.h.b16 %v445
        %v961 = vunpack.c.l.b16 %v446
        %v962 = vunpack.c.h.b16 %v446
        %v963 = vunpack.c.l.b16 %v447
        %v964 = vunpack.c.h.b16 %v447
        %v965 = vunpack.c.l.b16 %v448
        %v966 = vunpack.c.h.b16 %v448
        %v967 = vunpack.c.l.b16 %v449
        %v968 = vunpack.c.h.b16 %v449
        %v969 = vunpack.c.l.b16 %v450
        %v970 = vunpack.c.h.b16 %v450
        %v971 = vunpack.c.l.b16 %v451
        %v972 = vunpack.c.h.b16 %v451
        %v973 = vunpack.c.l.b16 %v452
        %v974 = vunpack.c.h.b16 %v452
        %v975 = vunpack.c.l.b16 %v453
        %v976 = vunpack.c.h.b16 %v453
        %v977 = vunpack.c.l.b16 %v454
        %v978 = vunpack.c.h.b16 %v454
        %v979 = vunpack.c.l.b16 %v455
        %v980 = vunpack.c.h.b16 %v455
        %v981 = vunpack.c.l.b16 %v456
        %v982 = vunpack.c.h.b16 %v456
        %v983 = vunpack.c.l.b16 %v457
        %v984 = vunpack.c.h.b16 %v457
        %v985 = vunpack.c.l.b16 %v458
        %v986 = vunpack.c.h.b16 %v458
        %v987 = vunpack.c.l.b16 %v459
        %v988 = vunpack.c.h.b16 %v459
        %v989 = vunpack.c.l.b16 %v460
        %v990 = vunpack.c.h.b16 %v460
        %v991 = vunpack.c.l.b16 %v461
        %v992 = vunpack.c.h.b16 %v461
        %v993 = vunpack.c.l.b16 %v462
        %v994 = vunpack.c.h.b16 %v462
        %v995 = vunpack.c.l.b16 %v463
        %v996 = vunpack.c.h.b16 %v463
        %v997 = vunpack.c.l.b16 %v464
        %v998 = vunpack.c.h.b16 %v464
        %v999 = vunpack.c.l.b16 %v465
        %v1000 = vunpack.c.h.b16 %v465
        %v1001 = vunpack.c.l.b16 %v466
        %v1002 = vunpack.c.h.b16 %v466
        %v1003 = vunpack.c.l.b16 %v467
        %v1004 = vunpack.c.h.b16 %v467
        %v1005 = vunpack.c.l.b16 %v468
        %v1006 = vunpack.c.h.b16 %v468
        %v1007 = vunpack.c.l.b16 %v469
        %v1008 = vunpack.c.h.b16 %v469
        %v1009 = vunpack.c.l.b16 %v470
        %v1010 = vunpack.c.h.b16 %v470
        %v1011 = vunpack.c.l.b16 %v471
        %v1012 = vunpack.c.h.b16 %v471
        %v1013 = vunpack.c.l.b16 %v472
        %v1014 = vunpack.c.h.b16 %v472
        %v1015 = vunpack.c.l.b16 %v473
        %v1016 = vunpack.c.h.b16 %v473
        %v1017 = vunpack.c.l.b16 %v474
        %v1018 = vunpack.c.h.b16 %v474
        %v1019 = vunpack.c.l.b16 %v475
        %v1020 = vunpack.c.h.b16 %v475
        %v1021 = vunpack.c.l.b16 %v476
        %v1022 = vunpack.c.h.b16 %v476
        %v1023 = vunpack.c.l.b16 %v477
        %v1024 = vunpack.c.h.b16 %v477
        %v1025 = vunpack.c.l.b16 %v478
        %v1026 = vunpack.c.h.b16 %v478
        %v1027 = vunpack.c.l.b16 %v479
        %v1028 = vunpack.c.h.b16 %v479
        %v1029 = vunpack.c.l.b16 %v480
        %v1030 = vunpack.c.h.b16 %v480
        %v1031 = vunpack.c.l.b16 %v481
        %v1032 = vunpack.c.h.b16 %v481
        %v1033 = vunpack.c.l.b16 %v482
        %v1034 = vunpack.c.h.b16 %v482
        %v1035 = vunpack.c.l.b16 %v483
        %v1036 = vunpack.c.h.b16 %v483
        %v1037 = vunpack.c.l.b16 %v484
        %v1038 = vunpack.c.h.b16 %v484
        %v1039 = vunpack.c.l.b16 %v485
        %v1040 = vunpack.c.h.b16 %v485
        %v1041 = vunpack.c.l.b16 %v486
        %v1042 = vunpack.c.h.b16 %v486
        %v1043 = vunpack.c.l.b16 %v487
        %v1044 = vunpack.c.h.b16 %v487
        %v1045 = vunpack.c.l.b16 %v488
        %v1046 = vunpack.c.h.b16 %v488
        %v1047 = vunpack.c.l.b16 %v489
        %v1048 = vunpack.c.h.b16 %v489
        %v1049 = vunpack.c.l.b16 %v490
        %v1050 = vunpack.c.h.b16 %v490
        %v1051 = vunpack.c.l.b16 %v491
        %v1052 = vunpack.c.h.b16 %v491
        %v1053 = vunpack.c.l.b16 %v492
        %v1054 = vunpack.c.h.b16 %v492
        %v1055 = vunpack.c.l.b16 %v493
        %v1056 = vunpack.c.h.b16 %v493
        %v1057 = vunpack.c.l.b16 %v494
        %v1058 = vunpack.c.h.b16 %v494
        %v1059 = vunpack.c.l.b16 %v495
        %v1060 = vunpack.c.h.b16 %v495
        %v1061 = vunpack.c.l.b16 %v496
        %v1062 = vunpack.c.h.b16 %v496
        %v1063 = vunpack.c.l.b16 %v497
        %v1064 = vunpack.c.h.b16 %v497
        %v1065 = vunpack.c.l.b16 %v498
        %v1066 = vunpack.c.h.b16 %v498
        %v1067 = vunpack.c.l.b16 %v499
        %v1068 = vunpack.c.h.b16 %v499
        %v1069 = vunpack.c.l.b16 %v500
        %v1070 = vunpack.c.h.b16 %v500
        %v1071 = vunpack.c.l.b16 %v501
        %v1072 = vunpack.c.h.b16 %v501
        %v1073 = vunpack.c.l.b16 %v502
        %v1074 = vunpack.c.h.b16 %v502
        %v1075 = vunpack.c.l.b16 %v503
        %v1076 = vunpack.c.h.b16 %v503
        %v1077 = vunpack.c.l.b16 %v504
        %v1078 = vunpack.c.h.b16 %v504
        %v1079 = vunpack.c.l.b16 %v505
        %v1080 = vunpack.c.h.b16 %v505
        %v1081 = vunpack.c.l.b16 %v506
        %v1082 = vunpack.c.h.b16 %v506
        %v1083 = vunpack.c.l.b16 %v507
        %v1084 = vunpack.c.h.b16 %v507
        %v1085 = vunpack.c.l.b16 %v508
        %v1086 = vunpack.c.h.b16 %v508
        %v1087 = vunpack.c.l.b16 %v509
        %v1088 = vunpack.c.h.b16 %v509
        %v1089 = vunpack.c.l.b16 %v510
        %v1090 = vunpack.c.h.b16 %v510
        %v1091 = vunpack.c.l.b16 %v511
        %v1092 = vunpack.c.h.b16 %v511
        %v1093 = vunpack.c.l.b16 %v512
        %v1094 = vunpack.c.h.b16 %v512
        %v1095 = vunpack.c.l.b16 %v513
        %v1096 = vunpack.c.h.b16 %v513
        %v1097 = vunpack.c.l.b16 %v514
        %v1098 = vunpack.c.h.b16 %v514
        %v1099 = vunpack.c.l.b16 %v515
        %v1100 = vunpack.c.h.b16 %v515
        %v1101 = vunpack.c.l.b16 %v516
        %v1102 = vunpack.c.h.b16 %v516
        %v1103 = vunpack.c.l.b16 %v517
        %v1104 = vunpack.c.h.b16 %v517
        %v1105 = vunpack.c.l.b16 %v518
        %v1106 = vunpack.c.h.b16 %v518
        %v1107 = vunpack.c.l.b16 %v519
        %v1108 = vunpack.c.h.b16 %v519
        %v1109 = vunpack.c.l.b16 %v520
        %v1110 = vunpack.c.h.b16 %v520
        %v1111 = vunpack.c.l.b16 %v521
        %v1112 = vunpack.c.h.b16 %v521
        %v1113 = vunpack.c.l.b16 %v522
        %v1114 = vunpack.c.h.b16 %v522
        %v1115 = vunpack.c.l.b16 %v523
        %v1116 = vunpack.c.h.b16 %v523
        %v1117 = vunpack.c.l.b16 %v524
        %v1118 = vunpack.c.h.b16 %v524
        %v1119 = vunpack.c.l.b16 %v525
        %v1120 = vunpack.c.h.b16 %v525
        %v1121 = vunpack.c.l.b16 %v526
        %v1122 = vunpack.c.h.b16 %v526
        %v1123 = vunpack.c.l.b16 %v527
        %v1124 = vunpack.c.h.b16 %v527
        %v1125 = vunpack.c.l.b16 %v528
        %v1126 = vunpack.c.h.b16 %v528
        %v1127 = vunpack.c.l.b16 %v529
        %v1128 = vunpack.c.h.b16 %v529
        %v1129 = vunpack.c.l.b16 %v530
        %v1130 = vunpack.c.h.b16 %v530
        %v1131 = vunpack.c.l.b16 %v531
        %v1132 = vunpack.c.h.b16 %v531
        %v1133 = vunpack.c.l.b16 %v532
        %v1134 = vunpack.c.h.b16 %v532
        %v1135 = vunpack.c.l.b16 %v533
        %v1136 = vunpack.c.h.b16 %v533
        %v1137 = vunpack.c.l.b16 %v534
        %v1138 = vunpack.c.h.b16 %v534
        %v1139 = vunpack.c.l.b16 %v535
        %v1140 = vunpack.c.h.b16 %v535
        %v1141 = vunpack.c.l.b16 %v536
        %v1142 = vunpack.c.h.b16 %v536
        %v1143 = vunpack.c.l.b16 %v537
        %v1144 = vunpack.c.h.b16 %v537
        %v1145 = vunpack.c.l.b16 %v538
        %v1146 = vunpack.c.h.b16 %v538
        %v1147 = vunpack.c.l.b16 %v539
        %v1148 = vunpack.c.h.b16 %v539
        %v1149 = vunpack.c.l.b16 %v540
        %v1150 = vunpack.c.h.b16 %v540
        %v1151 = vunpack.c.l.b16 %v541
        %v1152 = vunpack.c.h.b16 %v541
        %v1153 = vunpack.c.l.b16 %v542
        %v1154 = vunpack.c.h.b16 %v542
        %v1155 = vunpack.c.l.b16 %v543
        %v1156 = vunpack.c.h.b16 %v543
        %v1157 = vunpack.c.l.b16 %v544
        %v1158 = vunpack.c.h.b16 %v544
        %v1159 = vunpack.c.l.b16 %v545
        %v1160 = vunpack.c.h.b16 %v545
        %v1161 = vunpack.c.l.b16 %v546
        %v1162 = vunpack.c.h.b16 %v546
        %v1163 = vpack.c.b16 %v785, %v779
        %v1164 = vpack.c.b16 %v786, %v780
        %v1165 = vpack.c.b16 %v787, %v781
        %v1166 = vpack.c.b16 %v788, %v782
        %v1167 = vpack.c.b16 %v789, %v783
        %v1168 = vpack.c.b16 %v790, %v784
        %v1169 = vpack.c.b16 %v797, %v791
        %v1170 = vpack.c.b16 %v798, %v792
        %v1171 = vpack.c.b16 %v799, %v793
        %v1172 = vpack.c.b16 %v800, %v794
        %v1173 = vpack.c.b16 %v801, %v795
        %v1174 = vpack.c.b16 %v802, %v796
        %v1175 = vpack.c.b16 %v809, %v803
        %v1176 = vpack.c.b16 %v810, %v804
        %v1177 = vpack.c.b16 %v811, %v805
        %v1178 = vpack.c.b16 %v812, %v806
        %v1179 = vpack.c.b16 %v813, %v807
        %v1180 = vpack.c.b16 %v814, %v808
        %v1181 = vpack.c.b16 %v821, %v815
        %v1182 = vpack.c.b16 %v822, %v816
        %v1183 = vpack.c.b16 %v823, %v817
        %v1184 = vpack.c.b16 %v824, %v818
        %v1185 = vpack.c.b16 %v825, %v819
        %v1186 = vpack.c.b16 %v826, %v820
        %v1187 = vpack.c.b16 %v833, %v827
        %v1188 = vpack.c.b16 %v834, %v828
        %v1189 = vpack.c.b16 %v835, %v829
        %v1190 = vpack.c.b16 %v836, %v830
        %v1191 = vpack.c.b16 %v837, %v831
        %v1192 = vpack.c.b16 %v838, %v832
        %v1193 = vpack.c.b16 %v845, %v839
        %v1194 = vpack.c.b16 %v846, %v840
        %v1195 = vpack.c.b16 %v847, %v841
        %v1196 = vpack.c.b16 %v848, %v842
        %v1197 = vpack.c.b16 %v849, %v843
        %v1198 = vpack.c.b16 %v850, %v844
        %v1199 = vpack.c.b16 %v857, %v851
        %v1200 = vpack.c.b16 %v858, %v852
        %v1201 = vpack.c.b16 %v859, %v853
        %v1202 = vpack.c.b16 %v860, %v854
        %v1203 = vpack.c.b16 %v861, %v855
        %v1204 = vpack.c.b16 %v862, %v856
        %v1205 = vpack.c.b16 %v869, %v863
        %v1206 = vpack.c.b16 %v870, %v864
        %v1207 = vpack.c.b16 %v871, %v865
        %v1208 = vpack.c.b16 %v872, %v866
        %v1209 = vpack.c.b16 %v873, %v867
        %v1210 = vpack.c.b16 %v874, %v868
        %v1211 = vpack.c.b16 %v881, %v875
        %v1212 = vpack.c.b16 %v882, %v876
        %v1213 = vpack.c.b16 %v883, %v877
        %v1214 = vpack.c.b16 %v884, %v878
        %v1215 = vpack.c.b16 %v885, %v879
        %v1216 = vpack.c.b16 %v886, %v880
        %v1217 = vpack.c.b16 %v893, %v887
        %v1218 = vpack.c.b16 %v894, %v888
        %v1219 = vpack.c.b16 %v895, %v889
        %v1220 = vpack.c.b16 %v896, %v890
        %v1221 = vpack.c.b16 %v897, %v891
        %v1222 = vpack.c.b16 %v898, %v892
        %v1223 = vpack.c.b16 %v905, %v899
        %v1224 = vpack.c.b16 %v906, %v900
        %v1225 = vpack.c.b16 %v907, %v901
        %v1226 = vpack.c.b16 %v908, %v902
        %v1227 = vpack.c.b16 %v909, %v903
        %v1228 = vpack.c.b16 %v910, %v904
        %v1229 = vpack.c.b16 %v917, %v911
        %v1230 = vpack.c.b16 %v918, %v912
        %v1231 = vpack.c.b16 %v919, %v913
        %v1232 = vpack.c.b16 %v920, %v914
        %v1233 = vpack.c.b16 %v921, %v915
        %v1234 = vpack.c.b16 %v922, %v916
        %v1235 = vpack.c.b16 %v929, %v923
        %v1236 = vpack.c.b16 %v930, %v924
        %v1237 = vpack.c.b16 %v931, %v925
        %v1238 = vpack.c.b16 %v932, %v926
        %v1239 = vpack.c.b16 %v933, %v927
        %v1240 = vpack.c.b16 %v934, %v928
        %v1241 = vpack.c.b16 %v941, %v935
        %v1242 = vpack.c.b16 %v942, %v936
        %v1243 = vpack.c.b16 %v943, %v937
        %v1244 = vpack.c.b16 %v944, %v938
        %v1245 = vpack.c.b16 %v945, %v939
        %v1246 = vpack.c.b16 %v946, %v940
        %v1247 = vpack.c.b16 %v953, %v947
        %v1248 = vpack.c.b16 %v954, %v948
        %v1249 = vpack.c.b16 %v955, %v949
        %v1250 = vpack.c.b16 %v956, %v950
        %v1251 = vpack.c.b16 %v957, %v951
        %v1252 = vpack.c.b16 %v958, %v952
        %v1253 = vpack.c.b16 %v965, %v959
        %v1254 = vpack.c.b16 %v966, %v960
        %v1255 = vpack.c.b16 %v967, %v961
        %v1256 = vpack.c.b16 %v968, %v962
        %v1257 = vpack.c.b16 %v969, %v963
        %v1258 = vpack.c.b16 %v970, %v964
        %v1259 = vpack.c.b16 %v977, %v971
        %v1260 = vpack.c.b16 %v978, %v972
        %v1261 = vpack.c.b16 %v979, %v973
        %v1262 = vpack.c.b16 %v980, %v974
        %v1263 = vpack.c.b16 %v981, %v975
        %v1264 = vpack.c.b16 %v982, %v976
        %v1265 = vpack.c.b16 %v989, %v983
        %v1266 = vpack.c.b16 %v990, %v984
        %v1267 = vpack.c.b16 %v991, %v985
        %v1268 = vpack.c.b16 %v992, %v986
        %v1269 = vpack.c.b16 %v993, %v987
        %v1270 = vpack.c.b16 %v994, %v988
        %v1271 = vpack.c.b16 %v1001, %v995
        %v1272 = vpack.c.b16 %v1002, %v996
        %v1273 = vpack.c.b16 %v1003, %v997
        %v1274 = vpack.c.b16 %v1004, %v998
        %v1275 = vpack.c.b16 %v1005, %v999
        %v1276 = vpack.c.b16 %v1006, %v1000
        %v1277 = vpack.c.b16 %v1013, %v1007
        %v1278 = vpack.c.b16 %v1014, %v1008
        %v1279 = vpack.c.b16 %v1015, %v1009
        %v1280 = vpack.c.b16 %v1016, %v1010
        %v1281 = vpack.c.b16 %v1017, %v1011
        %v1282 = vpack.c.b16 %v1018, %v1012
        %v1283 = vpack.c.b16 %v1025, %v1019
        %v1284 = vpack.c.b16 %v1026, %v1020
        %v1285 = vpack.c.b16 %v1027, %v1021
        %v1286 = vpack.c.b16 %v1028, %v1022
        %v1287 = vpack.c.b16 %v1029, %v1023
        %v1288 = vpack.c.b16 %v1030, %v1024
        %v1289 = vpack.c.b16 %v1037, %v1031
        %v1290 = vpack.c.b16 %v1038, %v1032
        %v1291 = vpack.c.b16 %v1039, %v1033
        %v1292 = vpack.c.b16 %v1040, %v1034
        %v1293 = vpack.c.b16 %v1041, %v1035
        %v1294 = vpack.c.b16 %v1042, %v1036
        %v1295 = vpack.c.b16 %v1049, %v1043
        %v1296 = vpack.c.b16 %v1050, %v1044
        %v1297 = vpack.c.b16 %v1051, %v1045
        %v1298 = vpack.c.b16 %v1052, %v1046
        %v1299 = vpack.c.b16 %v1053, %v1047
        %v1300 = vpack.c.b16 %v1054, %v1048
        %v1301 = vpack.c.b16 %v1061, %v1055
        %v1302 = vpack.c.b16 %v1062, %v1056
        %v1303 = vpack.c.b16 %v1063, %v1057
        %v1304 = vpack.c.b16 %v1064, %v1058
        %v1305 = vpack.c.b16 %v1065, %v1059
        %v1306 = vpack.c.b16 %v1066, %v1060
        %v1307 = vpack.c.b16 %v1073, %v1067
        %v1308 = vpack.c.b16 %v1074, %v1068
        %v1309 = vpack.c.b16 %v1075, %v1069
        %v1310 = vpack.c.b16 %v1076, %v1070
        %v1311 = vpack.c.b16 %v1077, %v1071
        %v1312 = vpack.c.b16 %v1078, %v1072
        %v1313 = vpack.c.b16 %v1085, %v1079
        %v1314 = vpack.c.b16 %v1086, %v1080
        %v1315 = vpack.c.b16 %v1087, %v1081
        %v1316 = vpack.c.b16 %v1088, %v1082
        %v1317 = vpack.c.b16 %v1089, %v1083
        %v1318 = vpack.c.b16 %v1090, %v1084
        %v1319 = vpack.c.b16 %v1097, %v1091
        %v1320 = vpack.c.b16 %v1098, %v1092
        %v1321 = vpack.c.b16 %v1099, %v1093
        %v1322 = vpack.c.b16 %v1100, %v1094
        %v1323 = vpack.c.b16 %v1101, %v1095
        %v1324 = vpack.c.b16 %v1102, %v1096
        %v1325 = vpack.c.b16 %v1109, %v1103
        %v1326 = vpack.c.b16 %v1110, %v1104
        %v1327 = vpack.c.b16 %v1111, %v1105
        %v1328 = vpack.c.b16 %v1112, %v1106
        %v1329 = vpack.c.b16 %v1113, %v1107
        %v1330 = vpack.c.b16 %v1114, %v1108
        %v1331 = vpack.c.b16 %v1121, %v1115
        %v1332 = vpack.c.b16 %v1122, %v1116
        %v1333 = vpack.c.b16 %v1123, %v1117
        %v1334 = vpack.c.b16 %v1124, %v1118
        %v1335 = vpack.c.b16 %v1125, %v1119
        %v1336 = vpack.c.b16 %v1126, %v1120
        %v1337 = vpack.c.b16 %v1133, %v1127
        %v1338 = vpack.c.b16 %v1134, %v1128
        %v1339 = vpack.c.b16 %v1135, %v1129
        %v1340 = vpack.c.b16 %v1136, %v1130
        %v1341 = vpack.c.b16 %v1137, %v1131
        %v1342 = vpack.c.b16 %v1138, %v1132
        %v1343 = vpack.c.b16 %v1145, %v1139
        %v1344 = vpack.c.b16 %v1146, %v1140
        %v1345 = vpack.c.b16 %v1147, %v1141
        %v1346 = vpack.c.b16 %v1148, %v1142
        %v1347 = vpack.c.b16 %v1149, %v1143
        %v1348 = vpack.c.b16 %v1150, %v1144
        %v1349 = vpack.c.b16 %v1157, %v1151
        %v1350 = vpack.c.b16 %v1158, %v1152
        %v1351 = vpack.c.b16 %v1159, %v1153
        %v1352 = vpack.c.b16 %v1160, %v1154
        %v1353 = vpack.c.b16 %v1161, %v1155
        %v1354 = vpack.c.b16 %v1162, %v1156
        %1547 = vmatprep.subr.bf16.mxu0 %v1206
        %1548 = vmatpush1.bf16.msra.mxu0 %v1205
        %1549 = vmatprep.subr.bf16.mxu0 %v1200
        %1550 = vmatpush1.bf16.msra.mxu0 %v1199
        %1551 = vmatprep.subr.bf16.mxu0 %v1194
        %1552 = vmatpush1.bf16.msra.mxu0 %v1193
        %1553 = vmatprep.subr.bf16.mxu0 %v1188
        %1554 = vmatpush1.bf16.msra.mxu0 %v1187
        %1555 = vmatprep.subr.bf16.mxu0 %v1182
        %1556 = vmatpush1.bf16.msra.mxu0 %v1181
        %1557 = vmatprep.subr.bf16.mxu0 %v1176
        %1558 = vmatpush1.bf16.msra.mxu0 %v1175
        %1559 = vmatprep.subr.bf16.mxu0 %v1170
        %1560 = vmatpush1.bf16.msra.mxu0 %v1169
        %1561 = vmatprep.subr.bf16.mxu0 %v1164
        %1562 = vmatpush1.bf16.msra.mxu0 %v1163
        %1563 = vmatprep.subr.bf16.mxu0 %v1254
        %1564 = vmatpush2.bf16.msra.mxu0 %v1253
        %1565 = vmatprep.subr.bf16.mxu0 %v1248
        %1566 = vmatpush2.bf16.msra.mxu0 %v1247
        %1567 = vmatprep.subr.bf16.mxu0 %v1242
        %1568 = vmatpush2.bf16.msra.mxu0 %v1241
        %1569 = vmatprep.subr.bf16.mxu0 %v1236
        %1570 = vmatpush2.bf16.msra.mxu0 %v1235
        %1571 = vmatprep.subr.bf16.mxu0 %v1230
        %1572 = vmatpush2.bf16.msra.mxu0 %v1229
        %1573 = vmatprep.subr.bf16.mxu0 %v1224
        %1574 = vmatpush2.bf16.msra.mxu0 %v1223
        %1575 = vmatprep.subr.bf16.mxu0 %v1218
        %1576 = vmatpush2.bf16.msra.mxu0 %v1217
        %1577 = vmatprep.subr.bf16.mxu0 %v1212
        %1578 = vmatpush2.bf16.msra.mxu0 %v1211
        %1579 = vmatprep.mubr.bf16.mxu0 %v572
        %1580 = vmatmul.mubr.bf16.gmra.mxu0 %v571
        %v1581 = vpop.f32.mrf.mxu0
        %v1582 = vadd.f32 0.0, %v1581
        %v1583 = vpop.f32.mrf.mxu0
        %v1584 = vadd.f32 0.0, %v1583
        %v1585 = vpop.f32.mrf.mxu0
        %v1586 = vadd.f32 0.0, %v1585
        %v1587 = vpop.f32.mrf.mxu0
        %v1588 = vadd.f32 0.0, %v1587
        %1589 = vmatprep.mubr.bf16.mxu0 %v576
        %1590 = vmatmul.mubr.bf16.gmra.mxu0 %v575
        %v1591 = vpop.f32.mrf.mxu0
        %v1592 = vadd.f32 0.0, %v1591
        %v1593 = vpop.f32.mrf.mxu0
        %v1594 = vadd.f32 0.0, %v1593
        %v1595 = vpop.f32.mrf.mxu0
        %v1596 = vadd.f32 0.0, %v1595
        %v1597 = vpop.f32.mrf.mxu0
        %v1598 = vadd.f32 0.0, %v1597
        %1599 = vdwg.mxu0
        %1600 = vmatprep.subr.bf16.mxu0 %v1302
        %1601 = vmatpush1.bf16.msra.mxu0 %v1301
        %1602 = vmatprep.subr.bf16.mxu0 %v1296
        %1603 = vmatpush1.bf16.msra.mxu0 %v1295
        %1604 = vmatprep.subr.bf16.mxu0 %v1290
        %1605 = vmatpush1.bf16.msra.mxu0 %v1289
        %1606 = vmatprep.subr.bf16.mxu0 %v1284
        %1607 = vmatpush1.bf16.msra.mxu0 %v1283
        %1608 = vmatprep.subr.bf16.mxu0 %v1278
        %1609 = vmatpush1.bf16.msra.mxu0 %v1277
        %1610 = vmatprep.subr.bf16.mxu0 %v1272
        %1611 = vmatpush1.bf16.msra.mxu0 %v1271
        %1612 = vmatprep.subr.bf16.mxu0 %v1266
        %1613 = vmatpush1.bf16.msra.mxu0 %v1265
        %1614 = vmatprep.subr.bf16.mxu0 %v1260
        %1615 = vmatpush1.bf16.msra.mxu0 %v1259
        %1616 = vmatprep.subr.bf16.mxu0 %v1350
        %1617 = vmatpush2.bf16.msra.mxu0 %v1349
        %1618 = vmatprep.subr.bf16.mxu0 %v1344
        %1619 = vmatpush2.bf16.msra.mxu0 %v1343
        %1620 = vmatprep.subr.bf16.mxu0 %v1338
        %1621 = vmatpush2.bf16.msra.mxu0 %v1337
        %1622 = vmatprep.subr.bf16.mxu0 %v1332
        %1623 = vmatpush2.bf16.msra.mxu0 %v1331
        %1624 = vmatprep.subr.bf16.mxu0 %v1326
        %1625 = vmatpush2.bf16.msra.mxu0 %v1325
        %1626 = vmatprep.subr.bf16.mxu0 %v1320
        %1627 = vmatpush2.bf16.msra.mxu0 %v1319
        %1628 = vmatprep.subr.bf16.mxu0 %v1314
        %1629 = vmatpush2.bf16.msra.mxu0 %v1313
        %1630 = vmatprep.subr.bf16.mxu0 %v1308
        %1631 = vmatpush2.bf16.msra.mxu0 %v1307
        %1632 = vmatprep.mubr.bf16.mxu0 %v574
        %1633 = vmatmul.mubr.bf16.gmra.mxu0 %v573
        %v1634 = vpop.f32.mrf.mxu0
        %v1635 = vadd.f32 %v1582, %v1634
        %v1636 = vpop.f32.mrf.mxu0
        %v1637 = vadd.f32 %v1584, %v1636
        %v1638 = vpop.f32.mrf.mxu0
        %v1639 = vadd.f32 %v1586, %v1638
        %v1640 = vpop.f32.mrf.mxu0
        %v1641 = vadd.f32 %v1588, %v1640
        %1642 = vmatprep.mubr.bf16.mxu0 %v578
        %1643 = vmatmul.mubr.bf16.gmra.mxu0 %v577
        %v1644 = vpop.f32.mrf.mxu0
        %v1645 = vadd.f32 %v1592, %v1644
        %v1646 = vpop.f32.mrf.mxu0
        %v1647 = vadd.f32 %v1594, %v1646
        %v1648 = vpop.f32.mrf.mxu0
        %v1649 = vadd.f32 %v1596, %v1648
        %v1650 = vpop.f32.mrf.mxu0
        %v1651 = vadd.f32 %v1598, %v1650
        %1652 = vdwg.mxu0
        %1653 = vmatprep.subr.bf16.mxu0 %v1208
        %1654 = vmatpush1.bf16.msra.mxu0 %v1207
        %1655 = vmatprep.subr.bf16.mxu0 %v1202
        %1656 = vmatpush1.bf16.msra.mxu0 %v1201
        %1657 = vmatprep.subr.bf16.mxu0 %v1196
        %1658 = vmatpush1.bf16.msra.mxu0 %v1195
        %1659 = vmatprep.subr.bf16.mxu0 %v1190
        %1660 = vmatpush1.bf16.msra.mxu0 %v1189
        %1661 = vmatprep.subr.bf16.mxu0 %v1184
        %1662 = vmatpush1.bf16.msra.mxu0 %v1183
        %1663 = vmatprep.subr.bf16.mxu0 %v1178
        %1664 = vmatpush1.bf16.msra.mxu0 %v1177
        %1665 = vmatprep.subr.bf16.mxu0 %v1172
        %1666 = vmatpush1.bf16.msra.mxu0 %v1171
        %1667 = vmatprep.subr.bf16.mxu0 %v1166
        %1668 = vmatpush1.bf16.msra.mxu0 %v1165
        %1669 = vmatprep.subr.bf16.mxu0 %v1256
        %1670 = vmatpush2.bf16.msra.mxu0 %v1255
        %1671 = vmatprep.subr.bf16.mxu0 %v1250
        %1672 = vmatpush2.bf16.msra.mxu0 %v1249
        %1673 = vmatprep.subr.bf16.mxu0 %v1244
        %1674 = vmatpush2.bf16.msra.mxu0 %v1243
        %1675 = vmatprep.subr.bf16.mxu0 %v1238
        %1676 = vmatpush2.bf16.msra.mxu0 %v1237
        %1677 = vmatprep.subr.bf16.mxu0 %v1232
        %1678 = vmatpush2.bf16.msra.mxu0 %v1231
        %1679 = vmatprep.subr.bf16.mxu0 %v1226
        %1680 = vmatpush2.bf16.msra.mxu0 %v1225
        %1681 = vmatprep.subr.bf16.mxu0 %v1220
        %1682 = vmatpush2.bf16.msra.mxu0 %v1219
        %1683 = vmatprep.subr.bf16.mxu0 %v1214
        %1684 = vmatpush2.bf16.msra.mxu0 %v1213
        %1685 = vmatprep.mubr.bf16.mxu0 %v572
        %1686 = vmatmul.mubr.bf16.gmra.mxu0 %v571
        %v1687 = vpop.f32.mrf.mxu0
        %v1688 = vadd.f32 0.0, %v1687
        %v1689 = vpop.f32.mrf.mxu0
        %v1690 = vadd.f32 0.0, %v1689
        %v1691 = vpop.f32.mrf.mxu0
        %v1692 = vadd.f32 0.0, %v1691
        %v1693 = vpop.f32.mrf.mxu0
        %v1694 = vadd.f32 0.0, %v1693
        %1695 = vmatprep.mubr.bf16.mxu0 %v576
        %1696 = vmatmul.mubr.bf16.gmra.mxu0 %v575
        %v1697 = vpop.f32.mrf.mxu0
        %v1698 = vadd.f32 0.0, %v1697
        %v1699 = vpop.f32.mrf.mxu0
        %v1700 = vadd.f32 0.0, %v1699
        %v1701 = vpop.f32.mrf.mxu0
        %v1702 = vadd.f32 0.0, %v1701
        %v1703 = vpop.f32.mrf.mxu0
        %v1704 = vadd.f32 0.0, %v1703
        %1705 = vdwg.mxu0
        %1706 = vmatprep.subr.bf16.mxu0 %v1304
        %1707 = vmatpush1.bf16.msra.mxu0 %v1303
        %1708 = vmatprep.subr.bf16.mxu0 %v1298
        %1709 = vmatpush1.bf16.msra.mxu0 %v1297
        %1710 = vmatprep.subr.bf16.mxu0 %v1292
        %1711 = vmatpush1.bf16.msra.mxu0 %v1291
        %1712 = vmatprep.subr.bf16.mxu0 %v1286
        %1713 = vmatpush1.bf16.msra.mxu0 %v1285
        %1714 = vmatprep.subr.bf16.mxu0 %v1280
        %1715 = vmatpush1.bf16.msra.mxu0 %v1279
        %1716 = vmatprep.subr.bf16.mxu0 %v1274
        %1717 = vmatpush1.bf16.msra.mxu0 %v1273
        %1718 = vmatprep.subr.bf16.mxu0 %v1268
        %1719 = vmatpush1.bf16.msra.mxu0 %v1267
        %1720 = vmatprep.subr.bf16.mxu0 %v1262
        %1721 = vmatpush1.bf16.msra.mxu0 %v1261
        %1722 = vmatprep.subr.bf16.mxu0 %v1352
        %1723 = vmatpush2.bf16.msra.mxu0 %v1351
        %1724 = vmatprep.subr.bf16.mxu0 %v1346
        %1725 = vmatpush2.bf16.msra.mxu0 %v1345
        %1726 = vmatprep.subr.bf16.mxu0 %v1340
        %1727 = vmatpush2.bf16.msra.mxu0 %v1339
        %1728 = vmatprep.subr.bf16.mxu0 %v1334
        %1729 = vmatpush2.bf16.msra.mxu0 %v1333
        %1730 = vmatprep.subr.bf16.mxu0 %v1328
        %1731 = vmatpush2.bf16.msra.mxu0 %v1327
        %1732 = vmatprep.subr.bf16.mxu0 %v1322
        %1733 = vmatpush2.bf16.msra.mxu0 %v1321
        %1734 = vmatprep.subr.bf16.mxu0 %v1316
        %1735 = vmatpush2.bf16.msra.mxu0 %v1315
        %1736 = vmatprep.subr.bf16.mxu0 %v1310
        %1737 = vmatpush2.bf16.msra.mxu0 %v1309
        %1738 = vmatprep.mubr.bf16.mxu0 %v574
        %1739 = vmatmul.mubr.bf16.gmra.mxu0 %v573
        %v1740 = vpop.f32.mrf.mxu0
        %v1741 = vadd.f32 %v1688, %v1740
        %v1742 = vpop.f32.mrf.mxu0
        %v1743 = vadd.f32 %v1690, %v1742
        %v1744 = vpop.f32.mrf.mxu0
        %v1745 = vadd.f32 %v1692, %v1744
        %v1746 = vpop.f32.mrf.mxu0
        %v1747 = vadd.f32 %v1694, %v1746
        %1748 = vmatprep.mubr.bf16.mxu0 %v578
        %1749 = vmatmul.mubr.bf16.gmra.mxu0 %v577
        %v1750 = vpop.f32.mrf.mxu0
        %v1751 = vadd.f32 %v1698, %v1750
        %v1752 = vpop.f32.mrf.mxu0
        %v1753 = vadd.f32 %v1700, %v1752
        %v1754 = vpop.f32.mrf.mxu0
        %v1755 = vadd.f32 %v1702, %v1754
        %v1756 = vpop.f32.mrf.mxu0
        %v1757 = vadd.f32 %v1704, %v1756
        %1758 = vdwg.mxu0
        %1759 = vmatprep.subr.bf16.mxu0 %v1210
        %1760 = vmatpush1.bf16.msra.mxu0 %v1209
        %1761 = vmatprep.subr.bf16.mxu0 %v1204
        %1762 = vmatpush1.bf16.msra.mxu0 %v1203
        %1763 = vmatprep.subr.bf16.mxu0 %v1198
        %1764 = vmatpush1.bf16.msra.mxu0 %v1197
        %1765 = vmatprep.subr.bf16.mxu0 %v1192
        %1766 = vmatpush1.bf16.msra.mxu0 %v1191
        %1767 = vmatprep.subr.bf16.mxu0 %v1186
        %1768 = vmatpush1.bf16.msra.mxu0 %v1185
        %1769 = vmatprep.subr.bf16.mxu0 %v1180
        %1770 = vmatpush1.bf16.msra.mxu0 %v1179
        %1771 = vmatprep.subr.bf16.mxu0 %v1174
        %1772 = vmatpush1.bf16.msra.mxu0 %v1173
        %1773 = vmatprep.subr.bf16.mxu0 %v1168
        %1774 = vmatpush1.bf16.msra.mxu0 %v1167
        %1775 = vmatprep.subr.bf16.mxu0 %v1258
        %1776 = vmatpush2.bf16.msra.mxu0 %v1257
        %1777 = vmatprep.subr.bf16.mxu0 %v1252
        %1778 = vmatpush2.bf16.msra.mxu0 %v1251
        %1779 = vmatprep.subr.bf16.mxu0 %v1246
        %1780 = vmatpush2.bf16.msra.mxu0 %v1245
        %1781 = vmatprep.subr.bf16.mxu0 %v1240
        %1782 = vmatpush2.bf16.msra.mxu0 %v1239
        %1783 = vmatprep.subr.bf16.mxu0 %v1234
        %1784 = vmatpush2.bf16.msra.mxu0 %v1233
        %1785 = vmatprep.subr.bf16.mxu0 %v1228
        %1786 = vmatpush2.bf16.msra.mxu0 %v1227
        %1787 = vmatprep.subr.bf16.mxu0 %v1222
        %1788 = vmatpush2.bf16.msra.mxu0 %v1221
        %1789 = vmatprep.subr.bf16.mxu0 %v1216
        %1790 = vmatpush2.bf16.msra.mxu0 %v1215
        %1791 = vmatprep.mubr.bf16.mxu0 %v572
        %1792 = vmatmul.mubr.bf16.gmra.mxu0 %v571
        %v1793 = vpop.f32.mrf.mxu0
        %v1794 = vadd.f32 0.0, %v1793
        %v1795 = vpop.f32.mrf.mxu0
        %v1796 = vadd.f32 0.0, %v1795
        %v1797 = vpop.f32.mrf.mxu0
        %v1798 = vadd.f32 0.0, %v1797
        %v1799 = vpop.f32.mrf.mxu0
        %v1800 = vadd.f32 0.0, %v1799
        %1801 = vmatprep.mubr.bf16.mxu0 %v576
        %1802 = vmatmul.mubr.bf16.gmra.mxu0 %v575
        %v1803 = vpop.f32.mrf.mxu0
        %v1804 = vadd.f32 0.0, %v1803
        %v1805 = vpop.f32.mrf.mxu0
        %v1806 = vadd.f32 0.0, %v1805
        %v1807 = vpop.f32.mrf.mxu0
        %v1808 = vadd.f32 0.0, %v1807
        %v1809 = vpop.f32.mrf.mxu0
        %v1810 = vadd.f32 0.0, %v1809
        %1811 = vdwg.mxu0
        %1812 = vmatprep.subr.bf16.mxu0 %v1306
        %1813 = vmatpush1.bf16.msra.mxu0 %v1305
        %1814 = vmatprep.subr.bf16.mxu0 %v1300
        %1815 = vmatpush1.bf16.msra.mxu0 %v1299
        %1816 = vmatprep.subr.bf16.mxu0 %v1294
        %1817 = vmatpush1.bf16.msra.mxu0 %v1293
        %1818 = vmatprep.subr.bf16.mxu0 %v1288
        %1819 = vmatpush1.bf16.msra.mxu0 %v1287
        %1820 = vmatprep.subr.bf16.mxu0 %v1282
        %1821 = vmatpush1.bf16.msra.mxu0 %v1281
        %1822 = vmatprep.subr.bf16.mxu0 %v1276
        %1823 = vmatpush1.bf16.msra.mxu0 %v1275
        %1824 = vmatprep.subr.bf16.mxu0 %v1270
        %1825 = vmatpush1.bf16.msra.mxu0 %v1269
        %1826 = vmatprep.subr.bf16.mxu0 %v1264
        %1827 = vmatpush1.bf16.msra.mxu0 %v1263
        %1828 = vmatprep.subr.bf16.mxu0 %v1354
        %1829 = vmatpush2.bf16.msra.mxu0 %v1353
        %1830 = vmatprep.subr.bf16.mxu0 %v1348
        %1831 = vmatpush2.bf16.msra.mxu0 %v1347
        %1832 = vmatprep.subr.bf16.mxu0 %v1342
        %1833 = vmatpush2.bf16.msra.mxu0 %v1341
        %1834 = vmatprep.subr.bf16.mxu0 %v1336
        %1835 = vmatpush2.bf16.msra.mxu0 %v1335
        %1836 = vmatprep.subr.bf16.mxu0 %v1330
        %1837 = vmatpush2.bf16.msra.mxu0 %v1329
        %1838 = vmatprep.subr.bf16.mxu0 %v1324
        %1839 = vmatpush2.bf16.msra.mxu0 %v1323
        %1840 = vmatprep.subr.bf16.mxu0 %v1318
        %1841 = vmatpush2.bf16.msra.mxu0 %v1317
        %1842 = vmatprep.subr.bf16.mxu0 %v1312
        %1843 = vmatpush2.bf16.msra.mxu0 %v1311
        %1844 = vmatprep.mubr.bf16.mxu0 %v574
        %1845 = vmatmul.mubr.bf16.gmra.mxu0 %v573
        %v1846 = vpop.f32.mrf.mxu0
        %v1847 = vadd.f32 %v1794, %v1846
        %v1848 = vpop.f32.mrf.mxu0
        %v1849 = vadd.f32 %v1796, %v1848
        %v1850 = vpop.f32.mrf.mxu0
        %v1851 = vadd.f32 %v1798, %v1850
        %v1852 = vpop.f32.mrf.mxu0
        %v1853 = vadd.f32 %v1800, %v1852
        %1854 = vmatprep.mubr.bf16.mxu0 %v578
        %1855 = vmatmul.mubr.bf16.gmra.mxu0 %v577
        %v1856 = vpop.f32.mrf.mxu0
        %v1857 = vadd.f32 %v1804, %v1856
        %v1858 = vpop.f32.mrf.mxu0
        %v1859 = vadd.f32 %v1806, %v1858
        %v1860 = vpop.f32.mrf.mxu0
        %v1861 = vadd.f32 %v1808, %v1860
        %v1862 = vpop.f32.mrf.mxu0
        %v1863 = vadd.f32 %v1810, %v1862
        %1864 = vdwg.mxu0
        %v1865 = vadd.f32 %v323, %v1635
        %v1866 = vadd.f32 %v324, %v1637
        %v1867 = vadd.f32 %v325, %v1741
        %v1868 = vadd.f32 %v326, %v1743
        %v1869 = vadd.f32 %v327, %v1847
        %v1870 = vadd.f32 %v328, %v1849
        %v1871 = vadd.f32 %v329, %v1639
        %v1872 = vadd.f32 %v330, %v1641
        %v1873 = vadd.f32 %v331, %v1745
        %v1874 = vadd.f32 %v332, %v1747
        %v1875 = vadd.f32 %v333, %v1851
        %v1876 = vadd.f32 %v334, %v1853
        %v1877 = vadd.f32 %v335, %v1645
        %v1878 = vadd.f32 %v336, %v1647
        %v1879 = vadd.f32 %v337, %v1751
        %v1880 = vadd.f32 %v338, %v1753
        %v1881 = vadd.f32 %v339, %v1857
        %v1882 = vadd.f32 %v340, %v1859
        %v1883 = vadd.f32 %v341, %v1649
        %v1884 = vadd.f32 %v342, %v1651
        %v1885 = vadd.f32 %v343, %v1755
        %v1886 = vadd.f32 %v344, %v1757
        %v1887 = vadd.f32 %v345, %v1861
        %v1888 = vadd.f32 %v346, %v1863
        %1889 = vst [vmem:[#allocation2] sm:$0xff] %v1865
        %1890 = vst [vmem:[#allocation2 + $0x8] sm:$0xff] %v1866
        %1891 = vst [vmem:[#allocation2 + $0x10] sm:$0xff] %v1867
        %1892 = vst [vmem:[#allocation2 + $0x18] sm:$0xff] %v1868
        %1893 = vst [vmem:[#allocation2 + $0x20] sm:$0xff] %v1869
        %1894 = vst [vmem:[#allocation2 + $0x28] sm:$0xff] %v1870
        %1895 = vst [vmem:[#allocation2 + $0x30] sm:$0xff] %v1871
        %1896 = vst [vmem:[#allocation2 + $0x38] sm:$0xff] %v1872
        %1897 = vst [vmem:[#allocation2 + $0x40] sm:$0xff] %v1873
        %1898 = vst [vmem:[#allocation2 + $0x48] sm:$0xff] %v1874
        %1899 = vst [vmem:[#allocation2 + $0x50] sm:$0xff] %v1875
        %1900 = vst [vmem:[#allocation2 + $0x58] sm:$0xff] %v1876
        %1901 = vst [vmem:[#allocation2 + $0x60] sm:$0xff] %v1877
        %1902 = vst [vmem:[#allocation2 + $0x68] sm:$0xff] %v1878
        %1903 = vst [vmem:[#allocation2 + $0x70] sm:$0xff] %v1879
        %1904 = vst [vmem:[#allocation2 + $0x78] sm:$0xff] %v1880
        %1905 = vst [vmem:[#allocation2 + $0x80] sm:$0xff] %v1881
        %1906 = vst [vmem:[#allocation2 + $0x88] sm:$0xff] %v1882
        %1907 = vst [vmem:[#allocation2 + $0x90] sm:$0xff] %v1883
        %1908 = vst [vmem:[#allocation2 + $0x98] sm:$0xff] %v1884
        %1909 = vst [vmem:[#allocation2 + $0xa0] sm:$0xff] %v1885
        %1910 = vst [vmem:[#allocation2 + $0xa8] sm:$0xff] %v1886
        %1911 = vst [vmem:[#allocation2 + $0xb0] sm:$0xff] %v1887
        %1912 = vst [vmem:[#allocation2 + $0xb8] sm:$0xff] %v1888
        // Predicated region
        $region45: #{multi_head_attention_forward.3} parent=31 // pred_check
          %p1913 = pneg %p295
        $region46: #{multi_head_attention_forward.3} parent=31 // pred_check_branch
          %1915 = sbr.rel (%p1913) target = $region48
        $region47: #{multi_head_attention_forward.3} parent=31 // pred_region
          %v1916 = vld [vmem:[#allocation2] sm:$0xff]
          %v1917 = vld [vmem:[#allocation2 + $0x8] sm:$0xff]
          %v1918 = vld [vmem:[#allocation2 + $0x10] sm:$0xff]
          %v1919 = vld [vmem:[#allocation2 + $0x18] sm:$0xff]
          %v1920 = vld [vmem:[#allocation2 + $0x20] sm:$0xff]
          %v1921 = vld [vmem:[#allocation2 + $0x28] sm:$0xff]
          %v1922 = vld [vmem:[#allocation2 + $0x30] sm:$0xff]
          %v1923 = vld [vmem:[#allocation2 + $0x38] sm:$0xff]
          %v1924 = vld [vmem:[#allocation2 + $0x40] sm:$0xff]
          %v1925 = vld [vmem:[#allocation2 + $0x48] sm:$0xff]
          %v1926 = vld [vmem:[#allocation2 + $0x50] sm:$0xff]
          %v1927 = vld [vmem:[#allocation2 + $0x58] sm:$0xff]
          %v1928 = vld [vmem:[#allocation2 + $0x60] sm:$0xff]
          %v1929 = vld [vmem:[#allocation2 + $0x68] sm:$0xff]
          %v1930 = vld [vmem:[#allocation2 + $0x70] sm:$0xff]
          %v1931 = vld [vmem:[#allocation2 + $0x78] sm:$0xff]
          %v1932 = vld [vmem:[#allocation2 + $0x80] sm:$0xff]
          %v1933 = vld [vmem:[#allocation2 + $0x88] sm:$0xff]
          %v1934 = vld [vmem:[#allocation2 + $0x90] sm:$0xff]
          %v1935 = vld [vmem:[#allocation2 + $0x98] sm:$0xff]
          %v1936 = vld [vmem:[#allocation2 + $0xa0] sm:$0xff]
          %v1937 = vld [vmem:[#allocation2 + $0xa8] sm:$0xff]
          %v1938 = vld [vmem:[#allocation2 + $0xb0] sm:$0xff]
          %v1939 = vld [vmem:[#allocation2 + $0xb8] sm:$0xff]
          %v1940 = vld [vmem:[%s241] sm:$0x3f]
          %v1942 = vlaneseq
          %v1943 = vshrl.u32 %v1942, 7
          %v1944 = vsub.s32 0, %v1943
          %v1945 = vrot.slane %v1940, %v1944
          %v1946 = vlaneseq
          %v1947 = vshrl.u32 %v1946, 7
          %v1948 = vsub.s32 1, %v1947
          %v1949 = vrot.slane %v1940, %v1948
          %v1950 = vlaneseq
          %v1951 = vshrl.u32 %v1950, 7
          %v1952 = vsub.s32 2, %v1951
          %v1953 = vrot.slane %v1940, %v1952
          %v1954 = vlaneseq
          %v1955 = vshrl.u32 %v1954, 7
          %v1956 = vsub.s32 3, %v1955
          %v1957 = vrot.slane %v1940, %v1956
          %v1958 = vlaneseq
          %v1959 = vshrl.u32 %v1958, 7
          %v1960 = vsub.s32 4, %v1959
          %v1961 = vrot.slane %v1940, %v1960
          %v1962 = vlaneseq
          %v1963 = vshrl.u32 %v1962, 7
          %v1964 = vsub.s32 5, %v1963
          %v1965 = vrot.slane %v1940, %v1964
          %v1972 = vadd.f32 %v1916, %v1945
          %v1973 = vadd.f32 %v1917, %v1949
          %v1974 = vadd.f32 %v1918, %v1953
          %v1975 = vadd.f32 %v1919, %v1957
          %v1976 = vadd.f32 %v1920, %v1961
          %v1977 = vadd.f32 %v1921, %v1965
          %v1978 = vadd.f32 %v1922, %v1945
          %v1979 = vadd.f32 %v1923, %v1949
          %v1980 = vadd.f32 %v1924, %v1953
          %v1981 = vadd.f32 %v1925, %v1957
          %v1982 = vadd.f32 %v1926, %v1961
          %v1983 = vadd.f32 %v1927, %v1965
          %v1984 = vadd.f32 %v1928, %v1945
          %v1985 = vadd.f32 %v1929, %v1949
          %v1986 = vadd.f32 %v1930, %v1953
          %v1987 = vadd.f32 %v1931, %v1957
          %v1988 = vadd.f32 %v1932, %v1961
          %v1989 = vadd.f32 %v1933, %v1965
          %v1990 = vadd.f32 %v1934, %v1945
          %v1991 = vadd.f32 %v1935, %v1949
          %v1992 = vadd.f32 %v1936, %v1953
          %v1993 = vadd.f32 %v1937, %v1957
          %v1994 = vadd.f32 %v1938, %v1961
          %v1995 = vadd.f32 %v1939, %v1965
          %v1996 = vpack.c.bf16 %v1978, %v1972
          %v1997 = vpack.c.bf16 %v1979, %v1973
          %v1998 = vpack.c.bf16 %v1980, %v1974
          %v1999 = vpack.c.bf16 %v1981, %v1975
          %v2000 = vpack.c.bf16 %v1982, %v1976
          %v2001 = vpack.c.bf16 %v1983, %v1977
          %v2002 = vpack.c.bf16 %v1990, %v1984
          %v2003 = vpack.c.bf16 %v1991, %v1985
          %v2004 = vpack.c.bf16 %v1992, %v1986
          %v2005 = vpack.c.bf16 %v1993, %v1987
          %v2006 = vpack.c.bf16 %v1994, %v1988
          %v2007 = vpack.c.bf16 %v1995, %v1989
          %v2020 = vunpack.c.l.b16 %v1996
          %v2021 = vunpack.c.l.b16 %v1997
          %v2022 = vunpack.c.l.b16 %v1998
          %v2023 = vunpack.c.l.b16 %v1999
          %v2024 = vunpack.c.l.b16 %v2000
          %v2025 = vunpack.c.l.b16 %v2001
          %v2026 = vunpack.c.h.b16 %v1996
          %v2027 = vunpack.c.h.b16 %v1997
          %v2028 = vunpack.c.h.b16 %v1998
          %v2029 = vunpack.c.h.b16 %v1999
          %v2030 = vunpack.c.h.b16 %v2000
          %v2031 = vunpack.c.h.b16 %v2001
          %v2032 = vunpack.c.l.b16 %v2002
          %v2033 = vunpack.c.l.b16 %v2003
          %v2034 = vunpack.c.l.b16 %v2004
          %v2035 = vunpack.c.l.b16 %v2005
          %v2036 = vunpack.c.l.b16 %v2006
          %v2037 = vunpack.c.l.b16 %v2007
          %v2038 = vunpack.c.h.b16 %v2002
          %v2039 = vunpack.c.h.b16 %v2003
          %v2040 = vunpack.c.h.b16 %v2004
          %v2041 = vunpack.c.h.b16 %v2005
          %v2042 = vunpack.c.h.b16 %v2006
          %v2043 = vunpack.c.h.b16 %v2007
          %v2044 = vpack.c.b16 %v2021, %v2020
          %v2045 = vpack.c.b16 %v2023, %v2022
          %v2046 = vpack.c.b16 %v2025, %v2024
          %v2047 = vpack.c.b16 %v2027, %v2026
          %v2048 = vpack.c.b16 %v2029, %v2028
          %v2049 = vpack.c.b16 %v2031, %v2030
          %v2050 = vpack.c.b16 %v2033, %v2032
          %v2051 = vpack.c.b16 %v2035, %v2034
          %v2052 = vpack.c.b16 %v2037, %v2036
          %v2053 = vpack.c.b16 %v2039, %v2038
          %v2054 = vpack.c.b16 %v2041, %v2040
          %v2055 = vpack.c.b16 %v2043, %v2042
          %2068 = vst [vmem:[%s277] sm:$0xff] %v2044
          %2069 = vst [vmem:[%s277 + $0x8] sm:$0xff] %v2045
          %2070 = vst [vmem:[%s277 + $0x10] sm:$0xff] %v2046
          %2071 = vst [vmem:[%s277 + $0x18] sm:$0xff] %v2047
          %2072 = vst [vmem:[%s277 + $0x20] sm:$0xff] %v2048
          %2073 = vst [vmem:[%s277 + $0x28] sm:$0xff] %v2049
          %2074 = vst [vmem:[%s277 + $0x30] sm:$0xff] %v2050
          %2075 = vst [vmem:[%s277 + $0x38] sm:$0xff] %v2051
          %2076 = vst [vmem:[%s277 + $0x40] sm:$0xff] %v2052
          %2077 = vst [vmem:[%s277 + $0x48] sm:$0xff] %v2053
          %2078 = vst [vmem:[%s277 + $0x50] sm:$0xff] %v2054
          %2079 = vst [vmem:[%s277 + $0x58] sm:$0xff] %v2055
        $region48: #{multi_head_attention_forward.3} parent=31 // pred_fallthru
          _
        %s2080 = sand.u32 %s131, 1
        %s2081 = sand.u32 %s131, 1
        %s2082 = smul.addr %s2081, 96
        %s2083 = scalar_lea.vmem [#allocation7], %s2082
        // Predicated region
        $region49: #{multi_head_attention_forward.3} parent=31 // pred_check
          %p2084 = pneg %p141
        $region50: #{multi_head_attention_forward.3} parent=31 // pred_check_branch
          %2086 = sbr.rel (%p2084) target = $region52
        $region51: #{multi_head_attention_forward.3} parent=31 // pred_region
          %s2087 = smul.u32 4, %s25
          %s2088 = smul.u32 6, %s26
          %s2089 = smul.addr %s2087, 12
          %s2090 = sadd.s32 %s2088, %s2089
          %s2091 = smul.addr %s2090, 4
          %s2092 = scalar_lea.vmem %s3, %s2091
          // Predicated region
          $region53: #{multi_head_attention_forward.3} parent=51 // pred_check
            _
          $region54: #{multi_head_attention_forward.3} parent=51 // pred_check_branch
            %2094 = sbr.rel (0) target = $region56
          $region55: #{multi_head_attention_forward.3} parent=51 // pred_region
            // Predicated region
            $region57: #{multi_head_attention_forward.3} parent=55 // pred_check
              _
            $region58: #{multi_head_attention_forward.3} parent=55 // pred_check_branch
              %2096 = sbr.rel (0) target = $region60
            $region59: #{multi_head_attention_forward.3} parent=55 // pred_region
              loop: start=0, step=1, limit=1
              $region61: #{multi_head_attention_forward.3} parent=59 // loop_pre_header
                _
              $region62: #{multi_head_attention_forward.3} parent=59 // loop_header
                %s2098 = sphi 0, %s2102
                %p2099 = scmp.ge.s32.totalorder %s2098, 1
                %s2103 = sphi %s2083, %s2083
                %s2104 = sphi %s2092, %s2092
              $region63: #{multi_head_attention_forward.3} parent=59 // loop_header_branch
                %2101 = sbr.rel (%p2099) target = $region67
              $region64: #{multi_head_attention_forward.3} parent=59 // loop_body
                %v2105 = vld [vmem:[%s2103] sm:$0xff]
                %2106 = vst [vmem:[%s2104] sm:$0xff] %v2105
                %v2107 = vld [vmem:[%s2103 + $0x8] sm:$0xff]
                %2108 = vst [vmem:[%s2104 + $0x8] sm:$0xff] %v2107
                %v2109 = vld [vmem:[%s2103 + $0x10] sm:$0xff]
                %2110 = vst [vmem:[%s2104 + $0x10] sm:$0xff] %v2109
                %v2111 = vld [vmem:[%s2103 + $0x18] sm:$0xff]
                %2112 = vst [vmem:[%s2104 + $0x30] sm:$0xff] %v2111
                %v2113 = vld [vmem:[%s2103 + $0x20] sm:$0xff]
                %2114 = vst [vmem:[%s2104 + $0x38] sm:$0xff] %v2113
                %v2115 = vld [vmem:[%s2103 + $0x28] sm:$0xff]
                %2116 = vst [vmem:[%s2104 + $0x40] sm:$0xff] %v2115
                %v2117 = vld [vmem:[%s2103 + $0x30] sm:$0xff]
                %2118 = vst [vmem:[%s2104 + $0x60] sm:$0xff] %v2117
                %v2119 = vld [vmem:[%s2103 + $0x38] sm:$0xff]
                %2120 = vst [vmem:[%s2104 + $0x68] sm:$0xff] %v2119
                %v2121 = vld [vmem:[%s2103 + $0x40] sm:$0xff]
                %2122 = vst [vmem:[%s2104 + $0x70] sm:$0xff] %v2121
                %v2123 = vld [vmem:[%s2103 + $0x48] sm:$0xff]
                %2124 = vst [vmem:[%s2104 + $0x90] sm:$0xff] %v2123
                %v2125 = vld [vmem:[%s2103 + $0x50] sm:$0xff]
                %2126 = vst [vmem:[%s2104 + $0x98] sm:$0xff] %v2125
                %v2127 = vld [vmem:[%s2103 + $0x58] sm:$0xff]
                %2128 = vst [vmem:[%s2104 + $0xa0] sm:$0xff] %v2127
              $region65: #{multi_head_attention_forward.3} parent=59 // loop_footer
                %s2102 = sadd.s32 1, %s2098
              $region66: #{multi_head_attention_forward.3} parent=59 // loop_footer_branch
                %2097 = sbr.rel target = $region62
              $region67: #{multi_head_attention_forward.3} parent=59 // loop_exit
                _
            $region60: #{multi_head_attention_forward.3} parent=55 // pred_fallthru
              _
            // Predicated region
            $region68: #{multi_head_attention_forward.3} parent=55 // pred_check
              _
            $region69: #{multi_head_attention_forward.3} parent=55 // pred_check_branch
              %2130 = sbr.rel target = $region71
            $region70: #{multi_head_attention_forward.3} parent=55 // pred_region
              _
            $region71: #{multi_head_attention_forward.3} parent=55 // pred_fallthru
              _
          $region56: #{multi_head_attention_forward.3} parent=51 // pred_fallthru
            _
          %2131 = vnop
        $region52: #{multi_head_attention_forward.3} parent=31 // pred_fallthru
          _
      $region32: #{multi_head_attention_forward.3} parent=5 // pred_fallthru
        _
      %p2132 = scmp.le.s32.totalorder 2, %s15
      // Predicated region
      $region72: #{multi_head_attention_forward.3} parent=5 // pred_check
        %p2133 = pneg %p2132
      $region73: #{multi_head_attention_forward.3} parent=5 // pred_check_branch
        %2135 = sbr.rel (%p2133) target = $region75
      $region74: #{multi_head_attention_forward.3} parent=5 // pred_region
        %s2136 = ssub.s32 %s15, 2
        // Predicated region
        $region76: #{multi_head_attention_forward.3} parent=74 // pred_check
          %p2137 = pneg %p147
        $region77: #{multi_head_attention_forward.3} parent=74 // pred_check_branch
          %2139 = sbr.rel (%p2137) target = $region79
        $region78: #{multi_head_attention_forward.3} parent=74 // pred_region
          %s2140 = sand.u32 %s132, 1
          %s2141 = sand.u32 %s132, 1
          %s2142 = smul.addr %s2141, 96
          %s2143 = scalar_lea.vmem [#allocation7], %s2142
        $region79: #{multi_head_attention_forward.3} parent=74 // pred_fallthru
          _
      $region75: #{multi_head_attention_forward.3} parent=5 // pred_fallthru
        _
    $region6: #{multi_head_attention_forward.3} parent=1 // loop_footer
      %s19 = sadd.s32 1, %s15
    $region7: #{multi_head_attention_forward.3} parent=1 // loop_footer_branch
      %14 = sbr.rel target = $region3
    $region8: #{multi_head_attention_forward.3} parent=1 // loop_exit
      _
    %2144 = vsyncpa [#allocation4], 1
    %s2145 = scalar_lea.sflag [#allocation4], 1
    %2146 = vsyncpa %s2145, 1
    %2147 = vsyncpa [#allocation6], 1
    %s2148 = scalar_lea.sflag [#allocation6], 1
    %2149 = vsyncpa %s2148, 1

// kernel: multi_head_attention_forward.4
$region0: #{multi_head_attention_forward.4}
  #allocation0 [shape = 'u32[]', space=smem, size = 0x4, offset = 0x4, fixed_abs, tag = 'smem constant byte address 0x4 - core index']
  #allocation1 [shape = 'u32[144,128]{1,0:T(1,128)}', space=vmem, size = 0x12000, scoped, tag = 'internal scratch']
  #allocation2 [shape = 'f32[16,512]{1,0:T(8,128)}', space=vmem, size = 0x8000, scoped, tag = 'scratch operand']
  #allocation3 [shape = 'f32[8,16,1]{2,1,0:T(8,128)}', space=vmem, size = 0x10000, scoped, tag = 'scratch operand']
  #allocation4 [shape = 'f32[8,16,1]{2,1,0:T(8,128)}', space=vmem, size = 0x10000, scoped, tag = 'scratch operand']
  %s0 = inlined_call_operand.vmem [shape: bf16[2,16,512], index: 0, kind: input, shape index: {}]
  %s1 = inlined_call_operand.vmem [shape: bf16[2,512,16], index: 1, kind: input, shape index: {}]
  %s2 = inlined_call_operand.vmem [shape: bf16[2,16,512], index: 2, kind: input, shape index: {}]
  %s3 = inlined_call_operand.vmem [shape: bf16[2,16,512], index: 3, kind: output, shape index: {}]
  %s4 = sld [smem:[#allocation0]]
  $region53: #{multi_head_attention_forward.4} parent=0
    _
  %s6 = ssub.s32 1, %s4
  %s7 = scalar_select 0, %s6, %s4
  loop: start=0, step=1, limit=4
  $region2: #{multi_head_attention_forward.4} parent=0 // loop_pre_header
    _
  $region3: #{multi_head_attention_forward.4} parent=0 // loop_header
    %s9 = sphi 0, %s13
    %p10 = scmp.ge.s32.totalorder %s9, 4
    %s16 = sphi 0, %s35
    %s17 = sphi 0, %s31
    %s18 = sphi 0, %s27
    %s19 = sphi 0, %s16
    %s20 = sphi 0, %s17
    %s21 = sphi 0, %s18
    %s22 = sphi 0, %s19
    %s23 = sphi 0, %s20
    %s24 = sphi 0, %s21
    %s40 = sphi 0, %s42
    %s43 = sphi 0, %s40
    %s44 = sphi 0, %s43
    %s60 = sphi 0, %s44
    %s68 = sphi 0, %s70
    %s71 = sphi 0, %s68
    %s72 = sphi 0, %s71
    %s88 = sphi 0, %s72
    %s96 = sphi 0, %s98
    %s99 = sphi 0, %s96
    %s100 = sphi 0, %s99
    %s116 = sphi 0, %s100
    %s124 = sphi 0, %s126
    %s127 = sphi 0, %s124
    %s128 = sphi 0, %s127
    %s144 = sphi 0, %s128
  $region4: #{multi_head_attention_forward.4} parent=0 // loop_header_branch
    %12 = sbr.rel (%p10) target = $region8
  $region5: #{multi_head_attention_forward.4} parent=0 // loop_body
    %s14 = ssub.s32 %s9, 1
    %s15 = ssub.s32 %s9, 2
    %s25 = sadd.s32 1, %s18
    %p26 = scmp.ge.s32.totalorder %s25, 1
    %s27 = scalar_select %p26, 0, %s25
    %s28 = sadd.s32 1, %s17
    %s29 = scalar_select %p26, %s28, %s17
    %p30 = scmp.ge.s32.totalorder %s29, 1
    %s31 = scalar_select %p30, 0, %s29
    %s32 = sadd.s32 1, %s16
    %s33 = scalar_select %p30, %s32, %s16
    %p34 = scmp.ge.s32.totalorder %s33, 2
    %s35 = scalar_select %p34, 0, %s33
    %s36 = ssub.s32 %s16, %s35
    %s37 = ssub.s32 %s17, %s31
    %s38 = sor.u32 %s36, %s37
    %p39 = scmp.eq.s32.totalorder %s38, 0
    %s41 = sadd.s32 %s40, 1
    %s42 = scalar_select %p39, %s40, %s41
    %p45 = pneg %p39
    %p46 = scmp.eq.s32.totalorder %s9, 1
    %p47 = por %p45, %p46
    %p48 = scmp.ne.s32.totalorder %s40, %s43
    %p49 = scmp.eq.s32.totalorder %s9, 0
    %p50 = por %p48, %p49
    %p51 = scmp.ne.s32.totalorder %s40, %s43
    %p52 = scmp.eq.s32.totalorder %s14, 1
    %p53 = por %p51, %p52
    %p54 = scmp.ne.s32.totalorder %s43, %s44
    %p55 = scmp.eq.s32.totalorder %s14, 0
    %p56 = por %p54, %p55
    %p57 = scmp.ne.s32.totalorder %s43, %s44
    %p58 = scmp.eq.s32.totalorder %s15, 1
    %p59 = por %p57, %p58
    %p61 = scmp.ne.s32.totalorder %s44, %s60
    %p62 = scmp.eq.s32.totalorder %s15, 0
    %p63 = por %p61, %p62
    %s64 = ssub.s32 %s16, %s35
    %s65 = ssub.s32 %s18, %s27
    %s66 = sor.u32 %s64, %s65
    %p67 = scmp.eq.s32.totalorder %s66, 0
    %s69 = sadd.s32 %s68, 1
    %s70 = scalar_select %p67, %s68, %s69
    %p73 = pneg %p67
    %p74 = scmp.eq.s32.totalorder %s9, 1
    %p75 = por %p73, %p74
    %p76 = scmp.ne.s32.totalorder %s68, %s71
    %p77 = scmp.eq.s32.totalorder %s9, 0
    %p78 = por %p76, %p77
    %p79 = scmp.ne.s32.totalorder %s68, %s71
    %p80 = scmp.eq.s32.totalorder %s14, 1
    %p81 = por %p79, %p80
    %p82 = scmp.ne.s32.totalorder %s71, %s72
    %p83 = scmp.eq.s32.totalorder %s14, 0
    %p84 = por %p82, %p83
    %p85 = scmp.ne.s32.totalorder %s71, %s72
    %p86 = scmp.eq.s32.totalorder %s15, 1
    %p87 = por %p85, %p86
    %p89 = scmp.ne.s32.totalorder %s72, %s88
    %p90 = scmp.eq.s32.totalorder %s15, 0
    %p91 = por %p89, %p90
    %s92 = ssub.s32 %s16, %s35
    %s93 = ssub.s32 %s18, %s27
    %s94 = sor.u32 %s92, %s93
    %p95 = scmp.eq.s32.totalorder %s94, 0
    %s97 = sadd.s32 %s96, 1
    %s98 = scalar_select %p95, %s96, %s97
    %p101 = pneg %p95
    %p102 = scmp.eq.s32.totalorder %s9, 1
    %p103 = por %p101, %p102
    %p104 = scmp.ne.s32.totalorder %s96, %s99
    %p105 = scmp.eq.s32.totalorder %s9, 0
    %p106 = por %p104, %p105
    %p107 = scmp.ne.s32.totalorder %s96, %s99
    %p108 = scmp.eq.s32.totalorder %s14, 1
    %p109 = por %p107, %p108
    %p110 = scmp.ne.s32.totalorder %s99, %s100
    %p111 = scmp.eq.s32.totalorder %s14, 0
    %p112 = por %p110, %p111
    %p113 = scmp.ne.s32.totalorder %s99, %s100
    %p114 = scmp.eq.s32.totalorder %s15, 1
    %p115 = por %p113, %p114
    %p117 = scmp.ne.s32.totalorder %s100, %s116
    %p118 = scmp.eq.s32.totalorder %s15, 0
    %p119 = por %p117, %p118
    %s120 = ssub.s32 %s16, %s35
    %s121 = ssub.s32 %s17, %s31
    %s122 = sor.u32 %s120, %s121
    %p123 = scmp.eq.s32.totalorder %s122, 0
    %s125 = sadd.s32 %s124, 1
    %s126 = scalar_select %p123, %s124, %s125
    %p129 = pneg %p123
    %p130 = scmp.eq.s32.totalorder %s9, 1
    %p131 = por %p129, %p130
    %p132 = scmp.ne.s32.totalorder %s124, %s127
    %p133 = scmp.eq.s32.totalorder %s9, 0
    %p134 = por %p132, %p133
    %p135 = scmp.ne.s32.totalorder %s124, %s127
    %p136 = scmp.eq.s32.totalorder %s14, 1
    %p137 = por %p135, %p136
    %p138 = scmp.ne.s32.totalorder %s127, %s128
    %p139 = scmp.eq.s32.totalorder %s14, 0
    %p140 = por %p138, %p139
    %p141 = scmp.ne.s32.totalorder %s127, %s128
    %p142 = scmp.eq.s32.totalorder %s15, 1
    %p143 = por %p141, %p142
    %p145 = scmp.ne.s32.totalorder %s128, %s144
    %p146 = scmp.eq.s32.totalorder %s15, 0
    %p147 = por %p145, %p146
    %p148 = scmp.le.s32.totalorder 1, %s9
    %p149 = scmp.lt.s32.totalorder %s9, 3
    %p150 = pnand %p148, %p149
    %p151 = pneg %p150
    // Predicated region
    $region9: #{multi_head_attention_forward.4} parent=5 // pred_check
      _
    $region10: #{multi_head_attention_forward.4} parent=5 // pred_check_branch
      %153 = sbr.rel (%p150) target = $region12
    $region11: #{multi_head_attention_forward.4} parent=5 // pred_region
      %s154 = ssub.s32 %s9, 1
    $region12: #{multi_head_attention_forward.4} parent=5 // pred_fallthru
      _
    %p155 = scmp.lt.s32.totalorder %s9, 2
    // Predicated region
    $region13: #{multi_head_attention_forward.4} parent=5 // pred_check
      %p156 = pneg %p155
    $region14: #{multi_head_attention_forward.4} parent=5 // pred_check_branch
      %158 = sbr.rel (%p156) target = $region16
    $region15: #{multi_head_attention_forward.4} parent=5 // pred_region
      // Predicated region
      $region17: #{multi_head_attention_forward.4} parent=15 // pred_check
        %p159 = pneg %p50
      $region18: #{multi_head_attention_forward.4} parent=15 // pred_check_branch
        %161 = sbr.rel (%p159) target = $region20
      $region19: #{multi_head_attention_forward.4} parent=15 // pred_region
        %s162 = smul.u32 2, %s17
        %p163 = scmp.lt.s32.totalorder %s16, 1
        %s164 = scalar_select %p163, %s16, 1
        %p165 = scmp.lt.s32.totalorder %s162, 1
        %s166 = scalar_select %p165, %s162, 1
        %s167 = smul.addr %s166, 4
        %s168 = smul.addr %s164, 8
        %s169 = sadd.s32 %s167, %s168
        %s170 = smul.addr %s169, 4
        %s171 = scalar_lea.vmem %s0, %s170
        %s172 = smul.u32 2, %s17
      $region20: #{multi_head_attention_forward.4} parent=15 // pred_fallthru
        _
      // Predicated region
      $region21: #{multi_head_attention_forward.4} parent=15 // pred_check
        %p173 = pneg %p78
      $region22: #{multi_head_attention_forward.4} parent=15 // pred_check_branch
        %175 = sbr.rel (%p173) target = $region24
      $region23: #{multi_head_attention_forward.4} parent=15 // pred_region
        %p176 = scmp.lt.s32.totalorder %s16, 1
        %s177 = scalar_select %p176, %s16, 1
        %p178 = scmp.lt.s32.totalorder %s18, 0
        %s179 = scalar_select %p178, %s18, 0
        %s180 = smul.addr %s177, 64
        %s181 = sadd.s32 %s179, %s180
        %s182 = smul.addr %s181, 4
        %s183 = scalar_lea.vmem %s1, %s182
      $region24: #{multi_head_attention_forward.4} parent=15 // pred_fallthru
        _
      // Predicated region
      $region25: #{multi_head_attention_forward.4} parent=15 // pred_check
        %p184 = pneg %p106
      $region26: #{multi_head_attention_forward.4} parent=15 // pred_check_branch
        %186 = sbr.rel (%p184) target = $region28
      $region27: #{multi_head_attention_forward.4} parent=15 // pred_region
        %s187 = smul.u32 2, %s18
        %p188 = scmp.lt.s32.totalorder %s16, 1
        %s189 = scalar_select %p188, %s16, 1
        %p190 = scmp.lt.s32.totalorder %s187, 1
        %s191 = scalar_select %p190, %s187, 1
        %s192 = smul.addr %s191, 4
        %s193 = smul.addr %s189, 8
        %s194 = sadd.s32 %s192, %s193
        %s195 = smul.addr %s194, 4
        %s196 = scalar_lea.vmem %s2, %s195
        %s197 = smul.u32 2, %s18
      $region28: #{multi_head_attention_forward.4} parent=15 // pred_fallthru
        _
    $region16: #{multi_head_attention_forward.4} parent=5 // pred_fallthru
      _
    %p198 = scmp.le.s32.totalorder 1, %s9
    %p199 = scmp.lt.s32.totalorder %s9, 3
    %p200 = pnand %p198, %p199
    %p201 = pneg %p200
    // Predicated region
    $region29: #{multi_head_attention_forward.4} parent=5 // pred_check
      _
    $region30: #{multi_head_attention_forward.4} parent=5 // pred_check_branch
      %203 = sbr.rel (%p200) target = $region32
    $region31: #{multi_head_attention_forward.4} parent=5 // pred_region
      %s204 = ssub.s32 %s9, 1
      %s205 = smul.u32 2, %s20
      %p206 = scmp.lt.s32.totalorder %s19, 1
      %s207 = scalar_select %p206, %s19, 1
      %p208 = scmp.lt.s32.totalorder %s205, 1
      %s209 = scalar_select %p208, %s205, 1
      %s210 = smul.addr %s209, 4
      %s211 = smul.addr %s207, 8
      %s212 = sadd.s32 %s210, %s211
      %s213 = smul.addr %s212, 4
      %s214 = scalar_lea.vmem %s0, %s213
      %p215 = pneg %p56
      %p216 = pneg %p53
      %p217 = scmp.lt.s32.totalorder %s19, 1
      %s218 = scalar_select %p217, %s19, 1
      %p219 = scmp.lt.s32.totalorder %s21, 0
      %s220 = scalar_select %p219, %s21, 0
      %s221 = smul.addr %s218, 64
      %s222 = sadd.s32 %s220, %s221
      %s223 = smul.addr %s222, 4
      %s224 = scalar_lea.vmem %s1, %s223
      %p225 = pneg %p84
      %p226 = pneg %p81
      %s227 = smul.u32 2, %s21
      %p228 = scmp.lt.s32.totalorder %s19, 1
      %s229 = scalar_select %p228, %s19, 1
      %p230 = scmp.lt.s32.totalorder %s227, 1
      %s231 = scalar_select %p230, %s227, 1
      %s232 = smul.addr %s231, 4
      %s233 = smul.addr %s229, 8
      %s234 = sadd.s32 %s232, %s233
      %s235 = smul.addr %s234, 4
      %s236 = scalar_lea.vmem %s2, %s235
      %p237 = pneg %p112
      %p238 = pneg %p109
      %p239 = pneg %p140
      %p240 = pneg %p137
      %s241 = smul.u32 2, %s20
      %p242 = scmp.lt.s32.totalorder %s19, 1
      %s243 = scalar_select %p242, %s19, 1
      %p244 = scmp.lt.s32.totalorder %s241, 1
      %s245 = scalar_select %p244, %s241, 1
      %s246 = smul.addr %s245, 4
      %s247 = smul.addr %s243, 8
      %s248 = sadd.s32 %s246, %s247
      %s249 = smul.addr %s248, 4
      %s250 = scalar_lea.vmem %s3, %s249
      %s251 = smul.u32 2, %s20
      %p252 = scmp.lt.s32.totalorder %s19, 1
      %s253 = scalar_select %p252, %s19, 1
      %p254 = scmp.lt.s32.totalorder %s251, 1
      %s255 = scalar_select %p254, %s251, 1
      %s256 = smul.addr %s255, 4
      %s257 = smul.addr %s253, 8
      %s258 = sadd.s32 %s256, %s257
      %s259 = smul.addr %s258, 4
      %s260 = scalar_lea.vmem %s0, %s259
      %s261 = smul.u32 2, %s20
      %p262 = scmp.lt.s32.totalorder %s19, 1
      %s263 = scalar_select %p262, %s19, 1
      %p264 = scmp.lt.s32.totalorder %s21, 0
      %s265 = scalar_select %p264, %s21, 0
      %s266 = smul.addr %s263, 64
      %s267 = sadd.s32 %s265, %s266
      %s268 = smul.addr %s267, 4
      %s269 = scalar_lea.vmem %s1, %s268
      %s270 = smul.u32 2, %s21
      %p271 = scmp.lt.s32.totalorder %s19, 1
      %s272 = scalar_select %p271, %s19, 1
      %p273 = scmp.lt.s32.totalorder %s270, 1
      %s274 = scalar_select %p273, %s270, 1
      %s275 = smul.addr %s274, 4
      %s276 = smul.addr %s272, 8
      %s277 = sadd.s32 %s275, %s276
      %s278 = smul.addr %s277, 4
      %s279 = scalar_lea.vmem %s2, %s278
      %s280 = smul.u32 2, %s21
      %s281 = smul.u32 2, %s20
      %p282 = scmp.lt.s32.totalorder %s19, 1
      %s283 = scalar_select %p282, %s19, 1
      %p284 = scmp.lt.s32.totalorder %s281, 1
      %s285 = scalar_select %p284, %s281, 1
      %s286 = smul.addr %s285, 4
      %s287 = smul.addr %s283, 8
      %s288 = sadd.s32 %s286, %s287
      %s289 = smul.addr %s288, 4
      %s290 = scalar_lea.vmem %s3, %s289
      %s291 = smul.u32 2, %s20
      %p294 = scmp.eq.s32.totalorder %s21, 0
      // Predicated region
      $region33: #{multi_head_attention_forward.4} parent=31 // pred_check
        %p295 = pneg %p294
      $region34: #{multi_head_attention_forward.4} parent=31 // pred_check_branch
        %297 = sbr.rel (%p295) target = $region36
      $region35: #{multi_head_attention_forward.4} parent=31 // pred_region
        %298 = vst [vmem:[#allocation2] sm:$0xff] 0.0
        %299 = vst [vmem:[#allocation2 + $0x8] sm:$0xff] 0.0
        %300 = vst [vmem:[#allocation2 + $0x10] sm:$0xff] 0.0
        %301 = vst [vmem:[#allocation2 + $0x18] sm:$0xff] 0.0
        %302 = vst [vmem:[#allocation2 + $0x20] sm:$0xff] 0.0
        %303 = vst [vmem:[#allocation2 + $0x28] sm:$0xff] 0.0
        %304 = vst [vmem:[#allocation2 + $0x30] sm:$0xff] 0.0
        %305 = vst [vmem:[#allocation2 + $0x38] sm:$0xff] 0.0
        %vm306 = vcmask 7168
        %307 = vst.msk [vmem:[#allocation3] sm:$0xff] %vm306, -inf
        %308 = vst.msk [vmem:[#allocation3 + $0x8] sm:$0xff] %vm306, -inf
        %309 = vst.msk [vmem:[#allocation3 + $0x10] sm:$0xff] %vm306, -inf
        %310 = vst.msk [vmem:[#allocation3 + $0x18] sm:$0xff] %vm306, -inf
        %311 = vst.msk [vmem:[#allocation3 + $0x20] sm:$0xff] %vm306, -inf
        %312 = vst.msk [vmem:[#allocation3 + $0x28] sm:$0xff] %vm306, -inf
        %313 = vst.msk [vmem:[#allocation3 + $0x30] sm:$0xff] %vm306, -inf
        %314 = vst.msk [vmem:[#allocation3 + $0x38] sm:$0xff] %vm306, -inf
        %315 = vst.msk [vmem:[#allocation3 + $0x40] sm:$0xff] %vm306, -inf
        %316 = vst.msk [vmem:[#allocation3 + $0x48] sm:$0xff] %vm306, -inf
        %317 = vst.msk [vmem:[#allocation3 + $0x50] sm:$0xff] %vm306, -inf
        %318 = vst.msk [vmem:[#allocation3 + $0x58] sm:$0xff] %vm306, -inf
        %319 = vst.msk [vmem:[#allocation3 + $0x60] sm:$0xff] %vm306, -inf
        %320 = vst.msk [vmem:[#allocation3 + $0x68] sm:$0xff] %vm306, -inf
        %321 = vst.msk [vmem:[#allocation3 + $0x70] sm:$0xff] %vm306, -inf
        %322 = vst.msk [vmem:[#allocation3 + $0x78] sm:$0xff] %vm306, -inf
        %323 = vst.msk [vmem:[#allocation4] sm:$0xff] %vm306, 0.0
        %324 = vst.msk [vmem:[#allocation4 + $0x8] sm:$0xff] %vm306, 0.0
        %325 = vst.msk [vmem:[#allocation4 + $0x10] sm:$0xff] %vm306, 0.0
        %326 = vst.msk [vmem:[#allocation4 + $0x18] sm:$0xff] %vm306, 0.0
        %327 = vst.msk [vmem:[#allocation4 + $0x20] sm:$0xff] %vm306, 0.0
        %328 = vst.msk [vmem:[#allocation4 + $0x28] sm:$0xff] %vm306, 0.0
        %329 = vst.msk [vmem:[#allocation4 + $0x30] sm:$0xff] %vm306, 0.0
        %330 = vst.msk [vmem:[#allocation4 + $0x38] sm:$0xff] %vm306, 0.0
        %331 = vst.msk [vmem:[#allocation4 + $0x40] sm:$0xff] %vm306, 0.0
        %332 = vst.msk [vmem:[#allocation4 + $0x48] sm:$0xff] %vm306, 0.0
        %333 = vst.msk [vmem:[#allocation4 + $0x50] sm:$0xff] %vm306, 0.0
        %334 = vst.msk [vmem:[#allocation4 + $0x58] sm:$0xff] %vm306, 0.0
        %335 = vst.msk [vmem:[#allocation4 + $0x60] sm:$0xff] %vm306, 0.0
        %336 = vst.msk [vmem:[#allocation4 + $0x68] sm:$0xff] %vm306, 0.0
        %337 = vst.msk [vmem:[#allocation4 + $0x70] sm:$0xff] %vm306, 0.0
        %338 = vst.msk [vmem:[#allocation4 + $0x78] sm:$0xff] %vm306, 0.0
      $region36: #{multi_head_attention_forward.4} parent=31 // pred_fallthru
        _
      %v339 = vld [vmem:[%s260] sm:$0xff]
      %v340 = vld [vmem:[%s260 + $0x8] sm:$0xff]
      %v341 = vld [vmem:[%s260 + $0x10] sm:$0xff]
      %v342 = vld [vmem:[%s260 + $0x18] sm:$0xff]
      %v343 = vld [vmem:[%s269] sm:$0xf]
      %v344 = vld [vmem:[%s269 + $0x4] sm:$0xf]
      %v345 = vld [vmem:[%s269 + $0x8] sm:$0xf]
      %v346 = vld [vmem:[%s269 + $0xc] sm:$0xf]
      %v347 = vld [vmem:[%s269 + $0x10] sm:$0xf]
      %v348 = vld [vmem:[%s269 + $0x14] sm:$0xf]
      %v349 = vld [vmem:[%s269 + $0x18] sm:$0xf]
      %v350 = vld [vmem:[%s269 + $0x1c] sm:$0xf]
      %v351 = vld [vmem:[%s269 + $0x20] sm:$0xf]
      %v352 = vld [vmem:[%s269 + $0x24] sm:$0xf]
      %v353 = vld [vmem:[%s269 + $0x28] sm:$0xf]
      %v354 = vld [vmem:[%s269 + $0x2c] sm:$0xf]
      %v355 = vld [vmem:[%s269 + $0x30] sm:$0xf]
      %v356 = vld [vmem:[%s269 + $0x34] sm:$0xf]
      %v357 = vld [vmem:[%s269 + $0x38] sm:$0xf]
      %v358 = vld [vmem:[%s269 + $0x3c] sm:$0xf]
      %v359 = vld [vmem:[%s269 + $0x40] sm:$0xf]
      %v360 = vld [vmem:[%s269 + $0x44] sm:$0xf]
      %v361 = vld [vmem:[%s269 + $0x48] sm:$0xf]
      %v362 = vld [vmem:[%s269 + $0x4c] sm:$0xf]
      %v363 = vld [vmem:[%s269 + $0x50] sm:$0xf]
      %v364 = vld [vmem:[%s269 + $0x54] sm:$0xf]
      %v365 = vld [vmem:[%s269 + $0x58] sm:$0xf]
      %v366 = vld [vmem:[%s269 + $0x5c] sm:$0xf]
      %v367 = vld [vmem:[%s269 + $0x60] sm:$0xf]
      %v368 = vld [vmem:[%s269 + $0x64] sm:$0xf]
      %v369 = vld [vmem:[%s269 + $0x68] sm:$0xf]
      %v370 = vld [vmem:[%s269 + $0x6c] sm:$0xf]
      %v371 = vld [vmem:[%s269 + $0x70] sm:$0xf]
      %v372 = vld [vmem:[%s269 + $0x74] sm:$0xf]
      %v373 = vld [vmem:[%s269 + $0x78] sm:$0xf]
      %v374 = vld [vmem:[%s269 + $0x7c] sm:$0xf]
      %v375 = vld [vmem:[%s269 + $0x80] sm:$0xf]
      %v376 = vld [vmem:[%s269 + $0x84] sm:$0xf]
      %v377 = vld [vmem:[%s269 + $0x88] sm:$0xf]
      %v378 = vld [vmem:[%s269 + $0x8c] sm:$0xf]
      %v379 = vld [vmem:[%s269 + $0x90] sm:$0xf]
      %v380 = vld [vmem:[%s269 + $0x94] sm:$0xf]
      %v381 = vld [vmem:[%s269 + $0x98] sm:$0xf]
      %v382 = vld [vmem:[%s269 + $0x9c] sm:$0xf]
      %v383 = vld [vmem:[%s269 + $0xa0] sm:$0xf]
      %v384 = vld [vmem:[%s269 + $0xa4] sm:$0xf]
      %v385 = vld [vmem:[%s269 + $0xa8] sm:$0xf]
      %v386 = vld [vmem:[%s269 + $0xac] sm:$0xf]
      %v387 = vld [vmem:[%s269 + $0xb0] sm:$0xf]
      %v388 = vld [vmem:[%s269 + $0xb4] sm:$0xf]
      %v389 = vld [vmem:[%s269 + $0xb8] sm:$0xf]
      %v390 = vld [vmem:[%s269 + $0xbc] sm:$0xf]
      %v391 = vld [vmem:[%s269 + $0xc0] sm:$0xf]
      %v392 = vld [vmem:[%s269 + $0xc4] sm:$0xf]
      %v393 = vld [vmem:[%s269 + $0xc8] sm:$0xf]
      %v394 = vld [vmem:[%s269 + $0xcc] sm:$0xf]
      %v395 = vld [vmem:[%s269 + $0xd0] sm:$0xf]
      %v396 = vld [vmem:[%s269 + $0xd4] sm:$0xf]
      %v397 = vld [vmem:[%s269 + $0xd8] sm:$0xf]
      %v398 = vld [vmem:[%s269 + $0xdc] sm:$0xf]
      %v399 = vld [vmem:[%s269 + $0xe0] sm:$0xf]
      %v400 = vld [vmem:[%s269 + $0xe4] sm:$0xf]
      %v401 = vld [vmem:[%s269 + $0xe8] sm:$0xf]
      %v402 = vld [vmem:[%s269 + $0xec] sm:$0xf]
      %v403 = vld [vmem:[%s269 + $0xf0] sm:$0xf]
      %v404 = vld [vmem:[%s269 + $0xf4] sm:$0xf]
      %v405 = vld [vmem:[%s269 + $0xf8] sm:$0xf]
      %v406 = vld [vmem:[%s269 + $0xfc] sm:$0xf]
      %v407 = vld [vmem:[%s279] sm:$0xff]
      %v408 = vld [vmem:[%s279 + $0x8] sm:$0xff]
      %v409 = vld [vmem:[%s279 + $0x10] sm:$0xff]
      %v410 = vld [vmem:[%s279 + $0x18] sm:$0xff]
      %v411 = vmul.bf16 %v339, 1040203264
      %v412 = vmul.bf16 %v341, 1040203264
      %v415 = vunpack.c.l.b16 %v411
      %v416 = vunpack.c.l.b16 %v412
      %v417 = vpack.c.b16 %v416, %v415
      %v426 = vunpack.c.l.b16 %v343
      %v427 = vunpack.c.l.b16 %v344
      %v428 = vunpack.c.l.b16 %v345
      %v429 = vunpack.c.l.b16 %v346
      %v430 = vunpack.c.l.b16 %v347
      %v431 = vunpack.c.l.b16 %v348
      %v432 = vunpack.c.l.b16 %v349
      %v433 = vunpack.c.l.b16 %v350
      %v434 = vpack.c.b16 %v427, %v426
      %v435 = vpack.c.b16 %v429, %v428
      %v436 = vpack.c.b16 %v431, %v430
      %v437 = vpack.c.b16 %v433, %v432
      %vm442 = vcmask 523264
      %v444 = vsel %vm442, %v417, 0
      %446 = vmatprep.subr.bf16.mxu0 0
      %447 = vmatpush1.bf16.msra.mxu0 0
      %448 = vmatprep.subr.bf16.mxu0 0
      %449 = vmatpush1.bf16.msra.mxu0 0
      %450 = vmatprep.subr.bf16.mxu0 0
      %451 = vmatpush1.bf16.msra.mxu0 0
      %452 = vmatprep.subr.bf16.mxu0 0
      %453 = vmatpush1.bf16.msra.mxu0 0
      %454 = vmatprep.subr.bf16.mxu0 0
      %455 = vmatpush1.bf16.msra.mxu0 %v437
      %456 = vmatprep.subr.bf16.mxu0 0
      %457 = vmatpush1.bf16.msra.mxu0 %v436
      %458 = vmatprep.subr.bf16.mxu0 0
      %459 = vmatpush1.bf16.msra.mxu0 %v435
      %460 = vmatprep.subr.bf16.mxu0 0
      %461 = vmatpush1.bf16.msra.mxu0 %v434
      %462 = vmatprep.subr.bf16.mxu0 0
      %463 = vmatpush2.bf16.msra.mxu0 0
      %464 = vmatprep.subr.bf16.mxu0 0
      %465 = vmatpush2.bf16.msra.mxu0 0
      %466 = vmatprep.subr.bf16.mxu0 0
      %467 = vmatpush2.bf16.msra.mxu0 0
      %468 = vmatprep.subr.bf16.mxu0 0
      %469 = vmatpush2.bf16.msra.mxu0 0
      %470 = vmatprep.subr.bf16.mxu0 0
      %471 = vmatpush2.bf16.msra.mxu0 0
      %472 = vmatprep.subr.bf16.mxu0 0
      %473 = vmatpush2.bf16.msra.mxu0 0
      %474 = vmatprep.subr.bf16.mxu0 0
      %475 = vmatpush2.bf16.msra.mxu0 0
      %476 = vmatprep.subr.bf16.mxu0 0
      %477 = vmatpush2.bf16.msra.mxu0 0
      %478 = vmatprep.mubr.bf16.mxu0 0
      %479 = vmatmul.mubr.bf16.gmra.mxu0 %v444
      %v480 = vpop.f32.mrf.mxu0
      %v481 = vadd.f32 0.0, %v480
      %v482 = vpop.f32.mrf.mxu0
      %v483 = vpop.f32.mrf.mxu0
      %v484 = vadd.f32 0.0, %v483
      %v485 = vpop.f32.mrf.mxu0
      %486 = vdwg.mxu0
      %v487 = vld [vmem:[#allocation3] sm:$0xff]
      %v488 = vld [vmem:[#allocation3 + $0x8] sm:$0xff]
      %vm489 = vcmask 130048
      %v490 = vsel %vm489, %v481, -inf
      %491 = vmax.xlane.f32.xlu0 %v490
      %v492 = vpop.xlane.xlu0 %491
      %v493 = vsel %vm489, %v484, -inf
      %494 = vmax.xlane.f32.xlu0 %v493
      %v495 = vpop.xlane.xlu0 %494
      %v496 = vmax.f32 %v487, %v492
      %v497 = vmax.f32 %v488, %v495
      %v498 = vsub.f32 %v487, %v496
      %v499 = vsub.f32 %v488, %v497
      %v500 = vmul.f32 %v498, 1.442695
      %v501 = vpow.pop %v500
      %v502 = vmul.f32 %v499, 1.442695
      %v503 = vpow.pop %v502
      %505 = vset.pattern.permute.xlu0 0
      %506 = vperm.xlu0 %505, %v496
      %v507 = vpop.permute.xlu0 %506
      %510 = vset.pattern.permute.xlu0 0
      %511 = vperm.xlu0 %510, %v497
      %v512 = vpop.permute.xlu0 %511
      %v514 = vsub.f32 %v481, %v507
      %v515 = vsub.f32 %v484, %v512
      %v516 = vmul.f32 %v514, 1.442695
      %v517 = vpow.pop %v516
      %v518 = vmul.f32 %v515, 1.442695
      %v519 = vpow.pop %v518
      %v520 = vld [vmem:[#allocation4] sm:$0xff]
      %v521 = vld [vmem:[#allocation4 + $0x8] sm:$0xff]
      %v522 = vmul.f32 %v501, %v520
      %v523 = vmul.f32 %v503, %v521
      %v524 = vsel %vm489, %v517, 0.0
      %525 = vadd.xlane.f32.xlu0 %v524
      %v526 = vpop.xlane.xlu0 %525
      %v527 = vsel %vm489, %v519, 0.0
      %528 = vadd.xlane.f32.xlu0 %v527
      %v529 = vpop.xlane.xlu0 %528
      %v530 = vadd.f32 %v522, %v526
      %v531 = vadd.f32 %v523, %v529
      %vm532 = vcmask 7168
      %533 = vst.msk [vmem:[#allocation4] sm:$0xff] %vm532, %v530
      %534 = vst.msk [vmem:[#allocation4 + $0x8] sm:$0xff] %vm532, %v531
      %v535 = vpack.c.bf16 %v519, %v517
      %v538 = vunpack.c.l.b16 %v407
      %v539 = vunpack.c.l.b16 %v409
      %v540 = vpack.c.b16 %v539, %v538
      %v543 = vsel %vm489, %v535, 0
      %545 = vmatprep.subr.bf16.mxu0 0
      %546 = vmatpush1.bf16.msra.mxu0 0
      %547 = vmatprep.subr.bf16.mxu0 0
      %548 = vmatpush1.bf16.msra.mxu0 0
      %549 = vmatprep.subr.bf16.mxu0 0
      %550 = vmatpush1.bf16.msra.mxu0 0
      %551 = vmatprep.subr.bf16.mxu0 0
      %552 = vmatpush1.bf16.msra.mxu0 0
      %553 = vmatprep.subr.bf16.mxu0 0
      %554 = vmatpush1.bf16.msra.mxu0 0
      %555 = vmatprep.subr.bf16.mxu0 0
      %556 = vmatpush1.bf16.msra.mxu0 0
      %557 = vmatprep.subr.bf16.mxu0 0
      %558 = vmatpush1.bf16.msra.mxu0 0
      %559 = vmatprep.subr.bf16.mxu0 0
      %560 = vmatpush1.bf16.msra.mxu0 %v540
      %561 = vmatprep.subr.bf16.mxu0 0
      %562 = vmatpush2.bf16.msra.mxu0 0
      %563 = vmatprep.subr.bf16.mxu0 0
      %564 = vmatpush2.bf16.msra.mxu0 0
      %565 = vmatprep.subr.bf16.mxu0 0
      %566 = vmatpush2.bf16.msra.mxu0 0
      %567 = vmatprep.subr.bf16.mxu0 0
      %568 = vmatpush2.bf16.msra.mxu0 0
      %569 = vmatprep.subr.bf16.mxu0 0
      %570 = vmatpush2.bf16.msra.mxu0 0
      %571 = vmatprep.subr.bf16.mxu0 0
      %572 = vmatpush2.bf16.msra.mxu0 0
      %573 = vmatprep.subr.bf16.mxu0 0
      %574 = vmatpush2.bf16.msra.mxu0 0
      %575 = vmatprep.subr.bf16.mxu0 0
      %576 = vmatpush2.bf16.msra.mxu0 0
      %577 = vmatprep.mubr.bf16.mxu0 0
      %578 = vmatmul.mubr.bf16.gmra.mxu0 %v543
      %v579 = vpop.f32.mrf.mxu0
      %v580 = vadd.f32 0.0, %v579
      %v581 = vpop.f32.mrf.mxu0
      %v582 = vpop.f32.mrf.mxu0
      %v583 = vadd.f32 0.0, %v582
      %v584 = vpop.f32.mrf.mxu0
      %585 = vdwg.mxu0
      %v586 = vld [vmem:[#allocation2] sm:$0xff]
      %v587 = vld [vmem:[#allocation2 + $0x20] sm:$0xff]
      %589 = vset.pattern.permute.xlu0 0
      %590 = vperm.xlu0 %589, %v501
      %v591 = vpop.permute.xlu0 %590
      %594 = vset.pattern.permute.xlu0 0
      %595 = vperm.xlu0 %594, %v503
      %v596 = vpop.permute.xlu0 %595
      %v598 = vmul.f32 %v591, %v586
      %v599 = vmul.f32 %v596, %v587
      %v600 = vadd.f32 %v598, %v580
      %v601 = vadd.f32 %v599, %v583
      %602 = vst.msk [vmem:[#allocation2] sm:$0xff] %vm442, %v600
      %603 = vst.msk [vmem:[#allocation2 + $0x20] sm:$0xff] %vm442, %v601
      %604 = vst.msk [vmem:[#allocation3] sm:$0xff] %vm532, %v496
      %605 = vst.msk [vmem:[#allocation3 + $0x8] sm:$0xff] %vm532, %v497
      %606 = vrot.lane.b32.xlu0 %v417, 64
      %v607 = vpop.permute.xlu0 %606
      %v616 = vunpack.c.l.b16 %v351
      %v617 = vunpack.c.l.b16 %v352
      %v618 = vunpack.c.l.b16 %v353
      %v619 = vunpack.c.l.b16 %v354
      %v620 = vunpack.c.l.b16 %v355
      %v621 = vunpack.c.l.b16 %v356
      %v622 = vunpack.c.l.b16 %v357
      %v623 = vunpack.c.l.b16 %v358
      %v624 = vpack.c.b16 %v617, %v616
      %v625 = vpack.c.b16 %v619, %v618
      %v626 = vpack.c.b16 %v621, %v620
      %v627 = vpack.c.b16 %v623, %v622
      %v633 = vsel %vm442, %v607, 0
      %635 = vmatprep.subr.bf16.mxu0 0
      %636 = vmatpush1.bf16.msra.mxu0 0
      %637 = vmatprep.subr.bf16.mxu0 0
      %638 = vmatpush1.bf16.msra.mxu0 0
      %639 = vmatprep.subr.bf16.mxu0 0
      %640 = vmatpush1.bf16.msra.mxu0 0
      %641 = vmatprep.subr.bf16.mxu0 0
      %642 = vmatpush1.bf16.msra.mxu0 0
      %643 = vmatprep.subr.bf16.mxu0 0
      %644 = vmatpush1.bf16.msra.mxu0 %v627
      %645 = vmatprep.subr.bf16.mxu0 0
      %646 = vmatpush1.bf16.msra.mxu0 %v626
      %647 = vmatprep.subr.bf16.mxu0 0
      %648 = vmatpush1.bf16.msra.mxu0 %v625
      %649 = vmatprep.subr.bf16.mxu0 0
      %650 = vmatpush1.bf16.msra.mxu0 %v624
      %651 = vmatprep.subr.bf16.mxu0 0
      %652 = vmatpush2.bf16.msra.mxu0 0
      %653 = vmatprep.subr.bf16.mxu0 0
      %654 = vmatpush2.bf16.msra.mxu0 0
      %655 = vmatprep.subr.bf16.mxu0 0
      %656 = vmatpush2.bf16.msra.mxu0 0
      %657 = vmatprep.subr.bf16.mxu0 0
      %658 = vmatpush2.bf16.msra.mxu0 0
      %659 = vmatprep.subr.bf16.mxu0 0
      %660 = vmatpush2.bf16.msra.mxu0 0
      %661 = vmatprep.subr.bf16.mxu0 0
      %662 = vmatpush2.bf16.msra.mxu0 0
      %663 = vmatprep.subr.bf16.mxu0 0
      %664 = vmatpush2.bf16.msra.mxu0 0
      %665 = vmatprep.subr.bf16.mxu0 0
      %666 = vmatpush2.bf16.msra.mxu0 0
      %667 = vmatprep.mubr.bf16.mxu0 0
      %668 = vmatmul.mubr.bf16.gmra.mxu0 %v633
      %v669 = vpop.f32.mrf.mxu0
      %v670 = vadd.f32 0.0, %v669
      %v671 = vpop.f32.mrf.mxu0
      %v672 = vpop.f32.mrf.mxu0
      %v673 = vadd.f32 0.0, %v672
      %v674 = vpop.f32.mrf.mxu0
      %675 = vdwg.mxu0
      %s676 = scalar_lea.vmem [#allocation3], 16
      %v677 = vld [vmem:[%s676] sm:$0xff]
      %v678 = vld [vmem:[%s676 + $0x8] sm:$0xff]
      %v679 = vsel %vm489, %v670, -inf
      %680 = vmax.xlane.f32.xlu0 %v679
      %v681 = vpop.xlane.xlu0 %680
      %v682 = vsel %vm489, %v673, -inf
      %683 = vmax.xlane.f32.xlu0 %v682
      %v684 = vpop.xlane.xlu0 %683
      %v685 = vmax.f32 %v677, %v681
      %v686 = vmax.f32 %v678, %v684
      %v687 = vsub.f32 %v677, %v685
      %v688 = vsub.f32 %v678, %v686
      %v689 = vmul.f32 %v687, 1.442695
      %v690 = vpow.pop %v689
      %v691 = vmul.f32 %v688, 1.442695
      %v692 = vpow.pop %v691
      %694 = vset.pattern.permute.xlu0 0
      %695 = vperm.xlu0 %694, %v685
      %v696 = vpop.permute.xlu0 %695
      %699 = vset.pattern.permute.xlu0 0
      %700 = vperm.xlu0 %699, %v686
      %v701 = vpop.permute.xlu0 %700
      %v703 = vsub.f32 %v670, %v696
      %v704 = vsub.f32 %v673, %v701
      %v705 = vmul.f32 %v703, 1.442695
      %v706 = vpow.pop %v705
      %v707 = vmul.f32 %v704, 1.442695
      %v708 = vpow.pop %v707
      %s709 = scalar_lea.vmem [#allocation4], 16
      %v710 = vld [vmem:[%s709] sm:$0xff]
      %v711 = vld [vmem:[%s709 + $0x8] sm:$0xff]
      %v712 = vmul.f32 %v690, %v710
      %v713 = vmul.f32 %v692, %v711
      %v714 = vsel %vm489, %v706, 0.0
      %715 = vadd.xlane.f32.xlu0 %v714
      %v716 = vpop.xlane.xlu0 %715
      %v717 = vsel %vm489, %v708, 0.0
      %718 = vadd.xlane.f32.xlu0 %v717
      %v719 = vpop.xlane.xlu0 %718
      %v720 = vadd.f32 %v712, %v716
      %v721 = vadd.f32 %v713, %v719
      %722 = vst.msk [vmem:[%s709] sm:$0xff] %vm532, %v720
      %723 = vst.msk [vmem:[%s709 + $0x8] sm:$0xff] %vm532, %v721
      %v724 = vpack.c.bf16 %v708, %v706
      %725 = vrot.lane.b32.xlu0 %v540, 64
      %v726 = vpop.permute.xlu0 %725
      %v729 = vsel %vm489, %v724, 0
      %731 = vmatprep.subr.bf16.mxu0 0
      %732 = vmatpush1.bf16.msra.mxu0 0
      %733 = vmatprep.subr.bf16.mxu0 0
      %734 = vmatpush1.bf16.msra.mxu0 0
      %735 = vmatprep.subr.bf16.mxu0 0
      %736 = vmatpush1.bf16.msra.mxu0 0
      %737 = vmatprep.subr.bf16.mxu0 0
      %738 = vmatpush1.bf16.msra.mxu0 0
      %739 = vmatprep.subr.bf16.mxu0 0
      %740 = vmatpush1.bf16.msra.mxu0 0
      %741 = vmatprep.subr.bf16.mxu0 0
      %742 = vmatpush1.bf16.msra.mxu0 0
      %743 = vmatprep.subr.bf16.mxu0 0
      %744 = vmatpush1.bf16.msra.mxu0 0
      %745 = vmatprep.subr.bf16.mxu0 0
      %746 = vmatpush1.bf16.msra.mxu0 %v726
      %747 = vmatprep.subr.bf16.mxu0 0
      %748 = vmatpush2.bf16.msra.mxu0 0
      %749 = vmatprep.subr.bf16.mxu0 0
      %750 = vmatpush2.bf16.msra.mxu0 0
      %751 = vmatprep.subr.bf16.mxu0 0
      %752 = vmatpush2.bf16.msra.mxu0 0
      %753 = vmatprep.subr.bf16.mxu0 0
      %754 = vmatpush2.bf16.msra.mxu0 0
      %755 = vmatprep.subr.bf16.mxu0 0
      %756 = vmatpush2.bf16.msra.mxu0 0
      %757 = vmatprep.subr.bf16.mxu0 0
      %758 = vmatpush2.bf16.msra.mxu0 0
      %759 = vmatprep.subr.bf16.mxu0 0
      %760 = vmatpush2.bf16.msra.mxu0 0
      %761 = vmatprep.subr.bf16.mxu0 0
      %762 = vmatpush2.bf16.msra.mxu0 0
      %763 = vmatprep.mubr.bf16.mxu0 0
      %764 = vmatmul.mubr.bf16.gmra.mxu0 %v729
      %v765 = vpop.f32.mrf.mxu0
      %v766 = vadd.f32 0.0, %v765
      %v767 = vpop.f32.mrf.mxu0
      %v768 = vpop.f32.mrf.mxu0
      %v769 = vadd.f32 0.0, %v768
      %v770 = vpop.f32.mrf.mxu0
      %771 = vdwg.mxu0
      %v772 = vld [vmem:[#allocation2] sm:$0xff]
      %v773 = vld [vmem:[#allocation2 + $0x20] sm:$0xff]
      %775 = vset.pattern.permute.xlu0 0
      %776 = vperm.xlu0 %775, %v690
      %v777 = vpop.permute.xlu0 %776
      %780 = vset.pattern.permute.xlu0 0
      %781 = vperm.xlu0 %780, %v692
      %v782 = vpop.permute.xlu0 %781
      %v784 = vmul.f32 %v777, %v772
      %v785 = vmul.f32 %v782, %v773
      %788 = vrot.lane.b32.xlu0 %v766, 64
      %v789 = vpop.permute.xlu0 %788
      %790 = vrot.lane.b32.xlu0 %v769, 64
      %v791 = vpop.permute.xlu0 %790
      %v794 = vadd.f32 %v784, %v789
      %v795 = vadd.f32 %v785, %v791
      %vm796 = vcmask 1048064
      %797 = vst.msk [vmem:[#allocation2] sm:$0xff] %vm796, %v794
      %798 = vst.msk [vmem:[#allocation2 + $0x20] sm:$0xff] %vm796, %v795
      %799 = vst.msk [vmem:[%s676] sm:$0xff] %vm532, %v685
      %800 = vst.msk [vmem:[%s676 + $0x8] sm:$0xff] %vm532, %v686
      %v803 = vrot.slane %v339, 4
      %v804 = vrot.slane %v341, 4
      %v807 = vmul.bf16 %v803, 1040203264
      %v808 = vmul.bf16 %v804, 1040203264
      %v811 = vunpack.c.l.b16 %v807
      %v812 = vunpack.c.l.b16 %v808
      %v813 = vpack.c.b16 %v812, %v811
      %v822 = vunpack.c.l.b16 %v359
      %v823 = vunpack.c.l.b16 %v360
      %v824 = vunpack.c.l.b16 %v361
      %v825 = vunpack.c.l.b16 %v362
      %v826 = vunpack.c.l.b16 %v363
      %v827 = vunpack.c.l.b16 %v364
      %v828 = vunpack.c.l.b16 %v365
      %v829 = vunpack.c.l.b16 %v366
      %v830 = vpack.c.b16 %v823, %v822
      %v831 = vpack.c.b16 %v825, %v824
      %v832 = vpack.c.b16 %v827, %v826
      %v833 = vpack.c.b16 %v829, %v828
      %v839 = vsel %vm442, %v813, 0
      %841 = vmatprep.subr.bf16.mxu0 0
      %842 = vmatpush1.bf16.msra.mxu0 0
      %843 = vmatprep.subr.bf16.mxu0 0
      %844 = vmatpush1.bf16.msra.mxu0 0
      %845 = vmatprep.subr.bf16.mxu0 0
      %846 = vmatpush1.bf16.msra.mxu0 0
      %847 = vmatprep.subr.bf16.mxu0 0
      %848 = vmatpush1.bf16.msra.mxu0 0
      %849 = vmatprep.subr.bf16.mxu0 0
      %850 = vmatpush1.bf16.msra.mxu0 %v833
      %851 = vmatprep.subr.bf16.mxu0 0
      %852 = vmatpush1.bf16.msra.mxu0 %v832
      %853 = vmatprep.subr.bf16.mxu0 0
      %854 = vmatpush1.bf16.msra.mxu0 %v831
      %855 = vmatprep.subr.bf16.mxu0 0
      %856 = vmatpush1.bf16.msra.mxu0 %v830
      %857 = vmatprep.subr.bf16.mxu0 0
      %858 = vmatpush2.bf16.msra.mxu0 0
      %859 = vmatprep.subr.bf16.mxu0 0
      %860 = vmatpush2.bf16.msra.mxu0 0
      %861 = vmatprep.subr.bf16.mxu0 0
      %862 = vmatpush2.bf16.msra.mxu0 0
      %863 = vmatprep.subr.bf16.mxu0 0
      %864 = vmatpush2.bf16.msra.mxu0 0
      %865 = vmatprep.subr.bf16.mxu0 0
      %866 = vmatpush2.bf16.msra.mxu0 0
      %867 = vmatprep.subr.bf16.mxu0 0
      %868 = vmatpush2.bf16.msra.mxu0 0
      %869 = vmatprep.subr.bf16.mxu0 0
      %870 = vmatpush2.bf16.msra.mxu0 0
      %871 = vmatprep.subr.bf16.mxu0 0
      %872 = vmatpush2.bf16.msra.mxu0 0
      %873 = vmatprep.mubr.bf16.mxu0 0
      %874 = vmatmul.mubr.bf16.gmra.mxu0 %v839
      %v875 = vpop.f32.mrf.mxu0
      %v876 = vadd.f32 0.0, %v875
      %v877 = vpop.f32.mrf.mxu0
      %v878 = vpop.f32.mrf.mxu0
      %v879 = vadd.f32 0.0, %v878
      %v880 = vpop.f32.mrf.mxu0
      %881 = vdwg.mxu0
      %s882 = scalar_lea.vmem [#allocation3], 32
      %v883 = vld [vmem:[%s882] sm:$0xff]
      %v884 = vld [vmem:[%s882 + $0x8] sm:$0xff]
      %v885 = vsel %vm489, %v876, -inf
      %886 = vmax.xlane.f32.xlu0 %v885
      %v887 = vpop.xlane.xlu0 %886
      %v888 = vsel %vm489, %v879, -inf
      %889 = vmax.xlane.f32.xlu0 %v888
      %v890 = vpop.xlane.xlu0 %889
      %v891 = vmax.f32 %v883, %v887
      %v892 = vmax.f32 %v884, %v890
      %v893 = vsub.f32 %v883, %v891
      %v894 = vsub.f32 %v884, %v892
      %v895 = vmul.f32 %v893, 1.442695
      %v896 = vpow.pop %v895
      %v897 = vmul.f32 %v894, 1.442695
      %v898 = vpow.pop %v897
      %900 = vset.pattern.permute.xlu0 0
      %901 = vperm.xlu0 %900, %v891
      %v902 = vpop.permute.xlu0 %901
      %905 = vset.pattern.permute.xlu0 0
      %906 = vperm.xlu0 %905, %v892
      %v907 = vpop.permute.xlu0 %906
      %v909 = vsub.f32 %v876, %v902
      %v910 = vsub.f32 %v879, %v907
      %v911 = vmul.f32 %v909, 1.442695
      %v912 = vpow.pop %v911
      %v913 = vmul.f32 %v910, 1.442695
      %v914 = vpow.pop %v913
      %s915 = scalar_lea.vmem [#allocation4], 32
      %v916 = vld [vmem:[%s915] sm:$0xff]
      %v917 = vld [vmem:[%s915 + $0x8] sm:$0xff]
      %v918 = vmul.f32 %v896, %v916
      %v919 = vmul.f32 %v898, %v917
      %v920 = vsel %vm489, %v912, 0.0
      %921 = vadd.xlane.f32.xlu0 %v920
      %v922 = vpop.xlane.xlu0 %921
      %v923 = vsel %vm489, %v914, 0.0
      %924 = vadd.xlane.f32.xlu0 %v923
      %v925 = vpop.xlane.xlu0 %924
      %v926 = vadd.f32 %v918, %v922
      %v927 = vadd.f32 %v919, %v925
      %928 = vst.msk [vmem:[%s915] sm:$0xff] %vm532, %v926
      %929 = vst.msk [vmem:[%s915 + $0x8] sm:$0xff] %vm532, %v927
      %v930 = vpack.c.bf16 %v914, %v912
      %v931 = vunpack.c.h.b16 %v407
      %v932 = vunpack.c.h.b16 %v409
      %v933 = vpack.c.b16 %v932, %v931
      %v936 = vsel %vm489, %v930, 0
      %938 = vmatprep.subr.bf16.mxu0 0
      %939 = vmatpush1.bf16.msra.mxu0 0
      %940 = vmatprep.subr.bf16.mxu0 0
      %941 = vmatpush1.bf16.msra.mxu0 0
      %942 = vmatprep.subr.bf16.mxu0 0
      %943 = vmatpush1.bf16.msra.mxu0 0
      %944 = vmatprep.subr.bf16.mxu0 0
      %945 = vmatpush1.bf16.msra.mxu0 0
      %946 = vmatprep.subr.bf16.mxu0 0
      %947 = vmatpush1.bf16.msra.mxu0 0
      %948 = vmatprep.subr.bf16.mxu0 0
      %949 = vmatpush1.bf16.msra.mxu0 0
      %950 = vmatprep.subr.bf16.mxu0 0
      %951 = vmatpush1.bf16.msra.mxu0 0
      %952 = vmatprep.subr.bf16.mxu0 0
      %953 = vmatpush1.bf16.msra.mxu0 %v933
      %954 = vmatprep.subr.bf16.mxu0 0
      %955 = vmatpush2.bf16.msra.mxu0 0
      %956 = vmatprep.subr.bf16.mxu0 0
      %957 = vmatpush2.bf16.msra.mxu0 0
      %958 = vmatprep.subr.bf16.mxu0 0
      %959 = vmatpush2.bf16.msra.mxu0 0
      %960 = vmatprep.subr.bf16.mxu0 0
      %961 = vmatpush2.bf16.msra.mxu0 0
      %962 = vmatprep.subr.bf16.mxu0 0
      %963 = vmatpush2.bf16.msra.mxu0 0
      %964 = vmatprep.subr.bf16.mxu0 0
      %965 = vmatpush2.bf16.msra.mxu0 0
      %966 = vmatprep.subr.bf16.mxu0 0
      %967 = vmatpush2.bf16.msra.mxu0 0
      %968 = vmatprep.subr.bf16.mxu0 0
      %969 = vmatpush2.bf16.msra.mxu0 0
      %970 = vmatprep.mubr.bf16.mxu0 0
      %971 = vmatmul.mubr.bf16.gmra.mxu0 %v936
      %v972 = vpop.f32.mrf.mxu0
      %v973 = vadd.f32 0.0, %v972
      %v974 = vpop.f32.mrf.mxu0
      %v975 = vpop.f32.mrf.mxu0
      %v976 = vadd.f32 0.0, %v975
      %v977 = vpop.f32.mrf.mxu0
      %978 = vdwg.mxu0
      %v979 = vld [vmem:[#allocation2 + $0x8] sm:$0xff]
      %v980 = vld [vmem:[#allocation2 + $0x28] sm:$0xff]
      %982 = vset.pattern.permute.xlu0 0
      %983 = vperm.xlu0 %982, %v896
      %v984 = vpop.permute.xlu0 %983
      %987 = vset.pattern.permute.xlu0 0
      %988 = vperm.xlu0 %987, %v898
      %v989 = vpop.permute.xlu0 %988
      %v991 = vmul.f32 %v984, %v979
      %v992 = vmul.f32 %v989, %v980
      %v993 = vadd.f32 %v991, %v973
      %v994 = vadd.f32 %v992, %v976
      %995 = vst.msk [vmem:[#allocation2 + $0x8] sm:$0xff] %vm442, %v993
      %996 = vst.msk [vmem:[#allocation2 + $0x28] sm:$0xff] %vm442, %v994
      %997 = vst.msk [vmem:[%s882] sm:$0xff] %vm532, %v891
      %998 = vst.msk [vmem:[%s882 + $0x8] sm:$0xff] %vm532, %v892
      %999 = vrot.lane.b32.xlu0 %v339, 64
      %v1000 = vpop.permute.xlu0 %999
      %1001 = vrot.lane.b32.xlu0 %v341, 64
      %v1002 = vpop.permute.xlu0 %1001
      %v1003 = vrot.slane %v1000, 4
      %v1004 = vrot.slane %v1002, 4
      %v1007 = vmul.bf16 %v1003, 1040203264
      %v1008 = vmul.bf16 %v1004, 1040203264
      %v1011 = vunpack.c.l.b16 %v1007
      %v1012 = vunpack.c.l.b16 %v1008
      %v1013 = vpack.c.b16 %v1012, %v1011
      %v1022 = vunpack.c.l.b16 %v367
      %v1023 = vunpack.c.l.b16 %v368
      %v1024 = vunpack.c.l.b16 %v369
      %v1025 = vunpack.c.l.b16 %v370
      %v1026 = vunpack.c.l.b16 %v371
      %v1027 = vunpack.c.l.b16 %v372
      %v1028 = vunpack.c.l.b16 %v373
      %v1029 = vunpack.c.l.b16 %v374
      %v1030 = vpack.c.b16 %v1023, %v1022
      %v1031 = vpack.c.b16 %v1025, %v1024
      %v1032 = vpack.c.b16 %v1027, %v1026
      %v1033 = vpack.c.b16 %v1029, %v1028
      %v1039 = vsel %vm442, %v1013, 0
      %1041 = vmatprep.subr.bf16.mxu0 0
      %1042 = vmatpush1.bf16.msra.mxu0 0
      %1043 = vmatprep.subr.bf16.mxu0 0
      %1044 = vmatpush1.bf16.msra.mxu0 0
      %1045 = vmatprep.subr.bf16.mxu0 0
      %1046 = vmatpush1.bf16.msra.mxu0 0
      %1047 = vmatprep.subr.bf16.mxu0 0
      %1048 = vmatpush1.bf16.msra.mxu0 0
      %1049 = vmatprep.subr.bf16.mxu0 0
      %1050 = vmatpush1.bf16.msra.mxu0 %v1033
      %1051 = vmatprep.subr.bf16.mxu0 0
      %1052 = vmatpush1.bf16.msra.mxu0 %v1032
      %1053 = vmatprep.subr.bf16.mxu0 0
      %1054 = vmatpush1.bf16.msra.mxu0 %v1031
      %1055 = vmatprep.subr.bf16.mxu0 0
      %1056 = vmatpush1.bf16.msra.mxu0 %v1030
      %1057 = vmatprep.subr.bf16.mxu0 0
      %1058 = vmatpush2.bf16.msra.mxu0 0
      %1059 = vmatprep.subr.bf16.mxu0 0
      %1060 = vmatpush2.bf16.msra.mxu0 0
      %1061 = vmatprep.subr.bf16.mxu0 0
      %1062 = vmatpush2.bf16.msra.mxu0 0
      %1063 = vmatprep.subr.bf16.mxu0 0
      %1064 = vmatpush2.bf16.msra.mxu0 0
      %1065 = vmatprep.subr.bf16.mxu0 0
      %1066 = vmatpush2.bf16.msra.mxu0 0
      %1067 = vmatprep.subr.bf16.mxu0 0
      %1068 = vmatpush2.bf16.msra.mxu0 0
      %1069 = vmatprep.subr.bf16.mxu0 0
      %1070 = vmatpush2.bf16.msra.mxu0 0
      %1071 = vmatprep.subr.bf16.mxu0 0
      %1072 = vmatpush2.bf16.msra.mxu0 0
      %1073 = vmatprep.mubr.bf16.mxu0 0
      %1074 = vmatmul.mubr.bf16.gmra.mxu0 %v1039
      %v1075 = vpop.f32.mrf.mxu0
      %v1076 = vadd.f32 0.0, %v1075
      %v1077 = vpop.f32.mrf.mxu0
      %v1078 = vpop.f32.mrf.mxu0
      %v1079 = vadd.f32 0.0, %v1078
      %v1080 = vpop.f32.mrf.mxu0
      %1081 = vdwg.mxu0
      %s1082 = scalar_lea.vmem [#allocation3], 48
      %v1083 = vld [vmem:[%s1082] sm:$0xff]
      %v1084 = vld [vmem:[%s1082 + $0x8] sm:$0xff]
      %v1085 = vsel %vm489, %v1076, -inf
      %1086 = vmax.xlane.f32.xlu0 %v1085
      %v1087 = vpop.xlane.xlu0 %1086
      %v1088 = vsel %vm489, %v1079, -inf
      %1089 = vmax.xlane.f32.xlu0 %v1088
      %v1090 = vpop.xlane.xlu0 %1089
      %v1091 = vmax.f32 %v1083, %v1087
      %v1092 = vmax.f32 %v1084, %v1090
      %v1093 = vsub.f32 %v1083, %v1091
      %v1094 = vsub.f32 %v1084, %v1092
      %v1095 = vmul.f32 %v1093, 1.442695
      %v1096 = vpow.pop %v1095
      %v1097 = vmul.f32 %v1094, 1.442695
      %v1098 = vpow.pop %v1097
      %1100 = vset.pattern.permute.xlu0 0
      %1101 = vperm.xlu0 %1100, %v1091
      %v1102 = vpop.permute.xlu0 %1101
      %1105 = vset.pattern.permute.xlu0 0
      %1106 = vperm.xlu0 %1105, %v1092
      %v1107 = vpop.permute.xlu0 %1106
      %v1109 = vsub.f32 %v1076, %v1102
      %v1110 = vsub.f32 %v1079, %v1107
      %v1111 = vmul.f32 %v1109, 1.442695
      %v1112 = vpow.pop %v1111
      %v1113 = vmul.f32 %v1110, 1.442695
      %v1114 = vpow.pop %v1113
      %s1115 = scalar_lea.vmem [#allocation4], 48
      %v1116 = vld [vmem:[%s1115] sm:$0xff]
      %v1117 = vld [vmem:[%s1115 + $0x8] sm:$0xff]
      %v1118 = vmul.f32 %v1096, %v1116
      %v1119 = vmul.f32 %v1098, %v1117
      %v1120 = vsel %vm489, %v1112, 0.0
      %1121 = vadd.xlane.f32.xlu0 %v1120
      %v1122 = vpop.xlane.xlu0 %1121
      %v1123 = vsel %vm489, %v1114, 0.0
      %1124 = vadd.xlane.f32.xlu0 %v1123
      %v1125 = vpop.xlane.xlu0 %1124
      %v1126 = vadd.f32 %v1118, %v1122
      %v1127 = vadd.f32 %v1119, %v1125
      %1128 = vst.msk [vmem:[%s1115] sm:$0xff] %vm532, %v1126
      %1129 = vst.msk [vmem:[%s1115 + $0x8] sm:$0xff] %vm532, %v1127
      %v1130 = vpack.c.bf16 %v1114, %v1112
      %1131 = vrot.lane.b32.xlu0 %v933, 64
      %v1132 = vpop.permute.xlu0 %1131
      %v1135 = vsel %vm489, %v1130, 0
      %1137 = vmatprep.subr.bf16.mxu0 0
      %1138 = vmatpush1.bf16.msra.mxu0 0
      %1139 = vmatprep.subr.bf16.mxu0 0
      %1140 = vmatpush1.bf16.msra.mxu0 0
      %1141 = vmatprep.subr.bf16.mxu0 0
      %1142 = vmatpush1.bf16.msra.mxu0 0
      %1143 = vmatprep.subr.bf16.mxu0 0
      %1144 = vmatpush1.bf16.msra.mxu0 0
      %1145 = vmatprep.subr.bf16.mxu0 0
      %1146 = vmatpush1.bf16.msra.mxu0 0
      %1147 = vmatprep.subr.bf16.mxu0 0
      %1148 = vmatpush1.bf16.msra.mxu0 0
      %1149 = vmatprep.subr.bf16.mxu0 0
      %1150 = vmatpush1.bf16.msra.mxu0 0
      %1151 = vmatprep.subr.bf16.mxu0 0
      %1152 = vmatpush1.bf16.msra.mxu0 %v1132
      %1153 = vmatprep.subr.bf16.mxu0 0
      %1154 = vmatpush2.bf16.msra.mxu0 0
      %1155 = vmatprep.subr.bf16.mxu0 0
      %1156 = vmatpush2.bf16.msra.mxu0 0
      %1157 = vmatprep.subr.bf16.mxu0 0
      %1158 = vmatpush2.bf16.msra.mxu0 0
      %1159 = vmatprep.subr.bf16.mxu0 0
      %1160 = vmatpush2.bf16.msra.mxu0 0
      %1161 = vmatprep.subr.bf16.mxu0 0
      %1162 = vmatpush2.bf16.msra.mxu0 0
      %1163 = vmatprep.subr.bf16.mxu0 0
      %1164 = vmatpush2.bf16.msra.mxu0 0
      %1165 = vmatprep.subr.bf16.mxu0 0
      %1166 = vmatpush2.bf16.msra.mxu0 0
      %1167 = vmatprep.subr.bf16.mxu0 0
      %1168 = vmatpush2.bf16.msra.mxu0 0
      %1169 = vmatprep.mubr.bf16.mxu0 0
      %1170 = vmatmul.mubr.bf16.gmra.mxu0 %v1135
      %v1171 = vpop.f32.mrf.mxu0
      %v1172 = vadd.f32 0.0, %v1171
      %v1173 = vpop.f32.mrf.mxu0
      %v1174 = vpop.f32.mrf.mxu0
      %v1175 = vadd.f32 0.0, %v1174
      %v1176 = vpop.f32.mrf.mxu0
      %1177 = vdwg.mxu0
      %v1178 = vld [vmem:[#allocation2 + $0x8] sm:$0xff]
      %v1179 = vld [vmem:[#allocation2 + $0x28] sm:$0xff]
      %1181 = vset.pattern.permute.xlu0 0
      %1182 = vperm.xlu0 %1181, %v1096
      %v1183 = vpop.permute.xlu0 %1182
      %1186 = vset.pattern.permute.xlu0 0
      %1187 = vperm.xlu0 %1186, %v1098
      %v1188 = vpop.permute.xlu0 %1187
      %v1190 = vmul.f32 %v1183, %v1178
      %v1191 = vmul.f32 %v1188, %v1179
      %1194 = vrot.lane.b32.xlu0 %v1172, 64
      %v1195 = vpop.permute.xlu0 %1194
      %1196 = vrot.lane.b32.xlu0 %v1175, 64
      %v1197 = vpop.permute.xlu0 %1196
      %v1200 = vadd.f32 %v1190, %v1195
      %v1201 = vadd.f32 %v1191, %v1197
      %1202 = vst.msk [vmem:[#allocation2 + $0x8] sm:$0xff] %vm796, %v1200
      %1203 = vst.msk [vmem:[#allocation2 + $0x28] sm:$0xff] %vm796, %v1201
      %1204 = vst.msk [vmem:[%s1082] sm:$0xff] %vm532, %v1091
      %1205 = vst.msk [vmem:[%s1082 + $0x8] sm:$0xff] %vm532, %v1092
      %v1206 = vmul.bf16 %v340, 1040203264
      %v1207 = vmul.bf16 %v342, 1040203264
      %v1210 = vunpack.c.l.b16 %v1206
      %v1211 = vunpack.c.l.b16 %v1207
      %v1212 = vpack.c.b16 %v1211, %v1210
      %v1221 = vunpack.c.l.b16 %v375
      %v1222 = vunpack.c.l.b16 %v376
      %v1223 = vunpack.c.l.b16 %v377
      %v1224 = vunpack.c.l.b16 %v378
      %v1225 = vunpack.c.l.b16 %v379
      %v1226 = vunpack.c.l.b16 %v380
      %v1227 = vunpack.c.l.b16 %v381
      %v1228 = vunpack.c.l.b16 %v382
      %v1229 = vpack.c.b16 %v1222, %v1221
      %v1230 = vpack.c.b16 %v1224, %v1223
      %v1231 = vpack.c.b16 %v1226, %v1225
      %v1232 = vpack.c.b16 %v1228, %v1227
      %v1238 = vsel %vm442, %v1212, 0
      %1240 = vmatprep.subr.bf16.mxu0 0
      %1241 = vmatpush1.bf16.msra.mxu0 0
      %1242 = vmatprep.subr.bf16.mxu0 0
      %1243 = vmatpush1.bf16.msra.mxu0 0
      %1244 = vmatprep.subr.bf16.mxu0 0
      %1245 = vmatpush1.bf16.msra.mxu0 0
      %1246 = vmatprep.subr.bf16.mxu0 0
      %1247 = vmatpush1.bf16.msra.mxu0 0
      %1248 = vmatprep.subr.bf16.mxu0 0
      %1249 = vmatpush1.bf16.msra.mxu0 %v1232
      %1250 = vmatprep.subr.bf16.mxu0 0
      %1251 = vmatpush1.bf16.msra.mxu0 %v1231
      %1252 = vmatprep.subr.bf16.mxu0 0
      %1253 = vmatpush1.bf16.msra.mxu0 %v1230
      %1254 = vmatprep.subr.bf16.mxu0 0
      %1255 = vmatpush1.bf16.msra.mxu0 %v1229
      %1256 = vmatprep.subr.bf16.mxu0 0
      %1257 = vmatpush2.bf16.msra.mxu0 0
      %1258 = vmatprep.subr.bf16.mxu0 0
      %1259 = vmatpush2.bf16.msra.mxu0 0
      %1260 = vmatprep.subr.bf16.mxu0 0
      %1261 = vmatpush2.bf16.msra.mxu0 0
      %1262 = vmatprep.subr.bf16.mxu0 0
      %1263 = vmatpush2.bf16.msra.mxu0 0
      %1264 = vmatprep.subr.bf16.mxu0 0
      %1265 = vmatpush2.bf16.msra.mxu0 0
      %1266 = vmatprep.subr.bf16.mxu0 0
      %1267 = vmatpush2.bf16.msra.mxu0 0
      %1268 = vmatprep.subr.bf16.mxu0 0
      %1269 = vmatpush2.bf16.msra.mxu0 0
      %1270 = vmatprep.subr.bf16.mxu0 0
      %1271 = vmatpush2.bf16.msra.mxu0 0
      %1272 = vmatprep.mubr.bf16.mxu0 0
      %1273 = vmatmul.mubr.bf16.gmra.mxu0 %v1238
      %v1274 = vpop.f32.mrf.mxu0
      %v1275 = vadd.f32 0.0, %v1274
      %v1276 = vpop.f32.mrf.mxu0
      %v1277 = vpop.f32.mrf.mxu0
      %v1278 = vadd.f32 0.0, %v1277
      %v1279 = vpop.f32.mrf.mxu0
      %1280 = vdwg.mxu0
      %s1281 = scalar_lea.vmem [#allocation3], 64
      %v1282 = vld [vmem:[%s1281] sm:$0xff]
      %v1283 = vld [vmem:[%s1281 + $0x8] sm:$0xff]
      %v1284 = vsel %vm489, %v1275, -inf
      %1285 = vmax.xlane.f32.xlu0 %v1284
      %v1286 = vpop.xlane.xlu0 %1285
      %v1287 = vsel %vm489, %v1278, -inf
      %1288 = vmax.xlane.f32.xlu0 %v1287
      %v1289 = vpop.xlane.xlu0 %1288
      %v1290 = vmax.f32 %v1282, %v1286
      %v1291 = vmax.f32 %v1283, %v1289
      %v1292 = vsub.f32 %v1282, %v1290
      %v1293 = vsub.f32 %v1283, %v1291
      %v1294 = vmul.f32 %v1292, 1.442695
      %v1295 = vpow.pop %v1294
      %v1296 = vmul.f32 %v1293, 1.442695
      %v1297 = vpow.pop %v1296
      %1299 = vset.pattern.permute.xlu0 0
      %1300 = vperm.xlu0 %1299, %v1290
      %v1301 = vpop.permute.xlu0 %1300
      %1304 = vset.pattern.permute.xlu0 0
      %1305 = vperm.xlu0 %1304, %v1291
      %v1306 = vpop.permute.xlu0 %1305
      %v1308 = vsub.f32 %v1275, %v1301
      %v1309 = vsub.f32 %v1278, %v1306
      %v1310 = vmul.f32 %v1308, 1.442695
      %v1311 = vpow.pop %v1310
      %v1312 = vmul.f32 %v1309, 1.442695
      %v1313 = vpow.pop %v1312
      %s1314 = scalar_lea.vmem [#allocation4], 64
      %v1315 = vld [vmem:[%s1314] sm:$0xff]
      %v1316 = vld [vmem:[%s1314 + $0x8] sm:$0xff]
      %v1317 = vmul.f32 %v1295, %v1315
      %v1318 = vmul.f32 %v1297, %v1316
      %v1319 = vsel %vm489, %v1311, 0.0
      %1320 = vadd.xlane.f32.xlu0 %v1319
      %v1321 = vpop.xlane.xlu0 %1320
      %v1322 = vsel %vm489, %v1313, 0.0
      %1323 = vadd.xlane.f32.xlu0 %v1322
      %v1324 = vpop.xlane.xlu0 %1323
      %v1325 = vadd.f32 %v1317, %v1321
      %v1326 = vadd.f32 %v1318, %v1324
      %1327 = vst.msk [vmem:[%s1314] sm:$0xff] %vm532, %v1325
      %1328 = vst.msk [vmem:[%s1314 + $0x8] sm:$0xff] %vm532, %v1326
      %v1329 = vpack.c.bf16 %v1313, %v1311
      %v1332 = vunpack.c.l.b16 %v408
      %v1333 = vunpack.c.l.b16 %v410
      %v1334 = vpack.c.b16 %v1333, %v1332
      %v1337 = vsel %vm489, %v1329, 0
      %1339 = vmatprep.subr.bf16.mxu0 0
      %1340 = vmatpush1.bf16.msra.mxu0 0
      %1341 = vmatprep.subr.bf16.mxu0 0
      %1342 = vmatpush1.bf16.msra.mxu0 0
      %1343 = vmatprep.subr.bf16.mxu0 0
      %1344 = vmatpush1.bf16.msra.mxu0 0
      %1345 = vmatprep.subr.bf16.mxu0 0
      %1346 = vmatpush1.bf16.msra.mxu0 0
      %1347 = vmatprep.subr.bf16.mxu0 0
      %1348 = vmatpush1.bf16.msra.mxu0 0
      %1349 = vmatprep.subr.bf16.mxu0 0
      %1350 = vmatpush1.bf16.msra.mxu0 0
      %1351 = vmatprep.subr.bf16.mxu0 0
      %1352 = vmatpush1.bf16.msra.mxu0 0
      %1353 = vmatprep.subr.bf16.mxu0 0
      %1354 = vmatpush1.bf16.msra.mxu0 %v1334
      %1355 = vmatprep.subr.bf16.mxu0 0
      %1356 = vmatpush2.bf16.msra.mxu0 0
      %1357 = vmatprep.subr.bf16.mxu0 0
      %1358 = vmatpush2.bf16.msra.mxu0 0
      %1359 = vmatprep.subr.bf16.mxu0 0
      %1360 = vmatpush2.bf16.msra.mxu0 0
      %1361 = vmatprep.subr.bf16.mxu0 0
      %1362 = vmatpush2.bf16.msra.mxu0 0
      %1363 = vmatprep.subr.bf16.mxu0 0
      %1364 = vmatpush2.bf16.msra.mxu0 0
      %1365 = vmatprep.subr.bf16.mxu0 0
      %1366 = vmatpush2.bf16.msra.mxu0 0
      %1367 = vmatprep.subr.bf16.mxu0 0
      %1368 = vmatpush2.bf16.msra.mxu0 0
      %1369 = vmatprep.subr.bf16.mxu0 0
      %1370 = vmatpush2.bf16.msra.mxu0 0
      %1371 = vmatprep.mubr.bf16.mxu0 0
      %1372 = vmatmul.mubr.bf16.gmra.mxu0 %v1337
      %v1373 = vpop.f32.mrf.mxu0
      %v1374 = vadd.f32 0.0, %v1373
      %v1375 = vpop.f32.mrf.mxu0
      %v1376 = vpop.f32.mrf.mxu0
      %v1377 = vadd.f32 0.0, %v1376
      %v1378 = vpop.f32.mrf.mxu0
      %1379 = vdwg.mxu0
      %v1380 = vld [vmem:[#allocation2 + $0x10] sm:$0xff]
      %v1381 = vld [vmem:[#allocation2 + $0x30] sm:$0xff]
      %1383 = vset.pattern.permute.xlu0 0
      %1384 = vperm.xlu0 %1383, %v1295
      %v1385 = vpop.permute.xlu0 %1384
      %1388 = vset.pattern.permute.xlu0 0
      %1389 = vperm.xlu0 %1388, %v1297
      %v1390 = vpop.permute.xlu0 %1389
      %v1392 = vmul.f32 %v1385, %v1380
      %v1393 = vmul.f32 %v1390, %v1381
      %v1394 = vadd.f32 %v1392, %v1374
      %v1395 = vadd.f32 %v1393, %v1377
      %1396 = vst.msk [vmem:[#allocation2 + $0x10] sm:$0xff] %vm442, %v1394
      %1397 = vst.msk [vmem:[#allocation2 + $0x30] sm:$0xff] %vm442, %v1395
      %1398 = vst.msk [vmem:[%s1281] sm:$0xff] %vm532, %v1290
      %1399 = vst.msk [vmem:[%s1281 + $0x8] sm:$0xff] %vm532, %v1291
      %1400 = vrot.lane.b32.xlu0 %v1212, 64
      %v1401 = vpop.permute.xlu0 %1400
      %v1410 = vunpack.c.l.b16 %v383
      %v1411 = vunpack.c.l.b16 %v384
      %v1412 = vunpack.c.l.b16 %v385
      %v1413 = vunpack.c.l.b16 %v386
      %v1414 = vunpack.c.l.b16 %v387
      %v1415 = vunpack.c.l.b16 %v388
      %v1416 = vunpack.c.l.b16 %v389
      %v1417 = vunpack.c.l.b16 %v390
      %v1418 = vpack.c.b16 %v1411, %v1410
      %v1419 = vpack.c.b16 %v1413, %v1412
      %v1420 = vpack.c.b16 %v1415, %v1414
      %v1421 = vpack.c.b16 %v1417, %v1416
      %v1427 = vsel %vm442, %v1401, 0
      %1429 = vmatprep.subr.bf16.mxu0 0
      %1430 = vmatpush1.bf16.msra.mxu0 0
      %1431 = vmatprep.subr.bf16.mxu0 0
      %1432 = vmatpush1.bf16.msra.mxu0 0
      %1433 = vmatprep.subr.bf16.mxu0 0
      %1434 = vmatpush1.bf16.msra.mxu0 0
      %1435 = vmatprep.subr.bf16.mxu0 0
      %1436 = vmatpush1.bf16.msra.mxu0 0
      %1437 = vmatprep.subr.bf16.mxu0 0
      %1438 = vmatpush1.bf16.msra.mxu0 %v1421
      %1439 = vmatprep.subr.bf16.mxu0 0
      %1440 = vmatpush1.bf16.msra.mxu0 %v1420
      %1441 = vmatprep.subr.bf16.mxu0 0
      %1442 = vmatpush1.bf16.msra.mxu0 %v1419
      %1443 = vmatprep.subr.bf16.mxu0 0
      %1444 = vmatpush1.bf16.msra.mxu0 %v1418
      %1445 = vmatprep.subr.bf16.mxu0 0
      %1446 = vmatpush2.bf16.msra.mxu0 0
      %1447 = vmatprep.subr.bf16.mxu0 0
      %1448 = vmatpush2.bf16.msra.mxu0 0
      %1449 = vmatprep.subr.bf16.mxu0 0
      %1450 = vmatpush2.bf16.msra.mxu0 0
      %1451 = vmatprep.subr.bf16.mxu0 0
      %1452 = vmatpush2.bf16.msra.mxu0 0
      %1453 = vmatprep.subr.bf16.mxu0 0
      %1454 = vmatpush2.bf16.msra.mxu0 0
      %1455 = vmatprep.subr.bf16.mxu0 0
      %1456 = vmatpush2.bf16.msra.mxu0 0
      %1457 = vmatprep.subr.bf16.mxu0 0
      %1458 = vmatpush2.bf16.msra.mxu0 0
      %1459 = vmatprep.subr.bf16.mxu0 0
      %1460 = vmatpush2.bf16.msra.mxu0 0
      %1461 = vmatprep.mubr.bf16.mxu0 0
      %1462 = vmatmul.mubr.bf16.gmra.mxu0 %v1427
      %v1463 = vpop.f32.mrf.mxu0
      %v1464 = vadd.f32 0.0, %v1463
      %v1465 = vpop.f32.mrf.mxu0
      %v1466 = vpop.f32.mrf.mxu0
      %v1467 = vadd.f32 0.0, %v1466
      %v1468 = vpop.f32.mrf.mxu0
      %1469 = vdwg.mxu0
      %s1470 = scalar_lea.vmem [#allocation3], 80
      %v1471 = vld [vmem:[%s1470] sm:$0xff]
      %v1472 = vld [vmem:[%s1470 + $0x8] sm:$0xff]
      %v1473 = vsel %vm489, %v1464, -inf
      %1474 = vmax.xlane.f32.xlu0 %v1473
      %v1475 = vpop.xlane.xlu0 %1474
      %v1476 = vsel %vm489, %v1467, -inf
      %1477 = vmax.xlane.f32.xlu0 %v1476
      %v1478 = vpop.xlane.xlu0 %1477
      %v1479 = vmax.f32 %v1471, %v1475
      %v1480 = vmax.f32 %v1472, %v1478
      %v1481 = vsub.f32 %v1471, %v1479
      %v1482 = vsub.f32 %v1472, %v1480
      %v1483 = vmul.f32 %v1481, 1.442695
      %v1484 = vpow.pop %v1483
      %v1485 = vmul.f32 %v1482, 1.442695
      %v1486 = vpow.pop %v1485
      %1488 = vset.pattern.permute.xlu0 0
      %1489 = vperm.xlu0 %1488, %v1479
      %v1490 = vpop.permute.xlu0 %1489
      %1493 = vset.pattern.permute.xlu0 0
      %1494 = vperm.xlu0 %1493, %v1480
      %v1495 = vpop.permute.xlu0 %1494
      %v1497 = vsub.f32 %v1464, %v1490
      %v1498 = vsub.f32 %v1467, %v1495
      %v1499 = vmul.f32 %v1497, 1.442695
      %v1500 = vpow.pop %v1499
      %v1501 = vmul.f32 %v1498, 1.442695
      %v1502 = vpow.pop %v1501
      %s1503 = scalar_lea.vmem [#allocation4], 80
      %v1504 = vld [vmem:[%s1503] sm:$0xff]
      %v1505 = vld [vmem:[%s1503 + $0x8] sm:$0xff]
      %v1506 = vmul.f32 %v1484, %v1504
      %v1507 = vmul.f32 %v1486, %v1505
      %v1508 = vsel %vm489, %v1500, 0.0
      %1509 = vadd.xlane.f32.xlu0 %v1508
      %v1510 = vpop.xlane.xlu0 %1509
      %v1511 = vsel %vm489, %v1502, 0.0
      %1512 = vadd.xlane.f32.xlu0 %v1511
      %v1513 = vpop.xlane.xlu0 %1512
      %v1514 = vadd.f32 %v1506, %v1510
      %v1515 = vadd.f32 %v1507, %v1513
      %1516 = vst.msk [vmem:[%s1503] sm:$0xff] %vm532, %v1514
      %1517 = vst.msk [vmem:[%s1503 + $0x8] sm:$0xff] %vm532, %v1515
      %v1518 = vpack.c.bf16 %v1502, %v1500
      %1519 = vrot.lane.b32.xlu0 %v1334, 64
      %v1520 = vpop.permute.xlu0 %1519
      %v1523 = vsel %vm489, %v1518, 0
      %1525 = vmatprep.subr.bf16.mxu0 0
      %1526 = vmatpush1.bf16.msra.mxu0 0
      %1527 = vmatprep.subr.bf16.mxu0 0
      %1528 = vmatpush1.bf16.msra.mxu0 0
      %1529 = vmatprep.subr.bf16.mxu0 0
      %1530 = vmatpush1.bf16.msra.mxu0 0
      %1531 = vmatprep.subr.bf16.mxu0 0
      %1532 = vmatpush1.bf16.msra.mxu0 0
      %1533 = vmatprep.subr.bf16.mxu0 0
      %1534 = vmatpush1.bf16.msra.mxu0 0
      %1535 = vmatprep.subr.bf16.mxu0 0
      %1536 = vmatpush1.bf16.msra.mxu0 0
      %1537 = vmatprep.subr.bf16.mxu0 0
      %1538 = vmatpush1.bf16.msra.mxu0 0
      %1539 = vmatprep.subr.bf16.mxu0 0
      %1540 = vmatpush1.bf16.msra.mxu0 %v1520
      %1541 = vmatprep.subr.bf16.mxu0 0
      %1542 = vmatpush2.bf16.msra.mxu0 0
      %1543 = vmatprep.subr.bf16.mxu0 0
      %1544 = vmatpush2.bf16.msra.mxu0 0
      %1545 = vmatprep.subr.bf16.mxu0 0
      %1546 = vmatpush2.bf16.msra.mxu0 0
      %1547 = vmatprep.subr.bf16.mxu0 0
      %1548 = vmatpush2.bf16.msra.mxu0 0
      %1549 = vmatprep.subr.bf16.mxu0 0
      %1550 = vmatpush2.bf16.msra.mxu0 0
      %1551 = vmatprep.subr.bf16.mxu0 0
      %1552 = vmatpush2.bf16.msra.mxu0 0
      %1553 = vmatprep.subr.bf16.mxu0 0
      %1554 = vmatpush2.bf16.msra.mxu0 0
      %1555 = vmatprep.subr.bf16.mxu0 0
      %1556 = vmatpush2.bf16.msra.mxu0 0
      %1557 = vmatprep.mubr.bf16.mxu0 0
      %1558 = vmatmul.mubr.bf16.gmra.mxu0 %v1523
      %v1559 = vpop.f32.mrf.mxu0
      %v1560 = vadd.f32 0.0, %v1559
      %v1561 = vpop.f32.mrf.mxu0
      %v1562 = vpop.f32.mrf.mxu0
      %v1563 = vadd.f32 0.0, %v1562
      %v1564 = vpop.f32.mrf.mxu0
      %1565 = vdwg.mxu0
      %v1566 = vld [vmem:[#allocation2 + $0x10] sm:$0xff]
      %v1567 = vld [vmem:[#allocation2 + $0x30] sm:$0xff]
      %1569 = vset.pattern.permute.xlu0 0
      %1570 = vperm.xlu0 %1569, %v1484
      %v1571 = vpop.permute.xlu0 %1570
      %1574 = vset.pattern.permute.xlu0 0
      %1575 = vperm.xlu0 %1574, %v1486
      %v1576 = vpop.permute.xlu0 %1575
      %v1578 = vmul.f32 %v1571, %v1566
      %v1579 = vmul.f32 %v1576, %v1567
      %1582 = vrot.lane.b32.xlu0 %v1560, 64
      %v1583 = vpop.permute.xlu0 %1582
      %1584 = vrot.lane.b32.xlu0 %v1563, 64
      %v1585 = vpop.permute.xlu0 %1584
      %v1588 = vadd.f32 %v1578, %v1583
      %v1589 = vadd.f32 %v1579, %v1585
      %1590 = vst.msk [vmem:[#allocation2 + $0x10] sm:$0xff] %vm796, %v1588
      %1591 = vst.msk [vmem:[#allocation2 + $0x30] sm:$0xff] %vm796, %v1589
      %1592 = vst.msk [vmem:[%s1470] sm:$0xff] %vm532, %v1479
      %1593 = vst.msk [vmem:[%s1470 + $0x8] sm:$0xff] %vm532, %v1480
      %v1596 = vrot.slane %v340, 4
      %v1597 = vrot.slane %v342, 4
      %v1600 = vmul.bf16 %v1596, 1040203264
      %v1601 = vmul.bf16 %v1597, 1040203264
      %v1604 = vunpack.c.l.b16 %v1600
      %v1605 = vunpack.c.l.b16 %v1601
      %v1606 = vpack.c.b16 %v1605, %v1604
      %v1615 = vunpack.c.l.b16 %v391
      %v1616 = vunpack.c.l.b16 %v392
      %v1617 = vunpack.c.l.b16 %v393
      %v1618 = vunpack.c.l.b16 %v394
      %v1619 = vunpack.c.l.b16 %v395
      %v1620 = vunpack.c.l.b16 %v396
      %v1621 = vunpack.c.l.b16 %v397
      %v1622 = vunpack.c.l.b16 %v398
      %v1623 = vpack.c.b16 %v1616, %v1615
      %v1624 = vpack.c.b16 %v1618, %v1617
      %v1625 = vpack.c.b16 %v1620, %v1619
      %v1626 = vpack.c.b16 %v1622, %v1621
      %v1632 = vsel %vm442, %v1606, 0
      %1634 = vmatprep.subr.bf16.mxu0 0
      %1635 = vmatpush1.bf16.msra.mxu0 0
      %1636 = vmatprep.subr.bf16.mxu0 0
      %1637 = vmatpush1.bf16.msra.mxu0 0
      %1638 = vmatprep.subr.bf16.mxu0 0
      %1639 = vmatpush1.bf16.msra.mxu0 0
      %1640 = vmatprep.subr.bf16.mxu0 0
      %1641 = vmatpush1.bf16.msra.mxu0 0
      %1642 = vmatprep.subr.bf16.mxu0 0
      %1643 = vmatpush1.bf16.msra.mxu0 %v1626
      %1644 = vmatprep.subr.bf16.mxu0 0
      %1645 = vmatpush1.bf16.msra.mxu0 %v1625
      %1646 = vmatprep.subr.bf16.mxu0 0
      %1647 = vmatpush1.bf16.msra.mxu0 %v1624
      %1648 = vmatprep.subr.bf16.mxu0 0
      %1649 = vmatpush1.bf16.msra.mxu0 %v1623
      %1650 = vmatprep.subr.bf16.mxu0 0
      %1651 = vmatpush2.bf16.msra.mxu0 0
      %1652 = vmatprep.subr.bf16.mxu0 0
      %1653 = vmatpush2.bf16.msra.mxu0 0
      %1654 = vmatprep.subr.bf16.mxu0 0
      %1655 = vmatpush2.bf16.msra.mxu0 0
      %1656 = vmatprep.subr.bf16.mxu0 0
      %1657 = vmatpush2.bf16.msra.mxu0 0
      %1658 = vmatprep.subr.bf16.mxu0 0
      %1659 = vmatpush2.bf16.msra.mxu0 0
      %1660 = vmatprep.subr.bf16.mxu0 0
      %1661 = vmatpush2.bf16.msra.mxu0 0
      %1662 = vmatprep.subr.bf16.mxu0 0
      %1663 = vmatpush2.bf16.msra.mxu0 0
      %1664 = vmatprep.subr.bf16.mxu0 0
      %1665 = vmatpush2.bf16.msra.mxu0 0
      %1666 = vmatprep.mubr.bf16.mxu0 0
      %1667 = vmatmul.mubr.bf16.gmra.mxu0 %v1632
      %v1668 = vpop.f32.mrf.mxu0
      %v1669 = vadd.f32 0.0, %v1668
      %v1670 = vpop.f32.mrf.mxu0
      %v1671 = vpop.f32.mrf.mxu0
      %v1672 = vadd.f32 0.0, %v1671
      %v1673 = vpop.f32.mrf.mxu0
      %1674 = vdwg.mxu0
      %s1675 = scalar_lea.vmem [#allocation3], 96
      %v1676 = vld [vmem:[%s1675] sm:$0xff]
      %v1677 = vld [vmem:[%s1675 + $0x8] sm:$0xff]
      %v1678 = vsel %vm489, %v1669, -inf
      %1679 = vmax.xlane.f32.xlu0 %v1678
      %v1680 = vpop.xlane.xlu0 %1679
      %v1681 = vsel %vm489, %v1672, -inf
      %1682 = vmax.xlane.f32.xlu0 %v1681
      %v1683 = vpop.xlane.xlu0 %1682
      %v1684 = vmax.f32 %v1676, %v1680
      %v1685 = vmax.f32 %v1677, %v1683
      %v1686 = vsub.f32 %v1676, %v1684
      %v1687 = vsub.f32 %v1677, %v1685
      %v1688 = vmul.f32 %v1686, 1.442695
      %v1689 = vpow.pop %v1688
      %v1690 = vmul.f32 %v1687, 1.442695
      %v1691 = vpow.pop %v1690
      %1693 = vset.pattern.permute.xlu0 0
      %1694 = vperm.xlu0 %1693, %v1684
      %v1695 = vpop.permute.xlu0 %1694
      %1698 = vset.pattern.permute.xlu0 0
      %1699 = vperm.xlu0 %1698, %v1685
      %v1700 = vpop.permute.xlu0 %1699
      %v1702 = vsub.f32 %v1669, %v1695
      %v1703 = vsub.f32 %v1672, %v1700
      %v1704 = vmul.f32 %v1702, 1.442695
      %v1705 = vpow.pop %v1704
      %v1706 = vmul.f32 %v1703, 1.442695
      %v1707 = vpow.pop %v1706
      %s1708 = scalar_lea.vmem [#allocation4], 96
      %v1709 = vld [vmem:[%s1708] sm:$0xff]
      %v1710 = vld [vmem:[%s1708 + $0x8] sm:$0xff]
      %v1711 = vmul.f32 %v1689, %v1709
      %v1712 = vmul.f32 %v1691, %v1710
      %v1713 = vsel %vm489, %v1705, 0.0
      %1714 = vadd.xlane.f32.xlu0 %v1713
      %v1715 = vpop.xlane.xlu0 %1714
      %v1716 = vsel %vm489, %v1707, 0.0
      %1717 = vadd.xlane.f32.xlu0 %v1716
      %v1718 = vpop.xlane.xlu0 %1717
      %v1719 = vadd.f32 %v1711, %v1715
      %v1720 = vadd.f32 %v1712, %v1718
      %1721 = vst.msk [vmem:[%s1708] sm:$0xff] %vm532, %v1719
      %1722 = vst.msk [vmem:[%s1708 + $0x8] sm:$0xff] %vm532, %v1720
      %v1723 = vpack.c.bf16 %v1707, %v1705
      %v1724 = vunpack.c.h.b16 %v408
      %v1725 = vunpack.c.h.b16 %v410
      %v1726 = vpack.c.b16 %v1725, %v1724
      %v1729 = vsel %vm489, %v1723, 0
      %1731 = vmatprep.subr.bf16.mxu0 0
      %1732 = vmatpush1.bf16.msra.mxu0 0
      %1733 = vmatprep.subr.bf16.mxu0 0
      %1734 = vmatpush1.bf16.msra.mxu0 0
      %1735 = vmatprep.subr.bf16.mxu0 0
      %1736 = vmatpush1.bf16.msra.mxu0 0
      %1737 = vmatprep.subr.bf16.mxu0 0
      %1738 = vmatpush1.bf16.msra.mxu0 0
      %1739 = vmatprep.subr.bf16.mxu0 0
      %1740 = vmatpush1.bf16.msra.mxu0 0
      %1741 = vmatprep.subr.bf16.mxu0 0
      %1742 = vmatpush1.bf16.msra.mxu0 0
      %1743 = vmatprep.subr.bf16.mxu0 0
      %1744 = vmatpush1.bf16.msra.mxu0 0
      %1745 = vmatprep.subr.bf16.mxu0 0
      %1746 = vmatpush1.bf16.msra.mxu0 %v1726
      %1747 = vmatprep.subr.bf16.mxu0 0
      %1748 = vmatpush2.bf16.msra.mxu0 0
      %1749 = vmatprep.subr.bf16.mxu0 0
      %1750 = vmatpush2.bf16.msra.mxu0 0
      %1751 = vmatprep.subr.bf16.mxu0 0
      %1752 = vmatpush2.bf16.msra.mxu0 0
      %1753 = vmatprep.subr.bf16.mxu0 0
      %1754 = vmatpush2.bf16.msra.mxu0 0
      %1755 = vmatprep.subr.bf16.mxu0 0
      %1756 = vmatpush2.bf16.msra.mxu0 0
      %1757 = vmatprep.subr.bf16.mxu0 0
      %1758 = vmatpush2.bf16.msra.mxu0 0
      %1759 = vmatprep.subr.bf16.mxu0 0
      %1760 = vmatpush2.bf16.msra.mxu0 0
      %1761 = vmatprep.subr.bf16.mxu0 0
      %1762 = vmatpush2.bf16.msra.mxu0 0
      %1763 = vmatprep.mubr.bf16.mxu0 0
      %1764 = vmatmul.mubr.bf16.gmra.mxu0 %v1729
      %v1765 = vpop.f32.mrf.mxu0
      %v1766 = vadd.f32 0.0, %v1765
      %v1767 = vpop.f32.mrf.mxu0
      %v1768 = vpop.f32.mrf.mxu0
      %v1769 = vadd.f32 0.0, %v1768
      %v1770 = vpop.f32.mrf.mxu0
      %1771 = vdwg.mxu0
      %v1772 = vld [vmem:[#allocation2 + $0x18] sm:$0xff]
      %v1773 = vld [vmem:[#allocation2 + $0x38] sm:$0xff]
      %1775 = vset.pattern.permute.xlu0 0
      %1776 = vperm.xlu0 %1775, %v1689
      %v1777 = vpop.permute.xlu0 %1776
      %1780 = vset.pattern.permute.xlu0 0
      %1781 = vperm.xlu0 %1780, %v1691
      %v1782 = vpop.permute.xlu0 %1781
      %v1784 = vmul.f32 %v1777, %v1772
      %v1785 = vmul.f32 %v1782, %v1773
      %v1786 = vadd.f32 %v1784, %v1766
      %v1787 = vadd.f32 %v1785, %v1769
      %1788 = vst.msk [vmem:[#allocation2 + $0x18] sm:$0xff] %vm442, %v1786
      %1789 = vst.msk [vmem:[#allocation2 + $0x38] sm:$0xff] %vm442, %v1787
      %1790 = vst.msk [vmem:[%s1675] sm:$0xff] %vm532, %v1684
      %1791 = vst.msk [vmem:[%s1675 + $0x8] sm:$0xff] %vm532, %v1685
      %1792 = vrot.lane.b32.xlu0 %v340, 64
      %v1793 = vpop.permute.xlu0 %1792
      %1794 = vrot.lane.b32.xlu0 %v342, 64
      %v1795 = vpop.permute.xlu0 %1794
      %v1796 = vrot.slane %v1793, 4
      %v1797 = vrot.slane %v1795, 4
      %v1800 = vmul.bf16 %v1796, 1040203264
      %v1801 = vmul.bf16 %v1797, 1040203264
      %v1804 = vunpack.c.l.b16 %v1800
      %v1805 = vunpack.c.l.b16 %v1801
      %v1806 = vpack.c.b16 %v1805, %v1804
      %v1815 = vunpack.c.l.b16 %v399
      %v1816 = vunpack.c.l.b16 %v400
      %v1817 = vunpack.c.l.b16 %v401
      %v1818 = vunpack.c.l.b16 %v402
      %v1819 = vunpack.c.l.b16 %v403
      %v1820 = vunpack.c.l.b16 %v404
      %v1821 = vunpack.c.l.b16 %v405
      %v1822 = vunpack.c.l.b16 %v406
      %v1823 = vpack.c.b16 %v1816, %v1815
      %v1824 = vpack.c.b16 %v1818, %v1817
      %v1825 = vpack.c.b16 %v1820, %v1819
      %v1826 = vpack.c.b16 %v1822, %v1821
      %v1832 = vsel %vm442, %v1806, 0
      %1834 = vmatprep.subr.bf16.mxu0 0
      %1835 = vmatpush1.bf16.msra.mxu0 0
      %1836 = vmatprep.subr.bf16.mxu0 0
      %1837 = vmatpush1.bf16.msra.mxu0 0
      %1838 = vmatprep.subr.bf16.mxu0 0
      %1839 = vmatpush1.bf16.msra.mxu0 0
      %1840 = vmatprep.subr.bf16.mxu0 0
      %1841 = vmatpush1.bf16.msra.mxu0 0
      %1842 = vmatprep.subr.bf16.mxu0 0
      %1843 = vmatpush1.bf16.msra.mxu0 %v1826
      %1844 = vmatprep.subr.bf16.mxu0 0
      %1845 = vmatpush1.bf16.msra.mxu0 %v1825
      %1846 = vmatprep.subr.bf16.mxu0 0
      %1847 = vmatpush1.bf16.msra.mxu0 %v1824
      %1848 = vmatprep.subr.bf16.mxu0 0
      %1849 = vmatpush1.bf16.msra.mxu0 %v1823
      %1850 = vmatprep.subr.bf16.mxu0 0
      %1851 = vmatpush2.bf16.msra.mxu0 0
      %1852 = vmatprep.subr.bf16.mxu0 0
      %1853 = vmatpush2.bf16.msra.mxu0 0
      %1854 = vmatprep.subr.bf16.mxu0 0
      %1855 = vmatpush2.bf16.msra.mxu0 0
      %1856 = vmatprep.subr.bf16.mxu0 0
      %1857 = vmatpush2.bf16.msra.mxu0 0
      %1858 = vmatprep.subr.bf16.mxu0 0
      %1859 = vmatpush2.bf16.msra.mxu0 0
      %1860 = vmatprep.subr.bf16.mxu0 0
      %1861 = vmatpush2.bf16.msra.mxu0 0
      %1862 = vmatprep.subr.bf16.mxu0 0
      %1863 = vmatpush2.bf16.msra.mxu0 0
      %1864 = vmatprep.subr.bf16.mxu0 0
      %1865 = vmatpush2.bf16.msra.mxu0 0
      %1866 = vmatprep.mubr.bf16.mxu0 0
      %1867 = vmatmul.mubr.bf16.gmra.mxu0 %v1832
      %v1868 = vpop.f32.mrf.mxu0
      %v1869 = vadd.f32 0.0, %v1868
      %v1870 = vpop.f32.mrf.mxu0
      %v1871 = vpop.f32.mrf.mxu0
      %v1872 = vadd.f32 0.0, %v1871
      %v1873 = vpop.f32.mrf.mxu0
      %1874 = vdwg.mxu0
      %s1875 = scalar_lea.vmem [#allocation3], 112
      %v1876 = vld [vmem:[%s1875] sm:$0xff]
      %v1877 = vld [vmem:[%s1875 + $0x8] sm:$0xff]
      %v1878 = vsel %vm489, %v1869, -inf
      %1879 = vmax.xlane.f32.xlu0 %v1878
      %v1880 = vpop.xlane.xlu0 %1879
      %v1881 = vsel %vm489, %v1872, -inf
      %1882 = vmax.xlane.f32.xlu0 %v1881
      %v1883 = vpop.xlane.xlu0 %1882
      %v1884 = vmax.f32 %v1876, %v1880
      %v1885 = vmax.f32 %v1877, %v1883
      %v1886 = vsub.f32 %v1876, %v1884
      %v1887 = vsub.f32 %v1877, %v1885
      %v1888 = vmul.f32 %v1886, 1.442695
      %v1889 = vpow.pop %v1888
      %v1890 = vmul.f32 %v1887, 1.442695
      %v1891 = vpow.pop %v1890
      %1893 = vset.pattern.permute.xlu0 0
      %1894 = vperm.xlu0 %1893, %v1884
      %v1895 = vpop.permute.xlu0 %1894
      %1898 = vset.pattern.permute.xlu0 0
      %1899 = vperm.xlu0 %1898, %v1885
      %v1900 = vpop.permute.xlu0 %1899
      %v1902 = vsub.f32 %v1869, %v1895
      %v1903 = vsub.f32 %v1872, %v1900
      %v1904 = vmul.f32 %v1902, 1.442695
      %v1905 = vpow.pop %v1904
      %v1906 = vmul.f32 %v1903, 1.442695
      %v1907 = vpow.pop %v1906
      %s1908 = scalar_lea.vmem [#allocation4], 112
      %v1909 = vld [vmem:[%s1908] sm:$0xff]
      %v1910 = vld [vmem:[%s1908 + $0x8] sm:$0xff]
      %v1911 = vmul.f32 %v1889, %v1909
      %v1912 = vmul.f32 %v1891, %v1910
      %v1913 = vsel %vm489, %v1905, 0.0
      %1914 = vadd.xlane.f32.xlu0 %v1913
      %v1915 = vpop.xlane.xlu0 %1914
      %v1916 = vsel %vm489, %v1907, 0.0
      %1917 = vadd.xlane.f32.xlu0 %v1916
      %v1918 = vpop.xlane.xlu0 %1917
      %v1919 = vadd.f32 %v1911, %v1915
      %v1920 = vadd.f32 %v1912, %v1918
      %1921 = vst.msk [vmem:[%s1908] sm:$0xff] %vm532, %v1919
      %1922 = vst.msk [vmem:[%s1908 + $0x8] sm:$0xff] %vm532, %v1920
      %v1923 = vpack.c.bf16 %v1907, %v1905
      %1924 = vrot.lane.b32.xlu0 %v1726, 64
      %v1925 = vpop.permute.xlu0 %1924
      %v1928 = vsel %vm489, %v1923, 0
      %1930 = vmatprep.subr.bf16.mxu0 0
      %1931 = vmatpush1.bf16.msra.mxu0 0
      %1932 = vmatprep.subr.bf16.mxu0 0
      %1933 = vmatpush1.bf16.msra.mxu0 0
      %1934 = vmatprep.subr.bf16.mxu0 0
      %1935 = vmatpush1.bf16.msra.mxu0 0
      %1936 = vmatprep.subr.bf16.mxu0 0
      %1937 = vmatpush1.bf16.msra.mxu0 0
      %1938 = vmatprep.subr.bf16.mxu0 0
      %1939 = vmatpush1.bf16.msra.mxu0 0
      %1940 = vmatprep.subr.bf16.mxu0 0
      %1941 = vmatpush1.bf16.msra.mxu0 0
      %1942 = vmatprep.subr.bf16.mxu0 0
      %1943 = vmatpush1.bf16.msra.mxu0 0
      %1944 = vmatprep.subr.bf16.mxu0 0
      %1945 = vmatpush1.bf16.msra.mxu0 %v1925
      %1946 = vmatprep.subr.bf16.mxu0 0
      %1947 = vmatpush2.bf16.msra.mxu0 0
      %1948 = vmatprep.subr.bf16.mxu0 0
      %1949 = vmatpush2.bf16.msra.mxu0 0
      %1950 = vmatprep.subr.bf16.mxu0 0
      %1951 = vmatpush2.bf16.msra.mxu0 0
      %1952 = vmatprep.subr.bf16.mxu0 0
      %1953 = vmatpush2.bf16.msra.mxu0 0
      %1954 = vmatprep.subr.bf16.mxu0 0
      %1955 = vmatpush2.bf16.msra.mxu0 0
      %1956 = vmatprep.subr.bf16.mxu0 0
      %1957 = vmatpush2.bf16.msra.mxu0 0
      %1958 = vmatprep.subr.bf16.mxu0 0
      %1959 = vmatpush2.bf16.msra.mxu0 0
      %1960 = vmatprep.subr.bf16.mxu0 0
      %1961 = vmatpush2.bf16.msra.mxu0 0
      %1962 = vmatprep.mubr.bf16.mxu0 0
      %1963 = vmatmul.mubr.bf16.gmra.mxu0 %v1928
      %v1964 = vpop.f32.mrf.mxu0
      %v1965 = vadd.f32 0.0, %v1964
      %v1966 = vpop.f32.mrf.mxu0
      %v1967 = vpop.f32.mrf.mxu0
      %v1968 = vadd.f32 0.0, %v1967
      %v1969 = vpop.f32.mrf.mxu0
      %1970 = vdwg.mxu0
      %v1971 = vld [vmem:[#allocation2 + $0x18] sm:$0xff]
      %v1972 = vld [vmem:[#allocation2 + $0x38] sm:$0xff]
      %1974 = vset.pattern.permute.xlu0 0
      %1975 = vperm.xlu0 %1974, %v1889
      %v1976 = vpop.permute.xlu0 %1975
      %1979 = vset.pattern.permute.xlu0 0
      %1980 = vperm.xlu0 %1979, %v1891
      %v1981 = vpop.permute.xlu0 %1980
      %v1983 = vmul.f32 %v1976, %v1971
      %v1984 = vmul.f32 %v1981, %v1972
      %1987 = vrot.lane.b32.xlu0 %v1965, 64
      %v1988 = vpop.permute.xlu0 %1987
      %1989 = vrot.lane.b32.xlu0 %v1968, 64
      %v1990 = vpop.permute.xlu0 %1989
      %v1993 = vadd.f32 %v1983, %v1988
      %v1994 = vadd.f32 %v1984, %v1990
      %1995 = vst.msk [vmem:[#allocation2 + $0x18] sm:$0xff] %vm796, %v1993
      %1996 = vst.msk [vmem:[#allocation2 + $0x38] sm:$0xff] %vm796, %v1994
      %1997 = vst.msk [vmem:[%s1875] sm:$0xff] %vm532, %v1884
      %1998 = vst.msk [vmem:[%s1875 + $0x8] sm:$0xff] %vm532, %v1885
      // Predicated region
      $region37: #{multi_head_attention_forward.4} parent=31 // pred_check
        %p1999 = pneg %p294
      $region38: #{multi_head_attention_forward.4} parent=31 // pred_check_branch
        %2001 = sbr.rel (%p1999) target = $region40
      $region39: #{multi_head_attention_forward.4} parent=31 // pred_region
        %v2002 = vld [vmem:[#allocation4] sm:$0xff]
        %v2003 = vld [vmem:[#allocation4 + $0x8] sm:$0xff]
        %v2004 = vrcp.pop %v2002
        %v2005 = vrcp.pop %v2003
        %v2006 = vld [vmem:[#allocation2] sm:$0xff]
        %v2007 = vld [vmem:[#allocation2 + $0x20] sm:$0xff]
        %2009 = vset.pattern.permute.xlu0 0
        %2010 = vperm.xlu0 %2009, %v2004
        %v2011 = vpop.permute.xlu0 %2010
        %2014 = vset.pattern.permute.xlu0 0
        %2015 = vperm.xlu0 %2014, %v2005
        %v2016 = vpop.permute.xlu0 %2015
        %v2018 = vmul.f32 %v2006, %v2011
        %v2019 = vmul.f32 %v2007, %v2016
        %v2020 = vpack.c.bf16 %v2019, %v2018
        %v2022 = vunpack.c.l.b16 %v2020
        %v2023 = vunpack.c.h.b16 %v2020
        %v2024 = vpack.c.b16 %v2022, %v2022
        %v2025 = vpack.c.b16 %v2023, %v2023
        %vm2028 = vcmask 519168
        %2029 = vst.msk [vmem:[%s290] sm:$0xf] %vm2028, %v2024
        %2030 = vst.msk [vmem:[%s290 + $0x10] sm:$0xf] %vm2028, %v2025
        %v2031 = vld [vmem:[%s709] sm:$0xff]
        %v2032 = vld [vmem:[%s709 + $0x8] sm:$0xff]
        %v2033 = vrcp.pop %v2031
        %v2034 = vrcp.pop %v2032
        %v2035 = vld [vmem:[#allocation2] sm:$0xff]
        %v2036 = vld [vmem:[#allocation2 + $0x20] sm:$0xff]
        %2038 = vset.pattern.permute.xlu0 0
        %2039 = vperm.xlu0 %2038, %v2033
        %v2040 = vpop.permute.xlu0 %2039
        %2043 = vset.pattern.permute.xlu0 0
        %2044 = vperm.xlu0 %2043, %v2034
        %v2045 = vpop.permute.xlu0 %2044
        %v2047 = vmul.f32 %v2035, %v2040
        %v2048 = vmul.f32 %v2036, %v2045
        %v2049 = vpack.c.bf16 %v2048, %v2047
        %v2051 = vunpack.c.l.b16 %v2049
        %v2052 = vunpack.c.h.b16 %v2049
        %v2053 = vpack.c.b16 %v2051, %v2051
        %v2054 = vpack.c.b16 %v2052, %v2052
        %vm2057 = vcmask 1043968
        %2058 = vst.msk [vmem:[%s290] sm:$0xf] %vm2057, %v2053
        %2059 = vst.msk [vmem:[%s290 + $0x10] sm:$0xf] %vm2057, %v2054
        %v2060 = vld [vmem:[%s915] sm:$0xff]
        %v2061 = vld [vmem:[%s915 + $0x8] sm:$0xff]
        %v2062 = vrcp.pop %v2060
        %v2063 = vrcp.pop %v2061
        %v2064 = vld [vmem:[#allocation2 + $0x8] sm:$0xff]
        %v2065 = vld [vmem:[#allocation2 + $0x28] sm:$0xff]
        %2067 = vset.pattern.permute.xlu0 0
        %2068 = vperm.xlu0 %2067, %v2062
        %v2069 = vpop.permute.xlu0 %2068
        %2072 = vset.pattern.permute.xlu0 0
        %2073 = vperm.xlu0 %2072, %v2063
        %v2074 = vpop.permute.xlu0 %2073
        %v2076 = vmul.f32 %v2064, %v2069
        %v2077 = vmul.f32 %v2065, %v2074
        %v2078 = vpack.c.bf16 %v2077, %v2076
        %v2080 = vunpack.c.l.b16 %v2078
        %v2081 = vunpack.c.h.b16 %v2078
        %v2082 = vpack.c.b16 %v2080, %v2080
        %v2083 = vpack.c.b16 %v2081, %v2081
        %2086 = vst.msk [vmem:[%s290 + $0x4] sm:$0xf] %vm2028, %v2082
        %2087 = vst.msk [vmem:[%s290 + $0x14] sm:$0xf] %vm2028, %v2083
        %v2088 = vld [vmem:[%s1115] sm:$0xff]
        %v2089 = vld [vmem:[%s1115 + $0x8] sm:$0xff]
        %v2090 = vrcp.pop %v2088
        %v2091 = vrcp.pop %v2089
        %v2092 = vld [vmem:[#allocation2 + $0x8] sm:$0xff]
        %v2093 = vld [vmem:[#allocation2 + $0x28] sm:$0xff]
        %2095 = vset.pattern.permute.xlu0 0
        %2096 = vperm.xlu0 %2095, %v2090
        %v2097 = vpop.permute.xlu0 %2096
        %2100 = vset.pattern.permute.xlu0 0
        %2101 = vperm.xlu0 %2100, %v2091
        %v2102 = vpop.permute.xlu0 %2101
        %v2104 = vmul.f32 %v2092, %v2097
        %v2105 = vmul.f32 %v2093, %v2102
        %v2106 = vpack.c.bf16 %v2105, %v2104
        %v2108 = vunpack.c.l.b16 %v2106
        %v2109 = vunpack.c.h.b16 %v2106
        %v2110 = vpack.c.b16 %v2108, %v2108
        %v2111 = vpack.c.b16 %v2109, %v2109
        %2114 = vst.msk [vmem:[%s290 + $0x4] sm:$0xf] %vm2057, %v2110
        %2115 = vst.msk [vmem:[%s290 + $0x14] sm:$0xf] %vm2057, %v2111
        %v2116 = vld [vmem:[%s1314] sm:$0xff]
        %v2117 = vld [vmem:[%s1314 + $0x8] sm:$0xff]
        %v2118 = vrcp.pop %v2116
        %v2119 = vrcp.pop %v2117
        %v2120 = vld [vmem:[#allocation2 + $0x10] sm:$0xff]
        %v2121 = vld [vmem:[#allocation2 + $0x30] sm:$0xff]
        %2123 = vset.pattern.permute.xlu0 0
        %2124 = vperm.xlu0 %2123, %v2118
        %v2125 = vpop.permute.xlu0 %2124
        %2128 = vset.pattern.permute.xlu0 0
        %2129 = vperm.xlu0 %2128, %v2119
        %v2130 = vpop.permute.xlu0 %2129
        %v2132 = vmul.f32 %v2120, %v2125
        %v2133 = vmul.f32 %v2121, %v2130
        %v2134 = vpack.c.bf16 %v2133, %v2132
        %v2136 = vunpack.c.l.b16 %v2134
        %v2137 = vunpack.c.h.b16 %v2134
        %v2138 = vpack.c.b16 %v2136, %v2136
        %v2139 = vpack.c.b16 %v2137, %v2137
        %2142 = vst.msk [vmem:[%s290 + $0x8] sm:$0xf] %vm2028, %v2138
        %2143 = vst.msk [vmem:[%s290 + $0x18] sm:$0xf] %vm2028, %v2139
        %v2144 = vld [vmem:[%s1503] sm:$0xff]
        %v2145 = vld [vmem:[%s1503 + $0x8] sm:$0xff]
        %v2146 = vrcp.pop %v2144
        %v2147 = vrcp.pop %v2145
        %v2148 = vld [vmem:[#allocation2 + $0x10] sm:$0xff]
        %v2149 = vld [vmem:[#allocation2 + $0x30] sm:$0xff]
        %2151 = vset.pattern.permute.xlu0 0
        %2152 = vperm.xlu0 %2151, %v2146
        %v2153 = vpop.permute.xlu0 %2152
        %2156 = vset.pattern.permute.xlu0 0
        %2157 = vperm.xlu0 %2156, %v2147
        %v2158 = vpop.permute.xlu0 %2157
        %v2160 = vmul.f32 %v2148, %v2153
        %v2161 = vmul.f32 %v2149, %v2158
        %v2162 = vpack.c.bf16 %v2161, %v2160
        %v2164 = vunpack.c.l.b16 %v2162
        %v2165 = vunpack.c.h.b16 %v2162
        %v2166 = vpack.c.b16 %v2164, %v2164
        %v2167 = vpack.c.b16 %v2165, %v2165
        %2170 = vst.msk [vmem:[%s290 + $0x8] sm:$0xf] %vm2057, %v2166
        %2171 = vst.msk [vmem:[%s290 + $0x18] sm:$0xf] %vm2057, %v2167
        %v2172 = vld [vmem:[%s1708] sm:$0xff]
        %v2173 = vld [vmem:[%s1708 + $0x8] sm:$0xff]
        %v2174 = vrcp.pop %v2172
        %v2175 = vrcp.pop %v2173
        %v2176 = vld [vmem:[#allocation2 + $0x18] sm:$0xff]
        %v2177 = vld [vmem:[#allocation2 + $0x38] sm:$0xff]
        %2179 = vset.pattern.permute.xlu0 0
        %2180 = vperm.xlu0 %2179, %v2174
        %v2181 = vpop.permute.xlu0 %2180
        %2184 = vset.pattern.permute.xlu0 0
        %2185 = vperm.xlu0 %2184, %v2175
        %v2186 = vpop.permute.xlu0 %2185
        %v2188 = vmul.f32 %v2176, %v2181
        %v2189 = vmul.f32 %v2177, %v2186
        %v2190 = vpack.c.bf16 %v2189, %v2188
        %v2192 = vunpack.c.l.b16 %v2190
        %v2193 = vunpack.c.h.b16 %v2190
        %v2194 = vpack.c.b16 %v2192, %v2192
        %v2195 = vpack.c.b16 %v2193, %v2193
        %2198 = vst.msk [vmem:[%s290 + $0xc] sm:$0xf] %vm2028, %v2194
        %2199 = vst.msk [vmem:[%s290 + $0x1c] sm:$0xf] %vm2028, %v2195
        %v2200 = vld [vmem:[%s1908] sm:$0xff]
        %v2201 = vld [vmem:[%s1908 + $0x8] sm:$0xff]
        %v2202 = vrcp.pop %v2200
        %v2203 = vrcp.pop %v2201
        %v2204 = vld [vmem:[#allocation2 + $0x18] sm:$0xff]
        %v2205 = vld [vmem:[#allocation2 + $0x38] sm:$0xff]
        %2207 = vset.pattern.permute.xlu0 0
        %2208 = vperm.xlu0 %2207, %v2202
        %v2209 = vpop.permute.xlu0 %2208
        %2212 = vset.pattern.permute.xlu0 0
        %2213 = vperm.xlu0 %2212, %v2203
        %v2214 = vpop.permute.xlu0 %2213
        %v2216 = vmul.f32 %v2204, %v2209
        %v2217 = vmul.f32 %v2205, %v2214
        %v2218 = vpack.c.bf16 %v2217, %v2216
        %v2220 = vunpack.c.l.b16 %v2218
        %v2221 = vunpack.c.h.b16 %v2218
        %v2222 = vpack.c.b16 %v2220, %v2220
        %v2223 = vpack.c.b16 %v2221, %v2221
        %2226 = vst.msk [vmem:[%s290 + $0xc] sm:$0xf] %vm2057, %v2222
        %2227 = vst.msk [vmem:[%s290 + $0x1c] sm:$0xf] %vm2057, %v2223
      $region40: #{multi_head_attention_forward.4} parent=31 // pred_fallthru
        _
      %s2228 = smul.u32 2, %s20
      %p2229 = scmp.lt.s32.totalorder %s19, 1
      %s2230 = scalar_select %p2229, %s19, 1
      %p2231 = scmp.lt.s32.totalorder %s2228, 1
      %s2232 = scalar_select %p2231, %s2228, 1
      %s2233 = smul.addr %s2232, 4
      %s2234 = smul.addr %s2230, 8
      %s2235 = sadd.s32 %s2233, %s2234
      %s2236 = smul.addr %s2235, 4
      %s2237 = scalar_lea.vmem %s3, %s2236
      // Predicated region
      $region41: #{multi_head_attention_forward.4} parent=31 // pred_check
        %p2238 = pneg %p137
      $region42: #{multi_head_attention_forward.4} parent=31 // pred_check_branch
        %2240 = sbr.rel (%p2238) target = $region44
      $region43: #{multi_head_attention_forward.4} parent=31 // pred_region
        %s2241 = smul.u32 2, %s20
      $region44: #{multi_head_attention_forward.4} parent=31 // pred_fallthru
        _
    $region32: #{multi_head_attention_forward.4} parent=5 // pred_fallthru
      _
    %p2242 = scmp.le.s32.totalorder 2, %s9
    // Predicated region
    $region45: #{multi_head_attention_forward.4} parent=5 // pred_check
      %p2243 = pneg %p2242
    $region46: #{multi_head_attention_forward.4} parent=5 // pred_check_branch
      %2245 = sbr.rel (%p2243) target = $region48
    $region47: #{multi_head_attention_forward.4} parent=5 // pred_region
      %s2246 = ssub.s32 %s9, 2
      // Predicated region
      $region49: #{multi_head_attention_forward.4} parent=47 // pred_check
        %p2247 = pneg %p143
      $region50: #{multi_head_attention_forward.4} parent=47 // pred_check_branch
        %2249 = sbr.rel (%p2247) target = $region52
      $region51: #{multi_head_attention_forward.4} parent=47 // pred_region
        %s2250 = smul.u32 2, %s23
        %p2251 = scmp.lt.s32.totalorder %s22, 1
        %s2252 = scalar_select %p2251, %s22, 1
        %p2253 = scmp.lt.s32.totalorder %s2250, 1
        %s2254 = scalar_select %p2253, %s2250, 1
        %s2255 = smul.addr %s2254, 4
        %s2256 = smul.addr %s2252, 8
        %s2257 = sadd.s32 %s2255, %s2256
        %s2258 = smul.addr %s2257, 4
        %s2259 = scalar_lea.vmem %s3, %s2258
      $region52: #{multi_head_attention_forward.4} parent=47 // pred_fallthru
        _
    $region48: #{multi_head_attention_forward.4} parent=5 // pred_fallthru
      _
  $region6: #{multi_head_attention_forward.4} parent=0 // loop_footer
    %s13 = sadd.s32 1, %s9
  $region7: #{multi_head_attention_forward.4} parent=0 // loop_footer_branch
    %8 = sbr.rel target = $region3
  $region8: #{multi_head_attention_forward.4} parent=0 // loop_exit
    _

</llo_original>
